<compile_context>
chip_gen: v7x
topology: tpu7x:2x2x1
jax: 0.10.0
libtpu: 0.0.40
codegen_flags: <defaults>
</compile_context>

<pallas_src>
import math

import jax
import jax.numpy as jnp
from jax.experimental import pallas as pl
from jax.experimental.pallas import tpu as pltpu

BN_EPS = 1e-5
L1 = 1024   # layer-1 padded width (1000 -> 1024)
L2 = 128    # layer-2..4 / predict padded width (100 -> 128, 1 -> 128)


# ---------------------------------------------------------------------------
# In-kernel building blocks
# ---------------------------------------------------------------------------
def _bn(h, gamma, beta):
    # Training-mode BatchNorm1d (batch mean, biased batch variance) folded into a
    # single per-lane scale/shift.  Variance clamped against f32 cancellation.
    mean = jnp.mean(h, axis=0, keepdims=True)
    var = jnp.maximum(jnp.mean(h * h, axis=0, keepdims=True) - mean * mean, 0.0)
    scale = gamma * jax.lax.rsqrt(var + BN_EPS)
    return h * scale + (beta - mean * scale)


def fused_resnet_kernel(
    # auto-DMA'd VMEM inputs
    x_ref, wcat1_ref, vec1k_ref, vec128_ref,
    # HBM-resident weights (memory_space=pl.ANY), streamed manually
    w1b_hbm, wcat2_hbm, w2b_hbm, w3a_hbm, w3b_hbm, w4a_hbm, w4b_hbm, wp_hbm,
    # output
    o_ref,
    # VMEM scratch destinations + DMA semaphores
    w1b, wcat2, w2b, w3a, w3b, w4a, w4b, wp, sems,
):
    # Kick off all remaining weight DMAs; they overlap with layer-1 compute.
    copies = [
        pltpu.make_async_copy(src, dst, sems.at[i])
        for i, (src, dst) in enumerate([
            (w1b_hbm, w1b), (wcat2_hbm, wcat2), (w2b_hbm, w2b),
            (w3a_hbm, w3a), (w3b_hbm, w3b), (w4a_hbm, w4a),
            (w4b_hbm, w4b), (wp_hbm, wp),
        ])
    ]
    for c in copies:
        c.start()

    # ----- Layer 1: in_pad -> 1000(1024); downsample shortcut fused into wcat1 ---
    x = x_ref[...]
    both = jnp.dot(x.astype(jnp.bfloat16), wcat1_ref[...],
                   preferred_element_type=jnp.float32)            # (B, 2*L1)
    out = both[:, :L1]
    identity = both[:, L1:] + vec1k_ref[0:1, :]                   # + downsample bias
    out = jnp.maximum(_bn(out, vec1k_ref[1:2, :], vec1k_ref[2:3, :]), 0.0)
    copies[0].wait()                                              # w1b ready
    out = jnp.dot(out.astype(jnp.bfloat16), w1b[...],
                  preferred_element_type=jnp.float32)
    out = _bn(out, vec1k_ref[3:4, :], vec1k_ref[4:5, :])
    h = jnp.maximum(out + identity, 0.0)                          # (B, L1)

    # ----- Layer 2: 1000(1024) -> 100(128); downsample fused into wcat2 ----------
    copies[1].wait()                                              # wcat2 ready
    both = jnp.dot(h.astype(jnp.bfloat16), wcat2[...],
                   preferred_element_type=jnp.float32)            # (B, 2*L2)
    out = both[:, :L2]
    identity = both[:, L2:] + vec128_ref[0:1, :]
    out = jnp.maximum(_bn(out, vec128_ref[1:2, :], vec128_ref[2:3, :]), 0.0)
    copies[2].wait()                                              # w2b ready
    out = jnp.dot(out.astype(jnp.bfloat16), w2b[...],
                  preferred_element_type=jnp.float32)
    out = _bn(out, vec128_ref[3:4, :], vec128_ref[4:5, :])
    h = jnp.maximum(out + identity, 0.0)                          # (B, L2)

    # ----- Layer 3: 100 -> 100, identity shortcut --------------------------------
    copies[3].wait()
    copies[4].wait()
    out = jnp.dot(h.astype(jnp.bfloat16), w3a[...], preferred_element_type=jnp.float32)
    out = jnp.maximum(_bn(out, vec128_ref[5:6, :], vec128_ref[6:7, :]), 0.0)
    out = jnp.dot(out.astype(jnp.bfloat16), w3b[...], preferred_element_type=jnp.float32)
    out = _bn(out, vec128_ref[7:8, :], vec128_ref[8:9, :])
    h = jnp.maximum(out + h, 0.0)

    # ----- Layer 4: 100 -> 100, identity shortcut --------------------------------
    copies[5].wait()
    copies[6].wait()
    out = jnp.dot(h.astype(jnp.bfloat16), w4a[...], preferred_element_type=jnp.float32)
    out = jnp.maximum(_bn(out, vec128_ref[9:10, :], vec128_ref[10:11, :]), 0.0)
    out = jnp.dot(out.astype(jnp.bfloat16), w4b[...], preferred_element_type=jnp.float32)
    out = _bn(out, vec128_ref[11:12, :], vec128_ref[12:13, :])
    h = jnp.maximum(out + h, 0.0)

    # ----- predict: 100 -> 1 (lane-padded to 128; column 0 is the real output) ---
    copies[7].wait()
    o_ref[...] = (
        jnp.dot(h.astype(jnp.bfloat16), wp[...], preferred_element_type=jnp.float32)
        + vec128_ref[13:14, :]
    )


# ---------------------------------------------------------------------------
# pallas_call wrapper (single fused gridless kernel)
# ---------------------------------------------------------------------------
def resnet_forward(x_padded, params):
    batch, in_pad = x_padded.shape
    (wcat1, vec1k, vec128, w1b, wcat2, w2b, w3a, w3b, w4a, w4b, wp) = params

    vmem_spec = pl.BlockSpec(memory_space=pltpu.MemorySpace.VMEM)
    any_spec = pl.BlockSpec(memory_space=pl.ANY)

    flops = 2 * batch * (in_pad * 2 * L1 + L1 * L1 + L1 * 2 * L2 + 6 * L2 * L2)
    bytes_accessed = (
        x_padded.size * 4 + wcat1.size * 2 + vec1k.size * 4 + vec128.size * 4
        + (w1b.size + wcat2.size + w2b.size + w3a.size + w3b.size
           + w4a.size + w4b.size + wp.size) * 2
        + batch * L2 * 4
    )

    out = pl.pallas_call(
        fused_resnet_kernel,
        out_shape=jax.ShapeDtypeStruct((batch, L2), jnp.float32),
        in_specs=[vmem_spec] * 4 + [any_spec] * 8,
        out_specs=vmem_spec,
        scratch_shapes=[
            pltpu.VMEM((L1, L1), jnp.bfloat16),        # w1b
            pltpu.VMEM((L1, 2 * L2), jnp.bfloat16),    # wcat2
            pltpu.VMEM((L2, L2), jnp.bfloat16),        # w2b
            pltpu.VMEM((L2, L2), jnp.bfloat16),        # w3a
            pltpu.VMEM((L2, L2), jnp.bfloat16),        # w3b
            pltpu.VMEM((L2, L2), jnp.bfloat16),        # w4a
            pltpu.VMEM((L2, L2), jnp.bfloat16),        # w4b
            pltpu.VMEM((L2, L2), jnp.bfloat16),        # wp
            pltpu.SemaphoreType.DMA((8,)),
        ],
        compiler_params=pltpu.CompilerParams(vmem_limit_bytes=12 << 20),
        cost_estimate=pl.CostEstimate(
            flops=flops,
            transcendentals=2 * L1 + 6 * L2,
            bytes_accessed=bytes_accessed),
    )(x_padded, wcat1, vec1k, vec128, w1b, wcat2, w2b, w3a, w3b, w4a, w4b, wp)
    return out[:, :1]  # real predict output is a single feature


# ---------------------------------------------------------------------------
# Deterministic parameter construction (kaiming_uniform fan_in like the torch
# module; weights stored as (in, out) = transpose of torch's (out, in), zero-
# padded to lane multiples, cast to bf16; per-lane vectors packed into slabs).
# ---------------------------------------------------------------------------
def _pad_to(a, shape):
    return jnp.pad(a, [(0, t - s) for s, t in zip(a.shape, shape)])


def _kaiming_uniform(key, fan_in, fan_out):
    bound = math.sqrt(2.0) * math.sqrt(3.0 / fan_in)
    return jax.random.uniform(key, (fan_in, fan_out), jnp.float32, -bound, bound)


def _bias(key, fan_in, fan_out):
    bound = 1.0 / math.sqrt(fan_in)
    return jax.random.uniform(key, (1, fan_out), jnp.float32, -bound, bound)


def make_resnet_params(key, in_feature):
    in_pad = max(128, ((in_feature + 127) // 128) * 128)
    k = jax.random.split(key, 14)

    # Layer1: in_feature -> 1000 (downsample), padded in_pad -> 1024
    w11 = _pad_to(_kaiming_uniform(k[0], in_feature, 1000), (in_pad, L1))
    wd1 = _pad_to(_kaiming_uniform(k[1], in_feature, 1000), (in_pad, L1))
    wcat1 = jnp.concatenate([w11, wd1], axis=1).astype(jnp.bfloat16)   # (in_pad, 2048)
    bd1 = _pad_to(_bias(k[2], in_feature, 1000), (1, L1))
    w1b = _pad_to(_kaiming_uniform(k[3], 1000, 1000), (L1, L1)).astype(jnp.bfloat16)

    # Layer2: 1000 -> 100 (downsample), padded 1024 -> 128
    w21 = _pad_to(_kaiming_uniform(k[4], 1000, 100), (L1, L2))
    wd2 = _pad_to(_kaiming_uniform(k[5], 1000, 100), (L1, L2))
    wcat2 = jnp.concatenate([w21, wd2], axis=1).astype(jnp.bfloat16)   # (1024, 256)
    bd2 = _pad_to(_bias(k[6], 1000, 100), (1, L2))
    w2b = _pad_to(_kaiming_uniform(k[7], 100, 100), (L2, L2)).astype(jnp.bfloat16)

    # Layers 3, 4: 100 -> 100 (identity shortcut)
    w3a = _pad_to(_kaiming_uniform(k[8], 100, 100), (L2, L2)).astype(jnp.bfloat16)
    w3b = _pad_to(_kaiming_uniform(k[9], 100, 100), (L2, L2)).astype(jnp.bfloat16)
    w4a = _pad_to(_kaiming_uniform(k[10], 100, 100), (L2, L2)).astype(jnp.bfloat16)
    w4b = _pad_to(_kaiming_uniform(k[11], 100, 100), (L2, L2)).astype(jnp.bfloat16)

    # predict: 100 -> 1, padded 128 -> 128
    wp = _pad_to(_kaiming_uniform(k[12], 100, 1), (L2, L2)).astype(jnp.bfloat16)
    bp = _pad_to(_bias(k[13], 100, 1), (1, L2))

    # Fresh BatchNorm1d: gamma = 1, beta = 0.  (gamma = 1 on padded lanes is
    # harmless: BN of an all-zero lane stays exactly 0.)
    ones_1k, zeros_1k = jnp.ones((1, L1), jnp.float32), jnp.zeros((1, L1), jnp.float32)
    ones_128, zeros_128 = jnp.ones((1, L2), jnp.float32), jnp.zeros((1, L2), jnp.float32)

    # Packed per-lane vector slabs; row layout must match the kernel's slices.
    vec1k = jnp.concatenate(
        [bd1, ones_1k, zeros_1k, ones_1k, zeros_1k] + [zeros_1k] * 3, axis=0)   # (8,1024)
    vec128 = jnp.concatenate(
        [bd2,
         ones_128, zeros_128, ones_128, zeros_128,    # layer2 bn1 / bn2
         ones_128, zeros_128, ones_128, zeros_128,    # layer3 bn1 / bn2
         ones_128, zeros_128, ones_128, zeros_128,    # layer4 bn1 / bn2
         bp] + [zeros_128] * 2, axis=0)               # (16,128)

    params = (wcat1, vec1k, vec128, w1b, wcat2, w2b, w3a, w3b, w4a, w4b, wp)
    return params, in_pad


if __name__ == "__main__":
    key = jax.random.PRNGKey(0)
    kp, kx = jax.random.split(key)

    batch, in_feature = 8, 32
    params, in_pad = make_resnet_params(kp, in_feature)
    x = jax.random.normal(kx, (batch, in_feature), jnp.float32)
    x_padded = jnp.pad(x, ((0, 0), (0, in_pad - in_feature)))

    out = resnet_forward(x_padded, params)
    out = jax.block_until_ready(out)
    assert out.shape == (batch, 1) and out.dtype == jnp.float32
    assert bool(jnp.all(jnp.isfinite(out)))
    print("KERNEL_OK")
</pallas_src>

<mosaic_0001>
module attributes {stable_mosaic.version = 11 : i64} {
  func.func @fused_resnet_kernel(%arg0: memref<8x128xf32, #tpu.memory_space<vmem>>, %arg1: memref<128x2048xbf16, #tpu.memory_space<vmem>>, %arg2: memref<8x1024xf32, #tpu.memory_space<vmem>>, %arg3: memref<16x128xf32, #tpu.memory_space<vmem>>, %arg4: memref<1024x1024xbf16, #tpu.memory_space<any>>, %arg5: memref<1024x256xbf16, #tpu.memory_space<any>>, %arg6: memref<128x128xbf16, #tpu.memory_space<any>>, %arg7: memref<128x128xbf16, #tpu.memory_space<any>>, %arg8: memref<128x128xbf16, #tpu.memory_space<any>>, %arg9: memref<128x128xbf16, #tpu.memory_space<any>>, %arg10: memref<128x128xbf16, #tpu.memory_space<any>>, %arg11: memref<128x128xbf16, #tpu.memory_space<any>>, %arg12: memref<8x128xf32, #tpu.memory_space<vmem>>, %arg13: memref<1024x1024xbf16, #tpu.memory_space<vmem>>, %arg14: memref<1024x256xbf16, #tpu.memory_space<vmem>>, %arg15: memref<128x128xbf16, #tpu.memory_space<vmem>>, %arg16: memref<128x128xbf16, #tpu.memory_space<vmem>>, %arg17: memref<128x128xbf16, #tpu.memory_space<vmem>>, %arg18: memref<128x128xbf16, #tpu.memory_space<vmem>>, %arg19: memref<128x128xbf16, #tpu.memory_space<vmem>>, %arg20: memref<128x128xbf16, #tpu.memory_space<vmem>>, %arg21: memref<8x!tpu.dma_semaphore, #tpu.memory_space<semaphore_mem>>) attributes {dimension_semantics = [], scalar_prefetch = 0 : i64, scratch_operands = 9 : i64, tpu.core_type = #tpu.core_type<tc>} {
    %c0_i32 = arith.constant 0 : i32
    %0 = tpu.memref_slice %arg21[%c0_i32] : memref<8x!tpu.dma_semaphore, #tpu.memory_space<semaphore_mem>> -> memref<1x!tpu.dma_semaphore, #tpu.memory_space<semaphore_mem>>
    %1 = tpu.memref_squeeze %0 : memref<1x!tpu.dma_semaphore, #tpu.memory_space<semaphore_mem>> -> memref<!tpu.dma_semaphore, #tpu.memory_space<semaphore_mem>>
    tpu.enqueue_dma source(%arg4 : memref<1024x1024xbf16, #tpu.memory_space<any>>) target(%arg13 : memref<1024x1024xbf16, #tpu.memory_space<vmem>>) target_semaphore(%1 : memref<!tpu.dma_semaphore, #tpu.memory_space<semaphore_mem>>)
    %c1_i32 = arith.constant 1 : i32
    %2 = tpu.memref_slice %arg21[%c1_i32] : memref<8x!tpu.dma_semaphore, #tpu.memory_space<semaphore_mem>> -> memref<1x!tpu.dma_semaphore, #tpu.memory_space<semaphore_mem>>
    %3 = tpu.memref_squeeze %2 : memref<1x!tpu.dma_semaphore, #tpu.memory_space<semaphore_mem>> -> memref<!tpu.dma_semaphore, #tpu.memory_space<semaphore_mem>>
    tpu.enqueue_dma source(%arg5 : memref<1024x256xbf16, #tpu.memory_space<any>>) target(%arg14 : memref<1024x256xbf16, #tpu.memory_space<vmem>>) target_semaphore(%3 : memref<!tpu.dma_semaphore, #tpu.memory_space<semaphore_mem>>)
    %c2_i32 = arith.constant 2 : i32
    %4 = tpu.memref_slice %arg21[%c2_i32] : memref<8x!tpu.dma_semaphore, #tpu.memory_space<semaphore_mem>> -> memref<1x!tpu.dma_semaphore, #tpu.memory_space<semaphore_mem>>
    %5 = tpu.memref_squeeze %4 : memref<1x!tpu.dma_semaphore, #tpu.memory_space<semaphore_mem>> -> memref<!tpu.dma_semaphore, #tpu.memory_space<semaphore_mem>>
    tpu.enqueue_dma source(%arg6 : memref<128x128xbf16, #tpu.memory_space<any>>) target(%arg15 : memref<128x128xbf16, #tpu.memory_space<vmem>>) target_semaphore(%5 : memref<!tpu.dma_semaphore, #tpu.memory_space<semaphore_mem>>)
    %c3_i32 = arith.constant 3 : i32
    %6 = tpu.memref_slice %arg21[%c3_i32] : memref<8x!tpu.dma_semaphore, #tpu.memory_space<semaphore_mem>> -> memref<1x!tpu.dma_semaphore, #tpu.memory_space<semaphore_mem>>
    %7 = tpu.memref_squeeze %6 : memref<1x!tpu.dma_semaphore, #tpu.memory_space<semaphore_mem>> -> memref<!tpu.dma_semaphore, #tpu.memory_space<semaphore_mem>>
    tpu.enqueue_dma source(%arg7 : memref<128x128xbf16, #tpu.memory_space<any>>) target(%arg16 : memref<128x128xbf16, #tpu.memory_space<vmem>>) target_semaphore(%7 : memref<!tpu.dma_semaphore, #tpu.memory_space<semaphore_mem>>)
    %c4_i32 = arith.constant 4 : i32
    %8 = tpu.memref_slice %arg21[%c4_i32] : memref<8x!tpu.dma_semaphore, #tpu.memory_space<semaphore_mem>> -> memref<1x!tpu.dma_semaphore, #tpu.memory_space<semaphore_mem>>
    %9 = tpu.memref_squeeze %8 : memref<1x!tpu.dma_semaphore, #tpu.memory_space<semaphore_mem>> -> memref<!tpu.dma_semaphore, #tpu.memory_space<semaphore_mem>>
    tpu.enqueue_dma source(%arg8 : memref<128x128xbf16, #tpu.memory_space<any>>) target(%arg17 : memref<128x128xbf16, #tpu.memory_space<vmem>>) target_semaphore(%9 : memref<!tpu.dma_semaphore, #tpu.memory_space<semaphore_mem>>)
    %c5_i32 = arith.constant 5 : i32
    %10 = tpu.memref_slice %arg21[%c5_i32] : memref<8x!tpu.dma_semaphore, #tpu.memory_space<semaphore_mem>> -> memref<1x!tpu.dma_semaphore, #tpu.memory_space<semaphore_mem>>
    %11 = tpu.memref_squeeze %10 : memref<1x!tpu.dma_semaphore, #tpu.memory_space<semaphore_mem>> -> memref<!tpu.dma_semaphore, #tpu.memory_space<semaphore_mem>>
    tpu.enqueue_dma source(%arg9 : memref<128x128xbf16, #tpu.memory_space<any>>) target(%arg18 : memref<128x128xbf16, #tpu.memory_space<vmem>>) target_semaphore(%11 : memref<!tpu.dma_semaphore, #tpu.memory_space<semaphore_mem>>)
    %c6_i32 = arith.constant 6 : i32
    %12 = tpu.memref_slice %arg21[%c6_i32] : memref<8x!tpu.dma_semaphore, #tpu.memory_space<semaphore_mem>> -> memref<1x!tpu.dma_semaphore, #tpu.memory_space<semaphore_mem>>
    %13 = tpu.memref_squeeze %12 : memref<1x!tpu.dma_semaphore, #tpu.memory_space<semaphore_mem>> -> memref<!tpu.dma_semaphore, #tpu.memory_space<semaphore_mem>>
    tpu.enqueue_dma source(%arg10 : memref<128x128xbf16, #tpu.memory_space<any>>) target(%arg19 : memref<128x128xbf16, #tpu.memory_space<vmem>>) target_semaphore(%13 : memref<!tpu.dma_semaphore, #tpu.memory_space<semaphore_mem>>)
    %c7_i32 = arith.constant 7 : i32
    %14 = tpu.memref_slice %arg21[%c7_i32] : memref<8x!tpu.dma_semaphore, #tpu.memory_space<semaphore_mem>> -> memref<1x!tpu.dma_semaphore, #tpu.memory_space<semaphore_mem>>
    %15 = tpu.memref_squeeze %14 : memref<1x!tpu.dma_semaphore, #tpu.memory_space<semaphore_mem>> -> memref<!tpu.dma_semaphore, #tpu.memory_space<semaphore_mem>>
    tpu.enqueue_dma source(%arg11 : memref<128x128xbf16, #tpu.memory_space<any>>) target(%arg20 : memref<128x128xbf16, #tpu.memory_space<vmem>>) target_semaphore(%15 : memref<!tpu.dma_semaphore, #tpu.memory_space<semaphore_mem>>)
    %c0 = arith.constant 0 : index
    %c0_0 = arith.constant 0 : index
    %16 = vector.load %arg0[%c0, %c0_0] : memref<8x128xf32, #tpu.memory_space<vmem>>, vector<8x128xf32>
    %17 = arith.truncf %16 : vector<8x128xf32> to vector<8x128xbf16>
    %c0_1 = arith.constant 0 : index
    %c0_2 = arith.constant 0 : index
    %18 = vector.load %arg1[%c0_1, %c0_2] : memref<128x2048xbf16, #tpu.memory_space<vmem>>, vector<128x2048xbf16>
    %cst = arith.constant dense<0.000000e+00> : vector<8x2048xf32>
    %19 = tpu.matmul %17, %18, %cst {dimension_numbers = #tpu.dot_dimension_numbers<[1], [0], [0], [1], [0, 0, 1, 1], [], []>} : vector<8x128xbf16>, vector<128x2048xbf16>, vector<8x2048xf32> -> vector<8x2048xf32>
    %20 = vector.extract_strided_slice %19 {offsets = [0, 0], sizes = [8, 1024], strides = [1, 1]} : vector<8x2048xf32> to vector<8x1024xf32>
    %21 = vector.extract_strided_slice %19 {offsets = [0, 1024], sizes = [8, 1024], strides = [1, 1]} : vector<8x2048xf32> to vector<8x1024xf32>
    %c0_3 = arith.constant 0 : index
    %c0_4 = arith.constant 0 : index
    %22 = vector.load %arg2[%c0_3, %c0_4] : memref<8x1024xf32, #tpu.memory_space<vmem>>, vector<1x1024xf32>
    %23 = vector.broadcast %22 : vector<1x1024xf32> to vector<8x1024xf32>
    %24 = arith.addf %21, %23 : vector<8x1024xf32>
    %c1 = arith.constant 1 : index
    %c0_5 = arith.constant 0 : index
    %25 = vector.load %arg2[%c1, %c0_5] : memref<8x1024xf32, #tpu.memory_space<vmem>>, vector<1x1024xf32>
    %c2 = arith.constant 2 : index
    %c0_6 = arith.constant 0 : index
    %26 = vector.load %arg2[%c2, %c0_6] : memref<8x1024xf32, #tpu.memory_space<vmem>>, vector<1x1024xf32>
    %cst_7 = arith.constant dense<0.000000e+00> : vector<1024xf32>
    %27 = vector.multi_reduction <add>, %20, %cst_7 [0] : vector<8x1024xf32> to vector<1024xf32>
    %28 = vector.shape_cast %27 : vector<1024xf32> to vector<1x1024xf32>
    %cst_8 = arith.constant 8.000000e+00 : f32
    %29 = vector.broadcast %cst_8 : f32 to vector<1x1024xf32>
    %30 = arith.divf %28, %29 : vector<1x1024xf32>
    %31 = arith.mulf %20, %20 : vector<8x1024xf32>
    %cst_9 = arith.constant dense<0.000000e+00> : vector<1024xf32>
    %32 = vector.multi_reduction <add>, %31, %cst_9 [0] : vector<8x1024xf32> to vector<1024xf32>
    %33 = vector.shape_cast %32 : vector<1024xf32> to vector<1x1024xf32>
    %cst_10 = arith.constant 8.000000e+00 : f32
    %34 = vector.broadcast %cst_10 : f32 to vector<1x1024xf32>
    %35 = arith.divf %33, %34 : vector<1x1024xf32>
    %36 = arith.mulf %30, %30 : vector<1x1024xf32>
    %37 = arith.subf %35, %36 : vector<1x1024xf32>
    %cst_11 = arith.constant 0.000000e+00 : f32
    %38 = vector.broadcast %cst_11 : f32 to vector<1x1024xf32>
    %39 = arith.maximumf %37, %38 : vector<1x1024xf32>
    %cst_12 = arith.constant 9.99999974E-6 : f32
    %40 = vector.broadcast %cst_12 : f32 to vector<1x1024xf32>
    %41 = arith.addf %39, %40 : vector<1x1024xf32>
    %42 = math.rsqrt %41 : vector<1x1024xf32>
    %43 = arith.mulf %25, %42 : vector<1x1024xf32>
    %44 = vector.broadcast %43 : vector<1x1024xf32> to vector<8x1024xf32>
    %45 = arith.mulf %20, %44 : vector<8x1024xf32>
    %46 = arith.mulf %30, %43 : vector<1x1024xf32>
    %47 = arith.subf %26, %46 : vector<1x1024xf32>
    %48 = vector.broadcast %47 : vector<1x1024xf32> to vector<8x1024xf32>
    %49 = arith.addf %45, %48 : vector<8x1024xf32>
    %cst_13 = arith.constant 0.000000e+00 : f32
    %50 = vector.broadcast %cst_13 : f32 to vector<8x1024xf32>
    %51 = arith.maximumf %49, %50 : vector<8x1024xf32>
    %c0_i32_14 = arith.constant 0 : i32
    %52 = tpu.memref_slice %arg21[%c0_i32_14] : memref<8x!tpu.dma_semaphore, #tpu.memory_space<semaphore_mem>> -> memref<1x!tpu.dma_semaphore, #tpu.memory_space<semaphore_mem>>
    %53 = tpu.memref_squeeze %52 : memref<1x!tpu.dma_semaphore, #tpu.memory_space<semaphore_mem>> -> memref<!tpu.dma_semaphore, #tpu.memory_space<semaphore_mem>>
    tpu.wait_dma2 semaphore(%53 : memref<!tpu.dma_semaphore, #tpu.memory_space<semaphore_mem>>) src(%arg4 : memref<1024x1024xbf16, #tpu.memory_space<any>>) dst(%arg13 : memref<1024x1024xbf16, #tpu.memory_space<vmem>>)
    %54 = arith.truncf %51 : vector<8x1024xf32> to vector<8x1024xbf16>
    %c0_15 = arith.constant 0 : index
    %c0_16 = arith.constant 0 : index
    %55 = vector.load %arg13[%c0_15, %c0_16] : memref<1024x1024xbf16, #tpu.memory_space<vmem>>, vector<1024x1024xbf16>
    %cst_17 = arith.constant dense<0.000000e+00> : vector<8x1024xf32>
    %56 = tpu.matmul %54, %55, %cst_17 {dimension_numbers = #tpu.dot_dimension_numbers<[1], [0], [0], [1], [0, 0, 1, 1], [], []>} : vector<8x1024xbf16>, vector<1024x1024xbf16>, vector<8x1024xf32> -> vector<8x1024xf32>
    %c3 = arith.constant 3 : index
    %c0_18 = arith.constant 0 : index
    %57 = vector.load %arg2[%c3, %c0_18] : memref<8x1024xf32, #tpu.memory_space<vmem>>, vector<1x1024xf32>
    %c4 = arith.constant 4 : index
    %c0_19 = arith.constant 0 : index
    %58 = vector.load %arg2[%c4, %c0_19] : memref<8x1024xf32, #tpu.memory_space<vmem>>, vector<1x1024xf32>
    %cst_20 = arith.constant dense<0.000000e+00> : vector<1024xf32>
    %59 = vector.multi_reduction <add>, %56, %cst_20 [0] : vector<8x1024xf32> to vector<1024xf32>
    %60 = vector.shape_cast %59 : vector<1024xf32> to vector<1x1024xf32>
    %cst_21 = arith.constant 8.000000e+00 : f32
    %61 = vector.broadcast %cst_21 : f32 to vector<1x1024xf32>
    %62 = arith.divf %60, %61 : vector<1x1024xf32>
    %63 = arith.mulf %56, %56 : vector<8x1024xf32>
    %cst_22 = arith.constant dense<0.000000e+00> : vector<1024xf32>
    %64 = vector.multi_reduction <add>, %63, %cst_22 [0] : vector<8x1024xf32> to vector<1024xf32>
    %65 = vector.shape_cast %64 : vector<1024xf32> to vector<1x1024xf32>
    %cst_23 = arith.constant 8.000000e+00 : f32
    %66 = vector.broadcast %cst_23 : f32 to vector<1x1024xf32>
    %67 = arith.divf %65, %66 : vector<1x1024xf32>
    %68 = arith.mulf %62, %62 : vector<1x1024xf32>
    %69 = arith.subf %67, %68 : vector<1x1024xf32>
    %cst_24 = arith.constant 0.000000e+00 : f32
    %70 = vector.broadcast %cst_24 : f32 to vector<1x1024xf32>
    %71 = arith.maximumf %69, %70 : vector<1x1024xf32>
    %cst_25 = arith.constant 9.99999974E-6 : f32
    %72 = vector.broadcast %cst_25 : f32 to vector<1x1024xf32>
    %73 = arith.addf %71, %72 : vector<1x1024xf32>
    %74 = math.rsqrt %73 : vector<1x1024xf32>
    %75 = arith.mulf %57, %74 : vector<1x1024xf32>
    %76 = vector.broadcast %75 : vector<1x1024xf32> to vector<8x1024xf32>
    %77 = arith.mulf %56, %76 : vector<8x1024xf32>
    %78 = arith.mulf %62, %75 : vector<1x1024xf32>
    %79 = arith.subf %58, %78 : vector<1x1024xf32>
    %80 = vector.broadcast %79 : vector<1x1024xf32> to vector<8x1024xf32>
    %81 = arith.addf %77, %80 : vector<8x1024xf32>
    %82 = arith.addf %81, %24 : vector<8x1024xf32>
    %cst_26 = arith.constant 0.000000e+00 : f32
    %83 = vector.broadcast %cst_26 : f32 to vector<8x1024xf32>
    %84 = arith.maximumf %82, %83 : vector<8x1024xf32>
    %c1_i32_27 = arith.constant 1 : i32
    %85 = tpu.memref_slice %arg21[%c1_i32_27] : memref<8x!tpu.dma_semaphore, #tpu.memory_space<semaphore_mem>> -> memref<1x!tpu.dma_semaphore, #tpu.memory_space<semaphore_mem>>
    %86 = tpu.memref_squeeze %85 : memref<1x!tpu.dma_semaphore, #tpu.memory_space<semaphore_mem>> -> memref<!tpu.dma_semaphore, #tpu.memory_space<semaphore_mem>>
    tpu.wait_dma2 semaphore(%86 : memref<!tpu.dma_semaphore, #tpu.memory_space<semaphore_mem>>) src(%arg5 : memref<1024x256xbf16, #tpu.memory_space<any>>) dst(%arg14 : memref<1024x256xbf16, #tpu.memory_space<vmem>>)
    %87 = arith.truncf %84 : vector<8x1024xf32> to vector<8x1024xbf16>
    %c0_28 = arith.constant 0 : index
    %c0_29 = arith.constant 0 : index
    %88 = vector.load %arg14[%c0_28, %c0_29] : memref<1024x256xbf16, #tpu.memory_space<vmem>>, vector<1024x256xbf16>
    %cst_30 = arith.constant dense<0.000000e+00> : vector<8x256xf32>
    %89 = tpu.matmul %87, %88, %cst_30 {dimension_numbers = #tpu.dot_dimension_numbers<[1], [0], [0], [1], [0, 0, 1, 1], [], []>} : vector<8x1024xbf16>, vector<1024x256xbf16>, vector<8x256xf32> -> vector<8x256xf32>
    %90 = vector.extract_strided_slice %89 {offsets = [0, 0], sizes = [8, 128], strides = [1, 1]} : vector<8x256xf32> to vector<8x128xf32>
    %91 = vector.extract_strided_slice %89 {offsets = [0, 128], sizes = [8, 128], strides = [1, 1]} : vector<8x256xf32> to vector<8x128xf32>
    %c0_31 = arith.constant 0 : index
    %c0_32 = arith.constant 0 : index
    %92 = vector.load %arg3[%c0_31, %c0_32] : memref<16x128xf32, #tpu.memory_space<vmem>>, vector<1x128xf32>
    %93 = vector.broadcast %92 : vector<1x128xf32> to vector<8x128xf32>
    %94 = arith.addf %91, %93 : vector<8x128xf32>
    %c1_33 = arith.constant 1 : index
    %c0_34 = arith.constant 0 : index
    %95 = vector.load %arg3[%c1_33, %c0_34] : memref<16x128xf32, #tpu.memory_space<vmem>>, vector<1x128xf32>
    %c2_35 = arith.constant 2 : index
    %c0_36 = arith.constant 0 : index
    %96 = vector.load %arg3[%c2_35, %c0_36] : memref<16x128xf32, #tpu.memory_space<vmem>>, vector<1x128xf32>
    %cst_37 = arith.constant dense<0.000000e+00> : vector<128xf32>
    %97 = vector.multi_reduction <add>, %90, %cst_37 [0] : vector<8x128xf32> to vector<128xf32>
    %98 = vector.shape_cast %97 : vector<128xf32> to vector<1x128xf32>
    %cst_38 = arith.constant 8.000000e+00 : f32
    %99 = vector.broadcast %cst_38 : f32 to vector<1x128xf32>
    %100 = arith.divf %98, %99 : vector<1x128xf32>
    %101 = arith.mulf %90, %90 : vector<8x128xf32>
    %cst_39 = arith.constant dense<0.000000e+00> : vector<128xf32>
    %102 = vector.multi_reduction <add>, %101, %cst_39 [0] : vector<8x128xf32> to vector<128xf32>
    %103 = vector.shape_cast %102 : vector<128xf32> to vector<1x128xf32>
    %cst_40 = arith.constant 8.000000e+00 : f32
    %104 = vector.broadcast %cst_40 : f32 to vector<1x128xf32>
    %105 = arith.divf %103, %104 : vector<1x128xf32>
    %106 = arith.mulf %100, %100 : vector<1x128xf32>
    %107 = arith.subf %105, %106 : vector<1x128xf32>
    %cst_41 = arith.constant 0.000000e+00 : f32
    %108 = vector.broadcast %cst_41 : f32 to vector<1x128xf32>
    %109 = arith.maximumf %107, %108 : vector<1x128xf32>
    %cst_42 = arith.constant 9.99999974E-6 : f32
    %110 = vector.broadcast %cst_42 : f32 to vector<1x128xf32>
    %111 = arith.addf %109, %110 : vector<1x128xf32>
    %112 = math.rsqrt %111 : vector<1x128xf32>
    %113 = arith.mulf %95, %112 : vector<1x128xf32>
    %114 = vector.broadcast %113 : vector<1x128xf32> to vector<8x128xf32>
    %115 = arith.mulf %90, %114 : vector<8x128xf32>
    %116 = arith.mulf %100, %113 : vector<1x128xf32>
    %117 = arith.subf %96, %116 : vector<1x128xf32>
    %118 = vector.broadcast %117 : vector<1x128xf32> to vector<8x128xf32>
    %119 = arith.addf %115, %118 : vector<8x128xf32>
    %cst_43 = arith.constant 0.000000e+00 : f32
    %120 = vector.broadcast %cst_43 : f32 to vector<8x128xf32>
    %121 = arith.maximumf %119, %120 : vector<8x128xf32>
    %c2_i32_44 = arith.constant 2 : i32
    %122 = tpu.memref_slice %arg21[%c2_i32_44] : memref<8x!tpu.dma_semaphore, #tpu.memory_space<semaphore_mem>> -> memref<1x!tpu.dma_semaphore, #tpu.memory_space<semaphore_mem>>
    %123 = tpu.memref_squeeze %122 : memref<1x!tpu.dma_semaphore, #tpu.memory_space<semaphore_mem>> -> memref<!tpu.dma_semaphore, #tpu.memory_space<semaphore_mem>>
    tpu.wait_dma2 semaphore(%123 : memref<!tpu.dma_semaphore, #tpu.memory_space<semaphore_mem>>) src(%arg6 : memref<128x128xbf16, #tpu.memory_space<any>>) dst(%arg15 : memref<128x128xbf16, #tpu.memory_space<vmem>>)
    %124 = arith.truncf %121 : vector<8x128xf32> to vector<8x128xbf16>
    %c0_45 = arith.constant 0 : index
    %c0_46 = arith.constant 0 : index
    %125 = vector.load %arg15[%c0_45, %c0_46] : memref<128x128xbf16, #tpu.memory_space<vmem>>, vector<128x128xbf16>
    %cst_47 = arith.constant dense<0.000000e+00> : vector<8x128xf32>
    %126 = tpu.matmul %124, %125, %cst_47 {dimension_numbers = #tpu.dot_dimension_numbers<[1], [0], [0], [1], [0, 0, 1, 1], [], []>} : vector<8x128xbf16>, vector<128x128xbf16>, vector<8x128xf32> -> vector<8x128xf32>
    %c3_48 = arith.constant 3 : index
    %c0_49 = arith.constant 0 : index
    %127 = vector.load %arg3[%c3_48, %c0_49] : memref<16x128xf32, #tpu.memory_space<vmem>>, vector<1x128xf32>
    %c4_50 = arith.constant 4 : index
    %c0_51 = arith.constant 0 : index
    %128 = vector.load %arg3[%c4_50, %c0_51] : memref<16x128xf32, #tpu.memory_space<vmem>>, vector<1x128xf32>
    %cst_52 = arith.constant dense<0.000000e+00> : vector<128xf32>
    %129 = vector.multi_reduction <add>, %126, %cst_52 [0] : vector<8x128xf32> to vector<128xf32>
    %130 = vector.shape_cast %129 : vector<128xf32> to vector<1x128xf32>
    %cst_53 = arith.constant 8.000000e+00 : f32
    %131 = vector.broadcast %cst_53 : f32 to vector<1x128xf32>
    %132 = arith.divf %130, %131 : vector<1x128xf32>
    %133 = arith.mulf %126, %126 : vector<8x128xf32>
    %cst_54 = arith.constant dense<0.000000e+00> : vector<128xf32>
    %134 = vector.multi_reduction <add>, %133, %cst_54 [0] : vector<8x128xf32> to vector<128xf32>
    %135 = vector.shape_cast %134 : vector<128xf32> to vector<1x128xf32>
    %cst_55 = arith.constant 8.000000e+00 : f32
    %136 = vector.broadcast %cst_55 : f32 to vector<1x128xf32>
    %137 = arith.divf %135, %136 : vector<1x128xf32>
    %138 = arith.mulf %132, %132 : vector<1x128xf32>
    %139 = arith.subf %137, %138 : vector<1x128xf32>
    %cst_56 = arith.constant 0.000000e+00 : f32
    %140 = vector.broadcast %cst_56 : f32 to vector<1x128xf32>
    %141 = arith.maximumf %139, %140 : vector<1x128xf32>
    %cst_57 = arith.constant 9.99999974E-6 : f32
    %142 = vector.broadcast %cst_57 : f32 to vector<1x128xf32>
    %143 = arith.addf %141, %142 : vector<1x128xf32>
    %144 = math.rsqrt %143 : vector<1x128xf32>
    %145 = arith.mulf %127, %144 : vector<1x128xf32>
    %146 = vector.broadcast %145 : vector<1x128xf32> to vector<8x128xf32>
    %147 = arith.mulf %126, %146 : vector<8x128xf32>
    %148 = arith.mulf %132, %145 : vector<1x128xf32>
    %149 = arith.subf %128, %148 : vector<1x128xf32>
    %150 = vector.broadcast %149 : vector<1x128xf32> to vector<8x128xf32>
    %151 = arith.addf %147, %150 : vector<8x128xf32>
    %152 = arith.addf %151, %94 : vector<8x128xf32>
    %cst_58 = arith.constant 0.000000e+00 : f32
    %153 = vector.broadcast %cst_58 : f32 to vector<8x128xf32>
    %154 = arith.maximumf %152, %153 : vector<8x128xf32>
    %c3_i32_59 = arith.constant 3 : i32
    %155 = tpu.memref_slice %arg21[%c3_i32_59] : memref<8x!tpu.dma_semaphore, #tpu.memory_space<semaphore_mem>> -> memref<1x!tpu.dma_semaphore, #tpu.memory_space<semaphore_mem>>
    %156 = tpu.memref_squeeze %155 : memref<1x!tpu.dma_semaphore, #tpu.memory_space<semaphore_mem>> -> memref<!tpu.dma_semaphore, #tpu.memory_space<semaphore_mem>>
    tpu.wait_dma2 semaphore(%156 : memref<!tpu.dma_semaphore, #tpu.memory_space<semaphore_mem>>) src(%arg7 : memref<128x128xbf16, #tpu.memory_space<any>>) dst(%arg16 : memref<128x128xbf16, #tpu.memory_space<vmem>>)
    %c4_i32_60 = arith.constant 4 : i32
    %157 = tpu.memref_slice %arg21[%c4_i32_60] : memref<8x!tpu.dma_semaphore, #tpu.memory_space<semaphore_mem>> -> memref<1x!tpu.dma_semaphore, #tpu.memory_space<semaphore_mem>>
    %158 = tpu.memref_squeeze %157 : memref<1x!tpu.dma_semaphore, #tpu.memory_space<semaphore_mem>> -> memref<!tpu.dma_semaphore, #tpu.memory_space<semaphore_mem>>
    tpu.wait_dma2 semaphore(%158 : memref<!tpu.dma_semaphore, #tpu.memory_space<semaphore_mem>>) src(%arg8 : memref<128x128xbf16, #tpu.memory_space<any>>) dst(%arg17 : memref<128x128xbf16, #tpu.memory_space<vmem>>)
    %159 = arith.truncf %154 : vector<8x128xf32> to vector<8x128xbf16>
    %c0_61 = arith.constant 0 : index
    %c0_62 = arith.constant 0 : index
    %160 = vector.load %arg16[%c0_61, %c0_62] : memref<128x128xbf16, #tpu.memory_space<vmem>>, vector<128x128xbf16>
    %cst_63 = arith.constant dense<0.000000e+00> : vector<8x128xf32>
    %161 = tpu.matmul %159, %160, %cst_63 {dimension_numbers = #tpu.dot_dimension_numbers<[1], [0], [0], [1], [0, 0, 1, 1], [], []>} : vector<8x128xbf16>, vector<128x128xbf16>, vector<8x128xf32> -> vector<8x128xf32>
    %c5 = arith.constant 5 : index
    %c0_64 = arith.constant 0 : index
    %162 = vector.load %arg3[%c5, %c0_64] : memref<16x128xf32, #tpu.memory_space<vmem>>, vector<1x128xf32>
    %c6 = arith.constant 6 : index
    %c0_65 = arith.constant 0 : index
    %163 = vector.load %arg3[%c6, %c0_65] : memref<16x128xf32, #tpu.memory_space<vmem>>, vector<1x128xf32>
    %cst_66 = arith.constant dense<0.000000e+00> : vector<128xf32>
    %164 = vector.multi_reduction <add>, %161, %cst_66 [0] : vector<8x128xf32> to vector<128xf32>
    %165 = vector.shape_cast %164 : vector<128xf32> to vector<1x128xf32>
    %cst_67 = arith.constant 8.000000e+00 : f32
    %166 = vector.broadcast %cst_67 : f32 to vector<1x128xf32>
    %167 = arith.divf %165, %166 : vector<1x128xf32>
    %168 = arith.mulf %161, %161 : vector<8x128xf32>
    %cst_68 = arith.constant dense<0.000000e+00> : vector<128xf32>
    %169 = vector.multi_reduction <add>, %168, %cst_68 [0] : vector<8x128xf32> to vector<128xf32>
    %170 = vector.shape_cast %169 : vector<128xf32> to vector<1x128xf32>
    %cst_69 = arith.constant 8.000000e+00 : f32
    %171 = vector.broadcast %cst_69 : f32 to vector<1x128xf32>
    %172 = arith.divf %170, %171 : vector<1x128xf32>
    %173 = arith.mulf %167, %167 : vector<1x128xf32>
    %174 = arith.subf %172, %173 : vector<1x128xf32>
    %cst_70 = arith.constant 0.000000e+00 : f32
    %175 = vector.broadcast %cst_70 : f32 to vector<1x128xf32>
    %176 = arith.maximumf %174, %175 : vector<1x128xf32>
    %cst_71 = arith.constant 9.99999974E-6 : f32
    %177 = vector.broadcast %cst_71 : f32 to vector<1x128xf32>
    %178 = arith.addf %176, %177 : vector<1x128xf32>
    %179 = math.rsqrt %178 : vector<1x128xf32>
    %180 = arith.mulf %162, %179 : vector<1x128xf32>
    %181 = vector.broadcast %180 : vector<1x128xf32> to vector<8x128xf32>
    %182 = arith.mulf %161, %181 : vector<8x128xf32>
    %183 = arith.mulf %167, %180 : vector<1x128xf32>
    %184 = arith.subf %163, %183 : vector<1x128xf32>
    %185 = vector.broadcast %184 : vector<1x128xf32> to vector<8x128xf32>
    %186 = arith.addf %182, %185 : vector<8x128xf32>
    %cst_72 = arith.constant 0.000000e+00 : f32
    %187 = vector.broadcast %cst_72 : f32 to vector<8x128xf32>
    %188 = arith.maximumf %186, %187 : vector<8x128xf32>
    %189 = arith.truncf %188 : vector<8x128xf32> to vector<8x128xbf16>
    %c0_73 = arith.constant 0 : index
    %c0_74 = arith.constant 0 : index
    %190 = vector.load %arg17[%c0_73, %c0_74] : memref<128x128xbf16, #tpu.memory_space<vmem>>, vector<128x128xbf16>
    %cst_75 = arith.constant dense<0.000000e+00> : vector<8x128xf32>
    %191 = tpu.matmul %189, %190, %cst_75 {dimension_numbers = #tpu.dot_dimension_numbers<[1], [0], [0], [1], [0, 0, 1, 1], [], []>} : vector<8x128xbf16>, vector<128x128xbf16>, vector<8x128xf32> -> vector<8x128xf32>
    %c7 = arith.constant 7 : index
    %c0_76 = arith.constant 0 : index
    %192 = vector.load %arg3[%c7, %c0_76] : memref<16x128xf32, #tpu.memory_space<vmem>>, vector<1x128xf32>
    %c8 = arith.constant 8 : index
    %c0_77 = arith.constant 0 : index
    %193 = vector.load %arg3[%c8, %c0_77] : memref<16x128xf32, #tpu.memory_space<vmem>>, vector<1x128xf32>
    %cst_78 = arith.constant dense<0.000000e+00> : vector<128xf32>
    %194 = vector.multi_reduction <add>, %191, %cst_78 [0] : vector<8x128xf32> to vector<128xf32>
    %195 = vector.shape_cast %194 : vector<128xf32> to vector<1x128xf32>
    %cst_79 = arith.constant 8.000000e+00 : f32
    %196 = vector.broadcast %cst_79 : f32 to vector<1x128xf32>
    %197 = arith.divf %195, %196 : vector<1x128xf32>
    %198 = arith.mulf %191, %191 : vector<8x128xf32>
    %cst_80 = arith.constant dense<0.000000e+00> : vector<128xf32>
    %199 = vector.multi_reduction <add>, %198, %cst_80 [0] : vector<8x128xf32> to vector<128xf32>
    %200 = vector.shape_cast %199 : vector<128xf32> to vector<1x128xf32>
    %cst_81 = arith.constant 8.000000e+00 : f32
    %201 = vector.broadcast %cst_81 : f32 to vector<1x128xf32>
    %202 = arith.divf %200, %201 : vector<1x128xf32>
    %203 = arith.mulf %197, %197 : vector<1x128xf32>
    %204 = arith.subf %202, %203 : vector<1x128xf32>
    %cst_82 = arith.constant 0.000000e+00 : f32
    %205 = vector.broadcast %cst_82 : f32 to vector<1x128xf32>
    %206 = arith.maximumf %204, %205 : vector<1x128xf32>
    %cst_83 = arith.constant 9.99999974E-6 : f32
    %207 = vector.broadcast %cst_83 : f32 to vector<1x128xf32>
    %208 = arith.addf %206, %207 : vector<1x128xf32>
    %209 = math.rsqrt %208 : vector<1x128xf32>
    %210 = arith.mulf %192, %209 : vector<1x128xf32>
    %211 = vector.broadcast %210 : vector<1x128xf32> to vector<8x128xf32>
    %212 = arith.mulf %191, %211 : vector<8x128xf32>
    %213 = arith.mulf %197, %210 : vector<1x128xf32>
    %214 = arith.subf %193, %213 : vector<1x128xf32>
    %215 = vector.broadcast %214 : vector<1x128xf32> to vector<8x128xf32>
    %216 = arith.addf %212, %215 : vector<8x128xf32>
    %217 = arith.addf %216, %154 : vector<8x128xf32>
    %cst_84 = arith.constant 0.000000e+00 : f32
    %218 = vector.broadcast %cst_84 : f32 to vector<8x128xf32>
    %219 = arith.maximumf %217, %218 : vector<8x128xf32>
    %c5_i32_85 = arith.constant 5 : i32
    %220 = tpu.memref_slice %arg21[%c5_i32_85] : memref<8x!tpu.dma_semaphore, #tpu.memory_space<semaphore_mem>> -> memref<1x!tpu.dma_semaphore, #tpu.memory_space<semaphore_mem>>
    %221 = tpu.memref_squeeze %220 : memref<1x!tpu.dma_semaphore, #tpu.memory_space<semaphore_mem>> -> memref<!tpu.dma_semaphore, #tpu.memory_space<semaphore_mem>>
    tpu.wait_dma2 semaphore(%221 : memref<!tpu.dma_semaphore, #tpu.memory_space<semaphore_mem>>) src(%arg9 : memref<128x128xbf16, #tpu.memory_space<any>>) dst(%arg18 : memref<128x128xbf16, #tpu.memory_space<vmem>>)
    %c6_i32_86 = arith.constant 6 : i32
    %222 = tpu.memref_slice %arg21[%c6_i32_86] : memref<8x!tpu.dma_semaphore, #tpu.memory_space<semaphore_mem>> -> memref<1x!tpu.dma_semaphore, #tpu.memory_space<semaphore_mem>>
    %223 = tpu.memref_squeeze %222 : memref<1x!tpu.dma_semaphore, #tpu.memory_space<semaphore_mem>> -> memref<!tpu.dma_semaphore, #tpu.memory_space<semaphore_mem>>
    tpu.wait_dma2 semaphore(%223 : memref<!tpu.dma_semaphore, #tpu.memory_space<semaphore_mem>>) src(%arg10 : memref<128x128xbf16, #tpu.memory_space<any>>) dst(%arg19 : memref<128x128xbf16, #tpu.memory_space<vmem>>)
    %224 = arith.truncf %219 : vector<8x128xf32> to vector<8x128xbf16>
    %c0_87 = arith.constant 0 : index
    %c0_88 = arith.constant 0 : index
    %225 = vector.load %arg18[%c0_87, %c0_88] : memref<128x128xbf16, #tpu.memory_space<vmem>>, vector<128x128xbf16>
    %cst_89 = arith.constant dense<0.000000e+00> : vector<8x128xf32>
    %226 = tpu.matmul %224, %225, %cst_89 {dimension_numbers = #tpu.dot_dimension_numbers<[1], [0], [0], [1], [0, 0, 1, 1], [], []>} : vector<8x128xbf16>, vector<128x128xbf16>, vector<8x128xf32> -> vector<8x128xf32>
    %c9 = arith.constant 9 : index
    %c0_90 = arith.constant 0 : index
    %227 = vector.load %arg3[%c9, %c0_90] : memref<16x128xf32, #tpu.memory_space<vmem>>, vector<1x128xf32>
    %c10 = arith.constant 10 : index
    %c0_91 = arith.constant 0 : index
    %228 = vector.load %arg3[%c10, %c0_91] : memref<16x128xf32, #tpu.memory_space<vmem>>, vector<1x128xf32>
    %cst_92 = arith.constant dense<0.000000e+00> : vector<128xf32>
    %229 = vector.multi_reduction <add>, %226, %cst_92 [0] : vector<8x128xf32> to vector<128xf32>
    %230 = vector.shape_cast %229 : vector<128xf32> to vector<1x128xf32>
    %cst_93 = arith.constant 8.000000e+00 : f32
    %231 = vector.broadcast %cst_93 : f32 to vector<1x128xf32>
    %232 = arith.divf %230, %231 : vector<1x128xf32>
    %233 = arith.mulf %226, %226 : vector<8x128xf32>
    %cst_94 = arith.constant dense<0.000000e+00> : vector<128xf32>
    %234 = vector.multi_reduction <add>, %233, %cst_94 [0] : vector<8x128xf32> to vector<128xf32>
    %235 = vector.shape_cast %234 : vector<128xf32> to vector<1x128xf32>
    %cst_95 = arith.constant 8.000000e+00 : f32
    %236 = vector.broadcast %cst_95 : f32 to vector<1x128xf32>
    %237 = arith.divf %235, %236 : vector<1x128xf32>
    %238 = arith.mulf %232, %232 : vector<1x128xf32>
    %239 = arith.subf %237, %238 : vector<1x128xf32>
    %cst_96 = arith.constant 0.000000e+00 : f32
    %240 = vector.broadcast %cst_96 : f32 to vector<1x128xf32>
    %241 = arith.maximumf %239, %240 : vector<1x128xf32>
    %cst_97 = arith.constant 9.99999974E-6 : f32
    %242 = vector.broadcast %cst_97 : f32 to vector<1x128xf32>
    %243 = arith.addf %241, %242 : vector<1x128xf32>
    %244 = math.rsqrt %243 : vector<1x128xf32>
    %245 = arith.mulf %227, %244 : vector<1x128xf32>
    %246 = vector.broadcast %245 : vector<1x128xf32> to vector<8x128xf32>
    %247 = arith.mulf %226, %246 : vector<8x128xf32>
    %248 = arith.mulf %232, %245 : vector<1x128xf32>
    %249 = arith.subf %228, %248 : vector<1x128xf32>
    %250 = vector.broadcast %249 : vector<1x128xf32> to vector<8x128xf32>
    %251 = arith.addf %247, %250 : vector<8x128xf32>
    %cst_98 = arith.constant 0.000000e+00 : f32
    %252 = vector.broadcast %cst_98 : f32 to vector<8x128xf32>
    %253 = arith.maximumf %251, %252 : vector<8x128xf32>
    %254 = arith.truncf %253 : vector<8x128xf32> to vector<8x128xbf16>
    %c0_99 = arith.constant 0 : index
    %c0_100 = arith.constant 0 : index
    %255 = vector.load %arg19[%c0_99, %c0_100] : memref<128x128xbf16, #tpu.memory_space<vmem>>, vector<128x128xbf16>
    %cst_101 = arith.constant dense<0.000000e+00> : vector<8x128xf32>
    %256 = tpu.matmul %254, %255, %cst_101 {dimension_numbers = #tpu.dot_dimension_numbers<[1], [0], [0], [1], [0, 0, 1, 1], [], []>} : vector<8x128xbf16>, vector<128x128xbf16>, vector<8x128xf32> -> vector<8x128xf32>
    %c11 = arith.constant 11 : index
    %c0_102 = arith.constant 0 : index
    %257 = vector.load %arg3[%c11, %c0_102] : memref<16x128xf32, #tpu.memory_space<vmem>>, vector<1x128xf32>
    %c12 = arith.constant 12 : index
    %c0_103 = arith.constant 0 : index
    %258 = vector.load %arg3[%c12, %c0_103] : memref<16x128xf32, #tpu.memory_space<vmem>>, vector<1x128xf32>
    %cst_104 = arith.constant dense<0.000000e+00> : vector<128xf32>
    %259 = vector.multi_reduction <add>, %256, %cst_104 [0] : vector<8x128xf32> to vector<128xf32>
    %260 = vector.shape_cast %259 : vector<128xf32> to vector<1x128xf32>
    %cst_105 = arith.constant 8.000000e+00 : f32
    %261 = vector.broadcast %cst_105 : f32 to vector<1x128xf32>
    %262 = arith.divf %260, %261 : vector<1x128xf32>
    %263 = arith.mulf %256, %256 : vector<8x128xf32>
    %cst_106 = arith.constant dense<0.000000e+00> : vector<128xf32>
    %264 = vector.multi_reduction <add>, %263, %cst_106 [0] : vector<8x128xf32> to vector<128xf32>
    %265 = vector.shape_cast %264 : vector<128xf32> to vector<1x128xf32>
    %cst_107 = arith.constant 8.000000e+00 : f32
    %266 = vector.broadcast %cst_107 : f32 to vector<1x128xf32>
    %267 = arith.divf %265, %266 : vector<1x128xf32>
    %268 = arith.mulf %262, %262 : vector<1x128xf32>
    %269 = arith.subf %267, %268 : vector<1x128xf32>
    %cst_108 = arith.constant 0.000000e+00 : f32
    %270 = vector.broadcast %cst_108 : f32 to vector<1x128xf32>
    %271 = arith.maximumf %269, %270 : vector<1x128xf32>
    %cst_109 = arith.constant 9.99999974E-6 : f32
    %272 = vector.broadcast %cst_109 : f32 to vector<1x128xf32>
    %273 = arith.addf %271, %272 : vector<1x128xf32>
    %274 = math.rsqrt %273 : vector<1x128xf32>
    %275 = arith.mulf %257, %274 : vector<1x128xf32>
    %276 = vector.broadcast %275 : vector<1x128xf32> to vector<8x128xf32>
    %277 = arith.mulf %256, %276 : vector<8x128xf32>
    %278 = arith.mulf %262, %275 : vector<1x128xf32>
    %279 = arith.subf %258, %278 : vector<1x128xf32>
    %280 = vector.broadcast %279 : vector<1x128xf32> to vector<8x128xf32>
    %281 = arith.addf %277, %280 : vector<8x128xf32>
    %282 = arith.addf %281, %219 : vector<8x128xf32>
    %cst_110 = arith.constant 0.000000e+00 : f32
    %283 = vector.broadcast %cst_110 : f32 to vector<8x128xf32>
    %284 = arith.maximumf %282, %283 : vector<8x128xf32>
    %c7_i32_111 = arith.constant 7 : i32
    %285 = tpu.memref_slice %arg21[%c7_i32_111] : memref<8x!tpu.dma_semaphore, #tpu.memory_space<semaphore_mem>> -> memref<1x!tpu.dma_semaphore, #tpu.memory_space<semaphore_mem>>
    %286 = tpu.memref_squeeze %285 : memref<1x!tpu.dma_semaphore, #tpu.memory_space<semaphore_mem>> -> memref<!tpu.dma_semaphore, #tpu.memory_space<semaphore_mem>>
    tpu.wait_dma2 semaphore(%286 : memref<!tpu.dma_semaphore, #tpu.memory_space<semaphore_mem>>) src(%arg11 : memref<128x128xbf16, #tpu.memory_space<any>>) dst(%arg20 : memref<128x128xbf16, #tpu.memory_space<vmem>>)
    %287 = arith.truncf %284 : vector<8x128xf32> to vector<8x128xbf16>
    %c0_112 = arith.constant 0 : index
    %c0_113 = arith.constant 0 : index
    %288 = vector.load %arg20[%c0_112, %c0_113] : memref<128x128xbf16, #tpu.memory_space<vmem>>, vector<128x128xbf16>
    %cst_114 = arith.constant dense<0.000000e+00> : vector<8x128xf32>
    %289 = tpu.matmul %287, %288, %cst_114 {dimension_numbers = #tpu.dot_dimension_numbers<[1], [0], [0], [1], [0, 0, 1, 1], [], []>} : vector<8x128xbf16>, vector<128x128xbf16>, vector<8x128xf32> -> vector<8x128xf32>
    %c13 = arith.constant 13 : index
    %c0_115 = arith.constant 0 : index
    %290 = vector.load %arg3[%c13, %c0_115] : memref<16x128xf32, #tpu.memory_space<vmem>>, vector<1x128xf32>
    %291 = vector.broadcast %290 : vector<1x128xf32> to vector<8x128xf32>
    %292 = arith.addf %289, %291 : vector<8x128xf32>
    %c0_116 = arith.constant 0 : index
    %c0_117 = arith.constant 0 : index
    %293 = vector.load %arg12[%c0_116, %c0_117] : memref<8x128xf32, #tpu.memory_space<vmem>>, vector<8x128xf32>
    tpu.vector_store %arg12[%c0_116, %c0_117], %292 {strides = array<i32>} : memref<8x128xf32, #tpu.memory_space<vmem>>, vector<8x128xf32>,
    return
  }
}

</mosaic_0001>

<llo_original>
// kernel: tpu_custom_call.1
$region0: #{tpu_custom_call.1}
  #allocation0 [shape = 'u32[]', space=smem, size = 0x4, offset = 0x4, fixed_abs, tag = 'smem constant byte address 0x4 - core index']
  #allocation1 [shape = 'u32[144,128]{1,0:T(1,128)}', space=vmem, size = 0x12000, scoped, tag = 'internal scratch']
  #allocation2 [shape = 'bf16[1024,1024]{1,0:T(16,128)(2,1)}', space=vmem, size = 0x200000, scoped, tag = 'scratch operand']
  #allocation3 [shape = 'bf16[1024,256]{1,0:T(16,128)(2,1)}', space=vmem, size = 0x80000, scoped, tag = 'scratch operand']
  #allocation4 [shape = 'bf16[128,128]{1,0:T(16,128)(2,1)}', space=vmem, size = 0x8000, scoped, tag = 'scratch operand']
  #allocation5 [shape = 'bf16[128,128]{1,0:T(16,128)(2,1)}', space=vmem, size = 0x8000, scoped, tag = 'scratch operand']
  #allocation6 [shape = 'bf16[128,128]{1,0:T(16,128)(2,1)}', space=vmem, size = 0x8000, scoped, tag = 'scratch operand']
  #allocation7 [shape = 'bf16[128,128]{1,0:T(16,128)(2,1)}', space=vmem, size = 0x8000, scoped, tag = 'scratch operand']
  #allocation8 [shape = 'bf16[128,128]{1,0:T(16,128)(2,1)}', space=vmem, size = 0x8000, scoped, tag = 'scratch operand']
  #allocation9 [shape = 'bf16[128,128]{1,0:T(16,128)(2,1)}', space=vmem, size = 0x8000, scoped, tag = 'scratch operand']
  #allocation10 [shape = 's32[8]{0}', space=sflag, size = 0x20, scoped, tag = 'scratch operand']
  #allocation20 [shape = 's32[]', space=sflag, size = 0x4, offset = 0, fixed_abs, tag = 'sflag constant byte address 0x0 - dummy sync flag']
  #allocation22 [shape = 's32[]', space=sflag, size = 0x4, offset = 0, fixed_abs, tag = 'sflag constant byte address 0x0 - dummy sync flag']
  #allocation24 [shape = 's32[]', space=sflag, size = 0x4, offset = 0, fixed_abs, tag = 'sflag constant byte address 0x0 - dummy sync flag']
  #allocation25 [shape = 's32[]', space=sflag, size = 0x4, offset = 0, fixed_abs, tag = 'sflag constant byte address 0x0 - dummy sync flag']
  #allocation26 [shape = 'u32[]', space=smem, size = 0x4, offset = 0x44, fixed_abs, tag = 'smem constant byte address 0x44 - assertion arg 0']
  #allocation27 [shape = 'u32[]', space=smem, size = 0x4, offset = 0x48, fixed_abs, tag = 'smem constant byte address 0x48 - assertion arg 1']
  #allocation28 [shape = 's32[]', space=sflag, size = 0x4, offset = 0, fixed_abs, tag = 'sflag constant byte address 0x0 - dummy sync flag']
  #allocation29 [shape = 's32[]', space=sflag, size = 0x4, offset = 0, fixed_abs, tag = 'sflag constant byte address 0x0 - dummy sync flag']
  #allocation30 [shape = 's32[]', space=sflag, size = 0x4, offset = 0, fixed_abs, tag = 'sflag constant byte address 0x0 - dummy sync flag']
  #allocation31 [shape = 's32[]', space=sflag, size = 0x4, offset = 0, fixed_abs, tag = 'sflag constant byte address 0x0 - dummy sync flag']
  #allocation32 [shape = 's32[]', space=sflag, size = 0x4, offset = 0, fixed_abs, tag = 'sflag constant byte address 0x0 - dummy sync flag']
  #allocation33 [shape = 's32[]', space=sflag, size = 0x4, offset = 0, fixed_abs, tag = 'sflag constant byte address 0x0 - dummy sync flag']
  #allocation34 [shape = 's32[]', space=sflag, size = 0x4, offset = 0, fixed_abs, tag = 'sflag constant byte address 0x0 - dummy sync flag']
  #allocation35 [shape = 's32[]', space=sflag, size = 0x4, offset = 0, fixed_abs, tag = 'sflag constant byte address 0x0 - dummy sync flag']
  #allocation36 [shape = 's32[]', space=sflag, size = 0x4, offset = 0, fixed_abs, tag = 'sflag constant byte address 0x0 - dummy sync flag']
  #allocation37 [shape = 's32[]', space=sflag, size = 0x4, offset = 0, fixed_abs, tag = 'sflag constant byte address 0x0 - dummy sync flag']
  %s0 = inlined_call_operand.hbm [shape: f32[8,128], index: 0, kind: input, shape index: {}]
  %s1 = inlined_call_operand.hbm [shape: bf16[128,2048], index: 1, kind: input, shape index: {}]
  %s2 = inlined_call_operand.hbm [shape: f32[8,1024], index: 2, kind: input, shape index: {}]
  %s3 = inlined_call_operand.hbm [shape: f32[16,128], index: 3, kind: input, shape index: {}]
  %s4 = inlined_call_operand.hbm [shape: bf16[1024,1024], index: 4, kind: input, shape index: {}]
  %s5 = inlined_call_operand.hbm [shape: bf16[1024,256], index: 5, kind: input, shape index: {}]
  %s6 = inlined_call_operand.hbm [shape: bf16[128,128], index: 6, kind: input, shape index: {}]
  %s7 = inlined_call_operand.hbm [shape: bf16[128,128], index: 7, kind: input, shape index: {}]
  %s8 = inlined_call_operand.hbm [shape: bf16[128,128], index: 8, kind: input, shape index: {}]
  %s9 = inlined_call_operand.hbm [shape: bf16[128,128], index: 9, kind: input, shape index: {}]
  %s10 = inlined_call_operand.hbm [shape: bf16[128,128], index: 10, kind: input, shape index: {}]
  %s11 = inlined_call_operand.hbm [shape: bf16[128,128], index: 11, kind: input, shape index: {}]
  %s12 = inlined_call_operand.hbm [shape: f32[8,128], index: 12, kind: output, shape index: {}]
  %s13 = sld [smem:[#allocation0]]
  $region66: #{tpu_custom_call.1} parent=0
    _
  %s15 = ssub.s32 1, %s13
  %s16 = scalar_select 0, %s15, %s13
  $region1: #{tpu_custom_call.1} parent=0
    #allocation11 [shape = 'u8[4096]{0}', space=vmem, size = 0x1000, scoped, tag = 'input window, operand 0, single buffered']
    #allocation12 [shape = 's32[1]{0}', space=sflag, size = 0x4, scoped, tag = 'scoped memory for tpu_custom_call.1']
    #allocation13 [shape = 's32[1]{0}', space=sflag, size = 0x4, scoped, tag = 'scoped memory for tpu_custom_call.1']
    #allocation14 [shape = 'u8[524288]{0}', space=vmem, size = 0x80000, scoped, tag = 'input window, operand 1, single buffered']
    #allocation15 [shape = 's32[1]{0}', space=sflag, size = 0x4, scoped, tag = 'scoped memory for tpu_custom_call.1']
    #allocation16 [shape = 'u8[32768]{0}', space=vmem, size = 0x8000, scoped, tag = 'input window, operand 2, single buffered']
    #allocation17 [shape = 'u8[8192]{0}', space=vmem, size = 0x2000, scoped, tag = 'input window, operand 3, single buffered']
    #allocation18 [shape = 's32[1]{0}', space=sflag, size = 0x4, scoped, tag = 'scoped memory for tpu_custom_call.1']
    #allocation19 [shape = 'u8[4096]{0}', space=vmem, size = 0x1000, scoped, tag = 'output window, operand 0, single buffered']
    #allocation21 [shape = 'u32[9]{0}', space=smem, size = 0x24, scoped, tag = 'DMA stride descriptor']
    #allocation23 [shape = 'u32[9]{0}', space=smem, size = 0x24, scoped, tag = 'DMA stride descriptor']
    %17 = vsyncpa [#allocation12], 0
    %18 = vsyncpa [#allocation15], 0
    %19 = vsyncpa [#allocation18], 0
    %20 = vsyncpa [#allocation13], 0
    // Predicated region
    $region2: #{tpu_custom_call.1} parent=1 // pred_check
      _
    $region3: #{tpu_custom_call.1} parent=1 // pred_check_branch
      %22 = sbr.rel (0) target = $region5
    $region4: #{tpu_custom_call.1} parent=1 // pred_region
      %s24 = ssub.s32 128, 128
      %25 = vsyncadd [#allocation12], %s24
      %s27 = sshll.u32 [#allocation11], 4
      %s28 = int_to_ptr.vmem [resolvable:$true] %s27
      %30 = dma.hbm_to_vmem [thread:$0]  %s0, 128, %s28, [#allocation12]
    $region5: #{tpu_custom_call.1} parent=1 // pred_fallthru
      _
    // Predicated region
    $region6: #{tpu_custom_call.1} parent=1 // pred_check
      _
    $region7: #{tpu_custom_call.1} parent=1 // pred_check_branch
      %32 = sbr.rel (0) target = $region9
    $region8: #{tpu_custom_call.1} parent=1 // pred_region
      %s34 = ssub.s32 16384, 16384
      %35 = vsyncadd [#allocation15], %s34
      %s36 = sshll.u32 [#allocation14], 4
      %s37 = int_to_ptr.vmem [resolvable:$true] %s36
      %42 = dma.hbm_to_vmem [thread:$0]  %s1, 16384, %s37, [#allocation15], 1024, 1024, 64
    $region9: #{tpu_custom_call.1} parent=1 // pred_fallthru
      _
    // Predicated region
    $region10: #{tpu_custom_call.1} parent=1 // pred_check
      _
    $region11: #{tpu_custom_call.1} parent=1 // pred_check_branch
      %44 = sbr.rel (0) target = $region13
    $region12: #{tpu_custom_call.1} parent=1 // pred_region
      %s46 = ssub.s32 1024, 1024
      %47 = vsyncadd [#allocation15], %s46
      %s49 = sshll.u32 [#allocation16], 4
      %s50 = int_to_ptr.vmem [resolvable:$true] %s49
      %52 = dma.hbm_to_vmem [thread:$0]  %s2, 1024, %s50, [#allocation15]
    $region13: #{tpu_custom_call.1} parent=1 // pred_fallthru
      _
    // Predicated region
    $region14: #{tpu_custom_call.1} parent=1 // pred_check
      _
    $region15: #{tpu_custom_call.1} parent=1 // pred_check_branch
      %54 = sbr.rel (0) target = $region17
    $region16: #{tpu_custom_call.1} parent=1 // pred_region
      %s56 = ssub.s32 256, 256
      %57 = vsyncadd [#allocation18], %s56
      %s58 = sshll.u32 [#allocation17], 4
      %s59 = int_to_ptr.vmem [resolvable:$true] %s58
      %64 = dma.hbm_to_vmem [thread:$0]  %s3, 256, %s59, [#allocation18], 128, 128, 8
    $region17: #{tpu_custom_call.1} parent=1 // pred_fallthru
      _
    // Predicated region
    $region18: #{tpu_custom_call.1} parent=1 // pred_check
      _
    $region19: #{tpu_custom_call.1} parent=1 // pred_check_branch
      %66 = sbr.rel (0) target = $region21
    $region20: #{tpu_custom_call.1} parent=1 // pred_region
      %67 = dma.done [#allocation12], 128
    $region21: #{tpu_custom_call.1} parent=1 // pred_fallthru
      _
    // Predicated region
    $region22: #{tpu_custom_call.1} parent=1 // pred_check
      _
    $region23: #{tpu_custom_call.1} parent=1 // pred_check_branch
      %69 = sbr.rel (0) target = $region25
    $region24: #{tpu_custom_call.1} parent=1 // pred_region
      %70 = dma.done [#allocation15], 16384
    $region25: #{tpu_custom_call.1} parent=1 // pred_fallthru
      _
    // Predicated region
    $region26: #{tpu_custom_call.1} parent=1 // pred_check
      _
    $region27: #{tpu_custom_call.1} parent=1 // pred_check_branch
      %72 = sbr.rel (0) target = $region29
    $region28: #{tpu_custom_call.1} parent=1 // pred_region
      %73 = dma.done [#allocation15], 1024
    $region29: #{tpu_custom_call.1} parent=1 // pred_fallthru
      _
    // Predicated region
    $region30: #{tpu_custom_call.1} parent=1 // pred_check
      _
    $region31: #{tpu_custom_call.1} parent=1 // pred_check_branch
      %75 = sbr.rel (0) target = $region33
    $region32: #{tpu_custom_call.1} parent=1 // pred_region
      %76 = dma.done [#allocation18], 256
    $region33: #{tpu_custom_call.1} parent=1 // pred_fallthru
      _
    %s79 = sshll.u32 1, 14
    %s80 = sxor.u32 4294967295, %s79
    %s82 = sld [smem:[#allocation0]]
    %s83 = sadd.s32 2, %s82
    %s85 = sshll.u32 7, 26
    %s86 = sxor.u32 4294967295, %s85
    %s87 = sand.u32 0, %s86
    %s88 = sshll.u32 %s83, 26
    %s89 = sor.u32 %s87, %s88
    %s90 = sshll.u32 [#allocation2], 4
    %s91 = int_to_ptr.vmem [resolvable:$true] %s90
    %94 = sst [smem:[#allocation21]] 1024
    %s95 = scalar_lea.smem [#allocation21], 1
    %96 = sst [smem:[%s95]] 1024
    %s97 = scalar_lea.smem [#allocation21], 2
    %98 = sst [smem:[%s97]] 8
    %s99 = scalar_lea.smem [#allocation21], 3
    %100 = sst [smem:[%s99]] 64
    %s101 = scalar_lea.smem [#allocation21], 4
    %102 = sst [smem:[%s101]] 128
    %s103 = scalar_lea.smem [#allocation21], 5
    %104 = sst [smem:[%s103]] 2
    %s105 = scalar_lea.smem [#allocation21], 6
    %106 = sst [smem:[%s105]] 512
    %s107 = scalar_lea.smem [#allocation21], 7
    %108 = sst [smem:[%s107]] 64
    %s109 = scalar_lea.smem [#allocation21], 8
    %110 = sst [smem:[%s109]] 4
    %112 = dma.general %s4, 65536, %s91, [#allocation10], [#allocation20], [#allocation21], %s89, 0
    %s113 = scalar_lea.sflag [#allocation10], 1
    %s115 = sshll.u32 1, 14
    %s116 = sxor.u32 4294967295, %s115
    %s118 = sadd.s32 2, %s82
    %s120 = sshll.u32 7, 26
    %s121 = sxor.u32 4294967295, %s120
    %s122 = sand.u32 0, %s121
    %s123 = sshll.u32 %s118, 26
    %s124 = sor.u32 %s122, %s123
    %s125 = sshll.u32 [#allocation3], 4
    %s126 = int_to_ptr.vmem [resolvable:$true] %s125
    %129 = sst [smem:[#allocation23]] 256
    %s130 = scalar_lea.smem [#allocation23], 1
    %131 = sst [smem:[%s130]] 256
    %s132 = scalar_lea.smem [#allocation23], 2
    %133 = sst [smem:[%s132]] 2
    %s134 = scalar_lea.smem [#allocation23], 3
    %135 = sst [smem:[%s134]] 64
    %s136 = scalar_lea.smem [#allocation23], 4
    %137 = sst [smem:[%s136]] 128
    %s138 = scalar_lea.smem [#allocation23], 5
    %139 = sst [smem:[%s138]] 2
    %s140 = scalar_lea.smem [#allocation23], 6
    %141 = sst [smem:[%s140]] 128
    %s142 = scalar_lea.smem [#allocation23], 7
    %143 = sst [smem:[%s142]] 64
    %s144 = scalar_lea.smem [#allocation23], 8
    %145 = sst [smem:[%s144]] 4
    %147 = dma.general %s5, 16384, %s126, %s113, [#allocation22], [#allocation23], %s124, 0
    %s148 = scalar_lea.sflag [#allocation10], 2
    // Predicated region
    $region34: #{tpu_custom_call.1} parent=1 // pred_check
      _
    $region35: #{tpu_custom_call.1} parent=1 // pred_check_branch
      %150 = sbr.rel target = $region37
    $region36: #{tpu_custom_call.1} parent=1 // pred_region
      %151 = sst [smem:[#allocation26]] [#allocation25]
      %152 = sst [smem:[#allocation27]] [#allocation24]
    $region37: #{tpu_custom_call.1} parent=1 // pred_fallthru
      _
    %154 = shalt.err (0)
    %s156 = sshll.u32 [#allocation4], 4
    %s157 = int_to_ptr.vmem [resolvable:$true] %s156
    %159 = dma.hbm_to_vmem [thread:$0]  %s6, 1024, %s157, %s148
    %s160 = scalar_lea.sflag [#allocation10], 3
    // Predicated region
    $region38: #{tpu_custom_call.1} parent=1 // pred_check
      _
    $region39: #{tpu_custom_call.1} parent=1 // pred_check_branch
      %162 = sbr.rel target = $region41
    $region40: #{tpu_custom_call.1} parent=1 // pred_region
      %163 = sst [smem:[#allocation26]] [#allocation29]
      %164 = sst [smem:[#allocation27]] [#allocation28]
    $region41: #{tpu_custom_call.1} parent=1 // pred_fallthru
      _
    %166 = shalt.err (0)
    %s168 = sshll.u32 [#allocation5], 4
    %s169 = int_to_ptr.vmem [resolvable:$true] %s168
    %171 = dma.hbm_to_vmem [thread:$0]  %s7, 1024, %s169, %s160
    %s172 = scalar_lea.sflag [#allocation10], 4
    // Predicated region
    $region42: #{tpu_custom_call.1} parent=1 // pred_check
      _
    $region43: #{tpu_custom_call.1} parent=1 // pred_check_branch
      %174 = sbr.rel target = $region45
    $region44: #{tpu_custom_call.1} parent=1 // pred_region
      %175 = sst [smem:[#allocation26]] [#allocation31]
      %176 = sst [smem:[#allocation27]] [#allocation30]
    $region45: #{tpu_custom_call.1} parent=1 // pred_fallthru
      _
    %178 = shalt.err (0)
    %s180 = sshll.u32 [#allocation6], 4
    %s181 = int_to_ptr.vmem [resolvable:$true] %s180
    %183 = dma.hbm_to_vmem [thread:$0]  %s8, 1024, %s181, %s172
    %s184 = scalar_lea.sflag [#allocation10], 5
    // Predicated region
    $region46: #{tpu_custom_call.1} parent=1 // pred_check
      _
    $region47: #{tpu_custom_call.1} parent=1 // pred_check_branch
      %186 = sbr.rel target = $region49
    $region48: #{tpu_custom_call.1} parent=1 // pred_region
      %187 = sst [smem:[#allocation26]] [#allocation33]
      %188 = sst [smem:[#allocation27]] [#allocation32]
    $region49: #{tpu_custom_call.1} parent=1 // pred_fallthru
      _
    %190 = shalt.err (0)
    %s192 = sshll.u32 [#allocation7], 4
    %s193 = int_to_ptr.vmem [resolvable:$true] %s192
    %195 = dma.hbm_to_vmem [thread:$0]  %s9, 1024, %s193, %s184
    %s196 = scalar_lea.sflag [#allocation10], 6
    // Predicated region
    $region50: #{tpu_custom_call.1} parent=1 // pred_check
      _
    $region51: #{tpu_custom_call.1} parent=1 // pred_check_branch
      %198 = sbr.rel target = $region53
    $region52: #{tpu_custom_call.1} parent=1 // pred_region
      %199 = sst [smem:[#allocation26]] [#allocation35]
      %200 = sst [smem:[#allocation27]] [#allocation34]
    $region53: #{tpu_custom_call.1} parent=1 // pred_fallthru
      _
    %202 = shalt.err (0)
    %s204 = sshll.u32 [#allocation8], 4
    %s205 = int_to_ptr.vmem [resolvable:$true] %s204
    %207 = dma.hbm_to_vmem [thread:$0]  %s10, 1024, %s205, %s196
    %s208 = scalar_lea.sflag [#allocation10], 7
    // Predicated region
    $region54: #{tpu_custom_call.1} parent=1 // pred_check
      _
    $region55: #{tpu_custom_call.1} parent=1 // pred_check_branch
      %210 = sbr.rel target = $region57
    $region56: #{tpu_custom_call.1} parent=1 // pred_region
      %211 = sst [smem:[#allocation26]] [#allocation37]
      %212 = sst [smem:[#allocation27]] [#allocation36]
    $region57: #{tpu_custom_call.1} parent=1 // pred_fallthru
      _
    %214 = shalt.err (0)
    %s216 = sshll.u32 [#allocation9], 4
    %s217 = int_to_ptr.vmem [resolvable:$true] %s216
    %219 = dma.hbm_to_vmem [thread:$0]  %s11, 1024, %s217, %s208
    %v220 = vld [vmem:[#allocation11] sm:$0xff]
    %v221 = vpack.c.bf16 %v220, %v220
    %v222 = vld [vmem:[#allocation14] sm:$0xff]
    %v223 = vld [vmem:[#allocation14 + $0x8] sm:$0xff]
    %v224 = vld [vmem:[#allocation14 + $0x10] sm:$0xff]
    %v225 = vld [vmem:[#allocation14 + $0x18] sm:$0xff]
    %v226 = vld [vmem:[#allocation14 + $0x20] sm:$0xff]
    %v227 = vld [vmem:[#allocation14 + $0x28] sm:$0xff]
    %v228 = vld [vmem:[#allocation14 + $0x30] sm:$0xff]
    %v229 = vld [vmem:[#allocation14 + $0x38] sm:$0xff]
    %v230 = vld [vmem:[#allocation14 + $0x40] sm:$0xff]
    %v231 = vld [vmem:[#allocation14 + $0x48] sm:$0xff]
    %v232 = vld [vmem:[#allocation14 + $0x50] sm:$0xff]
    %v233 = vld [vmem:[#allocation14 + $0x58] sm:$0xff]
    %v234 = vld [vmem:[#allocation14 + $0x60] sm:$0xff]
    %v235 = vld [vmem:[#allocation14 + $0x68] sm:$0xff]
    %v236 = vld [vmem:[#allocation14 + $0x70] sm:$0xff]
    %v237 = vld [vmem:[#allocation14 + $0x78] sm:$0xff]
    %v238 = vld [vmem:[#allocation14 + $0x80] sm:$0xff]
    %v239 = vld [vmem:[#allocation14 + $0x88] sm:$0xff]
    %v240 = vld [vmem:[#allocation14 + $0x90] sm:$0xff]
    %v241 = vld [vmem:[#allocation14 + $0x98] sm:$0xff]
    %v242 = vld [vmem:[#allocation14 + $0xa0] sm:$0xff]
    %v243 = vld [vmem:[#allocation14 + $0xa8] sm:$0xff]
    %v244 = vld [vmem:[#allocation14 + $0xb0] sm:$0xff]
    %v245 = vld [vmem:[#allocation14 + $0xb8] sm:$0xff]
    %v246 = vld [vmem:[#allocation14 + $0xc0] sm:$0xff]
    %v247 = vld [vmem:[#allocation14 + $0xc8] sm:$0xff]
    %v248 = vld [vmem:[#allocation14 + $0xd0] sm:$0xff]
    %v249 = vld [vmem:[#allocation14 + $0xd8] sm:$0xff]
    %v250 = vld [vmem:[#allocation14 + $0xe0] sm:$0xff]
    %v251 = vld [vmem:[#allocation14 + $0xe8] sm:$0xff]
    %v252 = vld [vmem:[#allocation14 + $0xf0] sm:$0xff]
    %v253 = vld [vmem:[#allocation14 + $0xf8] sm:$0xff]
    %v254 = vld [vmem:[#allocation14 + $0x100] sm:$0xff]
    %v255 = vld [vmem:[#allocation14 + $0x108] sm:$0xff]
    %v256 = vld [vmem:[#allocation14 + $0x110] sm:$0xff]
    %v257 = vld [vmem:[#allocation14 + $0x118] sm:$0xff]
    %v258 = vld [vmem:[#allocation14 + $0x120] sm:$0xff]
    %v259 = vld [vmem:[#allocation14 + $0x128] sm:$0xff]
    %v260 = vld [vmem:[#allocation14 + $0x130] sm:$0xff]
    %v261 = vld [vmem:[#allocation14 + $0x138] sm:$0xff]
    %v262 = vld [vmem:[#allocation14 + $0x140] sm:$0xff]
    %v263 = vld [vmem:[#allocation14 + $0x148] sm:$0xff]
    %v264 = vld [vmem:[#allocation14 + $0x150] sm:$0xff]
    %v265 = vld [vmem:[#allocation14 + $0x158] sm:$0xff]
    %v266 = vld [vmem:[#allocation14 + $0x160] sm:$0xff]
    %v267 = vld [vmem:[#allocation14 + $0x168] sm:$0xff]
    %v268 = vld [vmem:[#allocation14 + $0x170] sm:$0xff]
    %v269 = vld [vmem:[#allocation14 + $0x178] sm:$0xff]
    %v270 = vld [vmem:[#allocation14 + $0x180] sm:$0xff]
    %v271 = vld [vmem:[#allocation14 + $0x188] sm:$0xff]
    %v272 = vld [vmem:[#allocation14 + $0x190] sm:$0xff]
    %v273 = vld [vmem:[#allocation14 + $0x198] sm:$0xff]
    %v274 = vld [vmem:[#allocation14 + $0x1a0] sm:$0xff]
    %v275 = vld [vmem:[#allocation14 + $0x1a8] sm:$0xff]
    %v276 = vld [vmem:[#allocation14 + $0x1b0] sm:$0xff]
    %v277 = vld [vmem:[#allocation14 + $0x1b8] sm:$0xff]
    %v278 = vld [vmem:[#allocation14 + $0x1c0] sm:$0xff]
    %v279 = vld [vmem:[#allocation14 + $0x1c8] sm:$0xff]
    %v280 = vld [vmem:[#allocation14 + $0x1d0] sm:$0xff]
    %v281 = vld [vmem:[#allocation14 + $0x1d8] sm:$0xff]
    %v282 = vld [vmem:[#allocation14 + $0x1e0] sm:$0xff]
    %v283 = vld [vmem:[#allocation14 + $0x1e8] sm:$0xff]
    %v284 = vld [vmem:[#allocation14 + $0x1f0] sm:$0xff]
    %v285 = vld [vmem:[#allocation14 + $0x1f8] sm:$0xff]
    %v286 = vld [vmem:[#allocation14 + $0x200] sm:$0xff]
    %v287 = vld [vmem:[#allocation14 + $0x208] sm:$0xff]
    %v288 = vld [vmem:[#allocation14 + $0x210] sm:$0xff]
    %v289 = vld [vmem:[#allocation14 + $0x218] sm:$0xff]
    %v290 = vld [vmem:[#allocation14 + $0x220] sm:$0xff]
    %v291 = vld [vmem:[#allocation14 + $0x228] sm:$0xff]
    %v292 = vld [vmem:[#allocation14 + $0x230] sm:$0xff]
    %v293 = vld [vmem:[#allocation14 + $0x238] sm:$0xff]
    %v294 = vld [vmem:[#allocation14 + $0x240] sm:$0xff]
    %v295 = vld [vmem:[#allocation14 + $0x248] sm:$0xff]
    %v296 = vld [vmem:[#allocation14 + $0x250] sm:$0xff]
    %v297 = vld [vmem:[#allocation14 + $0x258] sm:$0xff]
    %v298 = vld [vmem:[#allocation14 + $0x260] sm:$0xff]
    %v299 = vld [vmem:[#allocation14 + $0x268] sm:$0xff]
    %v300 = vld [vmem:[#allocation14 + $0x270] sm:$0xff]
    %v301 = vld [vmem:[#allocation14 + $0x278] sm:$0xff]
    %v302 = vld [vmem:[#allocation14 + $0x280] sm:$0xff]
    %v303 = vld [vmem:[#allocation14 + $0x288] sm:$0xff]
    %v304 = vld [vmem:[#allocation14 + $0x290] sm:$0xff]
    %v305 = vld [vmem:[#allocation14 + $0x298] sm:$0xff]
    %v306 = vld [vmem:[#allocation14 + $0x2a0] sm:$0xff]
    %v307 = vld [vmem:[#allocation14 + $0x2a8] sm:$0xff]
    %v308 = vld [vmem:[#allocation14 + $0x2b0] sm:$0xff]
    %v309 = vld [vmem:[#allocation14 + $0x2b8] sm:$0xff]
    %v310 = vld [vmem:[#allocation14 + $0x2c0] sm:$0xff]
    %v311 = vld [vmem:[#allocation14 + $0x2c8] sm:$0xff]
    %v312 = vld [vmem:[#allocation14 + $0x2d0] sm:$0xff]
    %v313 = vld [vmem:[#allocation14 + $0x2d8] sm:$0xff]
    %v314 = vld [vmem:[#allocation14 + $0x2e0] sm:$0xff]
    %v315 = vld [vmem:[#allocation14 + $0x2e8] sm:$0xff]
    %v316 = vld [vmem:[#allocation14 + $0x2f0] sm:$0xff]
    %v317 = vld [vmem:[#allocation14 + $0x2f8] sm:$0xff]
    %v318 = vld [vmem:[#allocation14 + $0x300] sm:$0xff]
    %v319 = vld [vmem:[#allocation14 + $0x308] sm:$0xff]
    %v320 = vld [vmem:[#allocation14 + $0x310] sm:$0xff]
    %v321 = vld [vmem:[#allocation14 + $0x318] sm:$0xff]
    %v322 = vld [vmem:[#allocation14 + $0x320] sm:$0xff]
    %v323 = vld [vmem:[#allocation14 + $0x328] sm:$0xff]
    %v324 = vld [vmem:[#allocation14 + $0x330] sm:$0xff]
    %v325 = vld [vmem:[#allocation14 + $0x338] sm:$0xff]
    %v326 = vld [vmem:[#allocation14 + $0x340] sm:$0xff]
    %v327 = vld [vmem:[#allocation14 + $0x348] sm:$0xff]
    %v328 = vld [vmem:[#allocation14 + $0x350] sm:$0xff]
    %v329 = vld [vmem:[#allocation14 + $0x358] sm:$0xff]
    %v330 = vld [vmem:[#allocation14 + $0x360] sm:$0xff]
    %v331 = vld [vmem:[#allocation14 + $0x368] sm:$0xff]
    %v332 = vld [vmem:[#allocation14 + $0x370] sm:$0xff]
    %v333 = vld [vmem:[#allocation14 + $0x378] sm:$0xff]
    %v334 = vld [vmem:[#allocation14 + $0x380] sm:$0xff]
    %v335 = vld [vmem:[#allocation14 + $0x388] sm:$0xff]
    %v336 = vld [vmem:[#allocation14 + $0x390] sm:$0xff]
    %v337 = vld [vmem:[#allocation14 + $0x398] sm:$0xff]
    %v338 = vld [vmem:[#allocation14 + $0x3a0] sm:$0xff]
    %v339 = vld [vmem:[#allocation14 + $0x3a8] sm:$0xff]
    %v340 = vld [vmem:[#allocation14 + $0x3b0] sm:$0xff]
    %v341 = vld [vmem:[#allocation14 + $0x3b8] sm:$0xff]
    %v342 = vld [vmem:[#allocation14 + $0x3c0] sm:$0xff]
    %v343 = vld [vmem:[#allocation14 + $0x3c8] sm:$0xff]
    %v344 = vld [vmem:[#allocation14 + $0x3d0] sm:$0xff]
    %v345 = vld [vmem:[#allocation14 + $0x3d8] sm:$0xff]
    %v346 = vld [vmem:[#allocation14 + $0x3e0] sm:$0xff]
    %v347 = vld [vmem:[#allocation14 + $0x3e8] sm:$0xff]
    %v348 = vld [vmem:[#allocation14 + $0x3f0] sm:$0xff]
    %v349 = vld [vmem:[#allocation14 + $0x3f8] sm:$0xff]
    %v478 = vunpack.c.l.b16 %v222
    %v479 = vunpack.c.h.b16 %v222
    %v480 = vunpack.c.l.b16 %v223
    %v481 = vunpack.c.h.b16 %v223
    %v482 = vunpack.c.l.b16 %v224
    %v483 = vunpack.c.h.b16 %v224
    %v484 = vunpack.c.l.b16 %v225
    %v485 = vunpack.c.h.b16 %v225
    %v486 = vunpack.c.l.b16 %v226
    %v487 = vunpack.c.h.b16 %v226
    %v488 = vunpack.c.l.b16 %v227
    %v489 = vunpack.c.h.b16 %v227
    %v490 = vunpack.c.l.b16 %v228
    %v491 = vunpack.c.h.b16 %v228
    %v492 = vunpack.c.l.b16 %v229
    %v493 = vunpack.c.h.b16 %v229
    %v494 = vunpack.c.l.b16 %v230
    %v495 = vunpack.c.h.b16 %v230
    %v496 = vunpack.c.l.b16 %v231
    %v497 = vunpack.c.h.b16 %v231
    %v498 = vunpack.c.l.b16 %v232
    %v499 = vunpack.c.h.b16 %v232
    %v500 = vunpack.c.l.b16 %v233
    %v501 = vunpack.c.h.b16 %v233
    %v502 = vunpack.c.l.b16 %v234
    %v503 = vunpack.c.h.b16 %v234
    %v504 = vunpack.c.l.b16 %v235
    %v505 = vunpack.c.h.b16 %v235
    %v506 = vunpack.c.l.b16 %v236
    %v507 = vunpack.c.h.b16 %v236
    %v508 = vunpack.c.l.b16 %v237
    %v509 = vunpack.c.h.b16 %v237
    %v510 = vunpack.c.l.b16 %v238
    %v511 = vunpack.c.h.b16 %v238
    %v512 = vunpack.c.l.b16 %v239
    %v513 = vunpack.c.h.b16 %v239
    %v514 = vunpack.c.l.b16 %v240
    %v515 = vunpack.c.h.b16 %v240
    %v516 = vunpack.c.l.b16 %v241
    %v517 = vunpack.c.h.b16 %v241
    %v518 = vunpack.c.l.b16 %v242
    %v519 = vunpack.c.h.b16 %v242
    %v520 = vunpack.c.l.b16 %v243
    %v521 = vunpack.c.h.b16 %v243
    %v522 = vunpack.c.l.b16 %v244
    %v523 = vunpack.c.h.b16 %v244
    %v524 = vunpack.c.l.b16 %v245
    %v525 = vunpack.c.h.b16 %v245
    %v526 = vunpack.c.l.b16 %v246
    %v527 = vunpack.c.h.b16 %v246
    %v528 = vunpack.c.l.b16 %v247
    %v529 = vunpack.c.h.b16 %v247
    %v530 = vunpack.c.l.b16 %v248
    %v531 = vunpack.c.h.b16 %v248
    %v532 = vunpack.c.l.b16 %v249
    %v533 = vunpack.c.h.b16 %v249
    %v534 = vunpack.c.l.b16 %v250
    %v535 = vunpack.c.h.b16 %v250
    %v536 = vunpack.c.l.b16 %v251
    %v537 = vunpack.c.h.b16 %v251
    %v538 = vunpack.c.l.b16 %v252
    %v539 = vunpack.c.h.b16 %v252
    %v540 = vunpack.c.l.b16 %v253
    %v541 = vunpack.c.h.b16 %v253
    %v542 = vunpack.c.l.b16 %v254
    %v543 = vunpack.c.h.b16 %v254
    %v544 = vunpack.c.l.b16 %v255
    %v545 = vunpack.c.h.b16 %v255
    %v546 = vunpack.c.l.b16 %v256
    %v547 = vunpack.c.h.b16 %v256
    %v548 = vunpack.c.l.b16 %v257
    %v549 = vunpack.c.h.b16 %v257
    %v550 = vunpack.c.l.b16 %v258
    %v551 = vunpack.c.h.b16 %v258
    %v552 = vunpack.c.l.b16 %v259
    %v553 = vunpack.c.h.b16 %v259
    %v554 = vunpack.c.l.b16 %v260
    %v555 = vunpack.c.h.b16 %v260
    %v556 = vunpack.c.l.b16 %v261
    %v557 = vunpack.c.h.b16 %v261
    %v558 = vunpack.c.l.b16 %v262
    %v559 = vunpack.c.h.b16 %v262
    %v560 = vunpack.c.l.b16 %v263
    %v561 = vunpack.c.h.b16 %v263
    %v562 = vunpack.c.l.b16 %v264
    %v563 = vunpack.c.h.b16 %v264
    %v564 = vunpack.c.l.b16 %v265
    %v565 = vunpack.c.h.b16 %v265
    %v566 = vunpack.c.l.b16 %v266
    %v567 = vunpack.c.h.b16 %v266
    %v568 = vunpack.c.l.b16 %v267
    %v569 = vunpack.c.h.b16 %v267
    %v570 = vunpack.c.l.b16 %v268
    %v571 = vunpack.c.h.b16 %v268
    %v572 = vunpack.c.l.b16 %v269
    %v573 = vunpack.c.h.b16 %v269
    %v574 = vunpack.c.l.b16 %v270
    %v575 = vunpack.c.h.b16 %v270
    %v576 = vunpack.c.l.b16 %v271
    %v577 = vunpack.c.h.b16 %v271
    %v578 = vunpack.c.l.b16 %v272
    %v579 = vunpack.c.h.b16 %v272
    %v580 = vunpack.c.l.b16 %v273
    %v581 = vunpack.c.h.b16 %v273
    %v582 = vunpack.c.l.b16 %v274
    %v583 = vunpack.c.h.b16 %v274
    %v584 = vunpack.c.l.b16 %v275
    %v585 = vunpack.c.h.b16 %v275
    %v586 = vunpack.c.l.b16 %v276
    %v587 = vunpack.c.h.b16 %v276
    %v588 = vunpack.c.l.b16 %v277
    %v589 = vunpack.c.h.b16 %v277
    %v590 = vunpack.c.l.b16 %v278
    %v591 = vunpack.c.h.b16 %v278
    %v592 = vunpack.c.l.b16 %v279
    %v593 = vunpack.c.h.b16 %v279
    %v594 = vunpack.c.l.b16 %v280
    %v595 = vunpack.c.h.b16 %v280
    %v596 = vunpack.c.l.b16 %v281
    %v597 = vunpack.c.h.b16 %v281
    %v598 = vunpack.c.l.b16 %v282
    %v599 = vunpack.c.h.b16 %v282
    %v600 = vunpack.c.l.b16 %v283
    %v601 = vunpack.c.h.b16 %v283
    %v602 = vunpack.c.l.b16 %v284
    %v603 = vunpack.c.h.b16 %v284
    %v604 = vunpack.c.l.b16 %v285
    %v605 = vunpack.c.h.b16 %v285
    %v606 = vunpack.c.l.b16 %v286
    %v607 = vunpack.c.h.b16 %v286
    %v608 = vunpack.c.l.b16 %v287
    %v609 = vunpack.c.h.b16 %v287
    %v610 = vunpack.c.l.b16 %v288
    %v611 = vunpack.c.h.b16 %v288
    %v612 = vunpack.c.l.b16 %v289
    %v613 = vunpack.c.h.b16 %v289
    %v614 = vunpack.c.l.b16 %v290
    %v615 = vunpack.c.h.b16 %v290
    %v616 = vunpack.c.l.b16 %v291
    %v617 = vunpack.c.h.b16 %v291
    %v618 = vunpack.c.l.b16 %v292
    %v619 = vunpack.c.h.b16 %v292
    %v620 = vunpack.c.l.b16 %v293
    %v621 = vunpack.c.h.b16 %v293
    %v622 = vunpack.c.l.b16 %v294
    %v623 = vunpack.c.h.b16 %v294
    %v624 = vunpack.c.l.b16 %v295
    %v625 = vunpack.c.h.b16 %v295
    %v626 = vunpack.c.l.b16 %v296
    %v627 = vunpack.c.h.b16 %v296
    %v628 = vunpack.c.l.b16 %v297
    %v629 = vunpack.c.h.b16 %v297
    %v630 = vunpack.c.l.b16 %v298
    %v631 = vunpack.c.h.b16 %v298
    %v632 = vunpack.c.l.b16 %v299
    %v633 = vunpack.c.h.b16 %v299
    %v634 = vunpack.c.l.b16 %v300
    %v635 = vunpack.c.h.b16 %v300
    %v636 = vunpack.c.l.b16 %v301
    %v637 = vunpack.c.h.b16 %v301
    %v638 = vunpack.c.l.b16 %v302
    %v639 = vunpack.c.h.b16 %v302
    %v640 = vunpack.c.l.b16 %v303
    %v641 = vunpack.c.h.b16 %v303
    %v642 = vunpack.c.l.b16 %v304
    %v643 = vunpack.c.h.b16 %v304
    %v644 = vunpack.c.l.b16 %v305
    %v645 = vunpack.c.h.b16 %v305
    %v646 = vunpack.c.l.b16 %v306
    %v647 = vunpack.c.h.b16 %v306
    %v648 = vunpack.c.l.b16 %v307
    %v649 = vunpack.c.h.b16 %v307
    %v650 = vunpack.c.l.b16 %v308
    %v651 = vunpack.c.h.b16 %v308
    %v652 = vunpack.c.l.b16 %v309
    %v653 = vunpack.c.h.b16 %v309
    %v654 = vunpack.c.l.b16 %v310
    %v655 = vunpack.c.h.b16 %v310
    %v656 = vunpack.c.l.b16 %v311
    %v657 = vunpack.c.h.b16 %v311
    %v658 = vunpack.c.l.b16 %v312
    %v659 = vunpack.c.h.b16 %v312
    %v660 = vunpack.c.l.b16 %v313
    %v661 = vunpack.c.h.b16 %v313
    %v662 = vunpack.c.l.b16 %v314
    %v663 = vunpack.c.h.b16 %v314
    %v664 = vunpack.c.l.b16 %v315
    %v665 = vunpack.c.h.b16 %v315
    %v666 = vunpack.c.l.b16 %v316
    %v667 = vunpack.c.h.b16 %v316
    %v668 = vunpack.c.l.b16 %v317
    %v669 = vunpack.c.h.b16 %v317
    %v670 = vunpack.c.l.b16 %v318
    %v671 = vunpack.c.h.b16 %v318
    %v672 = vunpack.c.l.b16 %v319
    %v673 = vunpack.c.h.b16 %v319
    %v674 = vunpack.c.l.b16 %v320
    %v675 = vunpack.c.h.b16 %v320
    %v676 = vunpack.c.l.b16 %v321
    %v677 = vunpack.c.h.b16 %v321
    %v678 = vunpack.c.l.b16 %v322
    %v679 = vunpack.c.h.b16 %v322
    %v680 = vunpack.c.l.b16 %v323
    %v681 = vunpack.c.h.b16 %v323
    %v682 = vunpack.c.l.b16 %v324
    %v683 = vunpack.c.h.b16 %v324
    %v684 = vunpack.c.l.b16 %v325
    %v685 = vunpack.c.h.b16 %v325
    %v686 = vunpack.c.l.b16 %v326
    %v687 = vunpack.c.h.b16 %v326
    %v688 = vunpack.c.l.b16 %v327
    %v689 = vunpack.c.h.b16 %v327
    %v690 = vunpack.c.l.b16 %v328
    %v691 = vunpack.c.h.b16 %v328
    %v692 = vunpack.c.l.b16 %v329
    %v693 = vunpack.c.h.b16 %v329
    %v694 = vunpack.c.l.b16 %v330
    %v695 = vunpack.c.h.b16 %v330
    %v696 = vunpack.c.l.b16 %v331
    %v697 = vunpack.c.h.b16 %v331
    %v698 = vunpack.c.l.b16 %v332
    %v699 = vunpack.c.h.b16 %v332
    %v700 = vunpack.c.l.b16 %v333
    %v701 = vunpack.c.h.b16 %v333
    %v702 = vunpack.c.l.b16 %v334
    %v703 = vunpack.c.h.b16 %v334
    %v704 = vunpack.c.l.b16 %v335
    %v705 = vunpack.c.h.b16 %v335
    %v706 = vunpack.c.l.b16 %v336
    %v707 = vunpack.c.h.b16 %v336
    %v708 = vunpack.c.l.b16 %v337
    %v709 = vunpack.c.h.b16 %v337
    %v710 = vunpack.c.l.b16 %v338
    %v711 = vunpack.c.h.b16 %v338
    %v712 = vunpack.c.l.b16 %v339
    %v713 = vunpack.c.h.b16 %v339
    %v714 = vunpack.c.l.b16 %v340
    %v715 = vunpack.c.h.b16 %v340
    %v716 = vunpack.c.l.b16 %v341
    %v717 = vunpack.c.h.b16 %v341
    %v718 = vunpack.c.l.b16 %v342
    %v719 = vunpack.c.h.b16 %v342
    %v720 = vunpack.c.l.b16 %v343
    %v721 = vunpack.c.h.b16 %v343
    %v722 = vunpack.c.l.b16 %v344
    %v723 = vunpack.c.h.b16 %v344
    %v724 = vunpack.c.l.b16 %v345
    %v725 = vunpack.c.h.b16 %v345
    %v726 = vunpack.c.l.b16 %v346
    %v727 = vunpack.c.h.b16 %v346
    %v728 = vunpack.c.l.b16 %v347
    %v729 = vunpack.c.h.b16 %v347
    %v730 = vunpack.c.l.b16 %v348
    %v731 = vunpack.c.h.b16 %v348
    %v732 = vunpack.c.l.b16 %v349
    %v733 = vunpack.c.h.b16 %v349
    %v734 = vpack.c.b16 %v494, %v478
    %v735 = vpack.c.b16 %v495, %v479
    %v736 = vpack.c.b16 %v496, %v480
    %v737 = vpack.c.b16 %v497, %v481
    %v738 = vpack.c.b16 %v498, %v482
    %v739 = vpack.c.b16 %v499, %v483
    %v740 = vpack.c.b16 %v500, %v484
    %v741 = vpack.c.b16 %v501, %v485
    %v742 = vpack.c.b16 %v502, %v486
    %v743 = vpack.c.b16 %v503, %v487
    %v744 = vpack.c.b16 %v504, %v488
    %v745 = vpack.c.b16 %v505, %v489
    %v746 = vpack.c.b16 %v506, %v490
    %v747 = vpack.c.b16 %v507, %v491
    %v748 = vpack.c.b16 %v508, %v492
    %v749 = vpack.c.b16 %v509, %v493
    %v750 = vpack.c.b16 %v526, %v510
    %v751 = vpack.c.b16 %v527, %v511
    %v752 = vpack.c.b16 %v528, %v512
    %v753 = vpack.c.b16 %v529, %v513
    %v754 = vpack.c.b16 %v530, %v514
    %v755 = vpack.c.b16 %v531, %v515
    %v756 = vpack.c.b16 %v532, %v516
    %v757 = vpack.c.b16 %v533, %v517
    %v758 = vpack.c.b16 %v534, %v518
    %v759 = vpack.c.b16 %v535, %v519
    %v760 = vpack.c.b16 %v536, %v520
    %v761 = vpack.c.b16 %v537, %v521
    %v762 = vpack.c.b16 %v538, %v522
    %v763 = vpack.c.b16 %v539, %v523
    %v764 = vpack.c.b16 %v540, %v524
    %v765 = vpack.c.b16 %v541, %v525
    %v766 = vpack.c.b16 %v558, %v542
    %v767 = vpack.c.b16 %v559, %v543
    %v768 = vpack.c.b16 %v560, %v544
    %v769 = vpack.c.b16 %v561, %v545
    %v770 = vpack.c.b16 %v562, %v546
    %v771 = vpack.c.b16 %v563, %v547
    %v772 = vpack.c.b16 %v564, %v548
    %v773 = vpack.c.b16 %v565, %v549
    %v774 = vpack.c.b16 %v566, %v550
    %v775 = vpack.c.b16 %v567, %v551
    %v776 = vpack.c.b16 %v568, %v552
    %v777 = vpack.c.b16 %v569, %v553
    %v778 = vpack.c.b16 %v570, %v554
    %v779 = vpack.c.b16 %v571, %v555
    %v780 = vpack.c.b16 %v572, %v556
    %v781 = vpack.c.b16 %v573, %v557
    %v782 = vpack.c.b16 %v590, %v574
    %v783 = vpack.c.b16 %v591, %v575
    %v784 = vpack.c.b16 %v592, %v576
    %v785 = vpack.c.b16 %v593, %v577
    %v786 = vpack.c.b16 %v594, %v578
    %v787 = vpack.c.b16 %v595, %v579
    %v788 = vpack.c.b16 %v596, %v580
    %v789 = vpack.c.b16 %v597, %v581
    %v790 = vpack.c.b16 %v598, %v582
    %v791 = vpack.c.b16 %v599, %v583
    %v792 = vpack.c.b16 %v600, %v584
    %v793 = vpack.c.b16 %v601, %v585
    %v794 = vpack.c.b16 %v602, %v586
    %v795 = vpack.c.b16 %v603, %v587
    %v796 = vpack.c.b16 %v604, %v588
    %v797 = vpack.c.b16 %v605, %v589
    %v798 = vpack.c.b16 %v622, %v606
    %v799 = vpack.c.b16 %v623, %v607
    %v800 = vpack.c.b16 %v624, %v608
    %v801 = vpack.c.b16 %v625, %v609
    %v802 = vpack.c.b16 %v626, %v610
    %v803 = vpack.c.b16 %v627, %v611
    %v804 = vpack.c.b16 %v628, %v612
    %v805 = vpack.c.b16 %v629, %v613
    %v806 = vpack.c.b16 %v630, %v614
    %v807 = vpack.c.b16 %v631, %v615
    %v808 = vpack.c.b16 %v632, %v616
    %v809 = vpack.c.b16 %v633, %v617
    %v810 = vpack.c.b16 %v634, %v618
    %v811 = vpack.c.b16 %v635, %v619
    %v812 = vpack.c.b16 %v636, %v620
    %v813 = vpack.c.b16 %v637, %v621
    %v814 = vpack.c.b16 %v654, %v638
    %v815 = vpack.c.b16 %v655, %v639
    %v816 = vpack.c.b16 %v656, %v640
    %v817 = vpack.c.b16 %v657, %v641
    %v818 = vpack.c.b16 %v658, %v642
    %v819 = vpack.c.b16 %v659, %v643
    %v820 = vpack.c.b16 %v660, %v644
    %v821 = vpack.c.b16 %v661, %v645
    %v822 = vpack.c.b16 %v662, %v646
    %v823 = vpack.c.b16 %v663, %v647
    %v824 = vpack.c.b16 %v664, %v648
    %v825 = vpack.c.b16 %v665, %v649
    %v826 = vpack.c.b16 %v666, %v650
    %v827 = vpack.c.b16 %v667, %v651
    %v828 = vpack.c.b16 %v668, %v652
    %v829 = vpack.c.b16 %v669, %v653
    %v830 = vpack.c.b16 %v686, %v670
    %v831 = vpack.c.b16 %v687, %v671
    %v832 = vpack.c.b16 %v688, %v672
    %v833 = vpack.c.b16 %v689, %v673
    %v834 = vpack.c.b16 %v690, %v674
    %v835 = vpack.c.b16 %v691, %v675
    %v836 = vpack.c.b16 %v692, %v676
    %v837 = vpack.c.b16 %v693, %v677
    %v838 = vpack.c.b16 %v694, %v678
    %v839 = vpack.c.b16 %v695, %v679
    %v840 = vpack.c.b16 %v696, %v680
    %v841 = vpack.c.b16 %v697, %v681
    %v842 = vpack.c.b16 %v698, %v682
    %v843 = vpack.c.b16 %v699, %v683
    %v844 = vpack.c.b16 %v700, %v684
    %v845 = vpack.c.b16 %v701, %v685
    %v846 = vpack.c.b16 %v718, %v702
    %v847 = vpack.c.b16 %v719, %v703
    %v848 = vpack.c.b16 %v720, %v704
    %v849 = vpack.c.b16 %v721, %v705
    %v850 = vpack.c.b16 %v722, %v706
    %v851 = vpack.c.b16 %v723, %v707
    %v852 = vpack.c.b16 %v724, %v708
    %v853 = vpack.c.b16 %v725, %v709
    %v854 = vpack.c.b16 %v726, %v710
    %v855 = vpack.c.b16 %v727, %v711
    %v856 = vpack.c.b16 %v728, %v712
    %v857 = vpack.c.b16 %v729, %v713
    %v858 = vpack.c.b16 %v730, %v714
    %v859 = vpack.c.b16 %v731, %v715
    %v860 = vpack.c.b16 %v732, %v716
    %v861 = vpack.c.b16 %v733, %v717
    %990 = vmatprep.subr.bf16.mxu0 %v735
    %991 = vmatpush1.bf16.msra.mxu0 %v734
    %992 = vmatprep.subr.bf16.mxu0 %v751
    %993 = vmatpush1.bf16.msra.mxu0 %v750
    %994 = vmatprep.subr.bf16.mxu0 %v767
    %995 = vmatpush1.bf16.msra.mxu0 %v766
    %996 = vmatprep.subr.bf16.mxu0 %v783
    %997 = vmatpush1.bf16.msra.mxu0 %v782
    %998 = vmatprep.subr.bf16.mxu0 %v799
    %999 = vmatpush1.bf16.msra.mxu0 %v798
    %1000 = vmatprep.subr.bf16.mxu0 %v815
    %1001 = vmatpush1.bf16.msra.mxu0 %v814
    %1002 = vmatprep.subr.bf16.mxu0 %v831
    %1003 = vmatpush1.bf16.msra.mxu0 %v830
    %1004 = vmatprep.subr.bf16.mxu0 %v847
    %1005 = vmatpush1.bf16.msra.mxu0 %v846
    %1006 = vmatprep.subr.bf16.mxu0 0
    %1007 = vmatpush1.bf16.msra.mxu0 0
    %1008 = vmatprep.subr.bf16.mxu0 0
    %1009 = vmatpush1.bf16.msra.mxu0 0
    %1010 = vmatprep.subr.bf16.mxu0 0
    %1011 = vmatpush1.bf16.msra.mxu0 0
    %1012 = vmatprep.subr.bf16.mxu0 0
    %1013 = vmatpush1.bf16.msra.mxu0 0
    %1014 = vmatprep.subr.bf16.mxu0 0
    %1015 = vmatpush1.bf16.msra.mxu0 0
    %1016 = vmatprep.subr.bf16.mxu0 0
    %1017 = vmatpush1.bf16.msra.mxu0 0
    %1018 = vmatprep.subr.bf16.mxu0 0
    %1019 = vmatpush1.bf16.msra.mxu0 0
    %1020 = vmatprep.subr.bf16.mxu0 0
    %1021 = vmatpush1.bf16.msra.mxu0 0
    %1022 = vmatprep.mubr.bf16.mxu0 0
    %1023 = vmatmul.mubr.bf16.gmra.mrb[0].mxu0 %v221
    %v1024 = vpop.f32.mrb[0].mxu0
    %v1025 = vadd.f32 0.0, %v1024
    %v1026 = vpop.f32.mrb[0].mxu0
    %v1027 = vadd.f32 0.0, %v1026
    %v1028 = vpop.f32.mrb[0].mxu0
    %v1029 = vpop.f32.mrb[0].mxu0
    %1030 = vdwg.mxu0
    %1031 = vmatprep.subr.bf16.mxu0 %v737
    %1032 = vmatpush1.bf16.msra.mxu0 %v736
    %1033 = vmatprep.subr.bf16.mxu0 %v753
    %1034 = vmatpush1.bf16.msra.mxu0 %v752
    %1035 = vmatprep.subr.bf16.mxu0 %v769
    %1036 = vmatpush1.bf16.msra.mxu0 %v768
    %1037 = vmatprep.subr.bf16.mxu0 %v785
    %1038 = vmatpush1.bf16.msra.mxu0 %v784
    %1039 = vmatprep.subr.bf16.mxu0 %v801
    %1040 = vmatpush1.bf16.msra.mxu0 %v800
    %1041 = vmatprep.subr.bf16.mxu0 %v817
    %1042 = vmatpush1.bf16.msra.mxu0 %v816
    %1043 = vmatprep.subr.bf16.mxu0 %v833
    %1044 = vmatpush1.bf16.msra.mxu0 %v832
    %1045 = vmatprep.subr.bf16.mxu0 %v849
    %1046 = vmatpush1.bf16.msra.mxu0 %v848
    %1047 = vmatprep.subr.bf16.mxu0 0
    %1048 = vmatpush1.bf16.msra.mxu0 0
    %1049 = vmatprep.subr.bf16.mxu0 0
    %1050 = vmatpush1.bf16.msra.mxu0 0
    %1051 = vmatprep.subr.bf16.mxu0 0
    %1052 = vmatpush1.bf16.msra.mxu0 0
    %1053 = vmatprep.subr.bf16.mxu0 0
    %1054 = vmatpush1.bf16.msra.mxu0 0
    %1055 = vmatprep.subr.bf16.mxu0 0
    %1056 = vmatpush1.bf16.msra.mxu0 0
    %1057 = vmatprep.subr.bf16.mxu0 0
    %1058 = vmatpush1.bf16.msra.mxu0 0
    %1059 = vmatprep.subr.bf16.mxu0 0
    %1060 = vmatpush1.bf16.msra.mxu0 0
    %1061 = vmatprep.subr.bf16.mxu0 0
    %1062 = vmatpush1.bf16.msra.mxu0 0
    %1063 = vmatprep.mubr.bf16.mxu0 0
    %1064 = vmatmul.mubr.bf16.gmra.mrb[0].mxu0 %v221
    %v1065 = vpop.f32.mrb[0].mxu0
    %v1066 = vadd.f32 0.0, %v1065
    %v1067 = vpop.f32.mrb[0].mxu0
    %v1068 = vadd.f32 0.0, %v1067
    %v1069 = vpop.f32.mrb[0].mxu0
    %v1070 = vpop.f32.mrb[0].mxu0
    %1071 = vdwg.mxu0
    %1072 = vmatprep.subr.bf16.mxu0 %v739
    %1073 = vmatpush1.bf16.msra.mxu0 %v738
    %1074 = vmatprep.subr.bf16.mxu0 %v755
    %1075 = vmatpush1.bf16.msra.mxu0 %v754
    %1076 = vmatprep.subr.bf16.mxu0 %v771
    %1077 = vmatpush1.bf16.msra.mxu0 %v770
    %1078 = vmatprep.subr.bf16.mxu0 %v787
    %1079 = vmatpush1.bf16.msra.mxu0 %v786
    %1080 = vmatprep.subr.bf16.mxu0 %v803
    %1081 = vmatpush1.bf16.msra.mxu0 %v802
    %1082 = vmatprep.subr.bf16.mxu0 %v819
    %1083 = vmatpush1.bf16.msra.mxu0 %v818
    %1084 = vmatprep.subr.bf16.mxu0 %v835
    %1085 = vmatpush1.bf16.msra.mxu0 %v834
    %1086 = vmatprep.subr.bf16.mxu0 %v851
    %1087 = vmatpush1.bf16.msra.mxu0 %v850
    %1088 = vmatprep.subr.bf16.mxu0 0
    %1089 = vmatpush1.bf16.msra.mxu0 0
    %1090 = vmatprep.subr.bf16.mxu0 0
    %1091 = vmatpush1.bf16.msra.mxu0 0
    %1092 = vmatprep.subr.bf16.mxu0 0
    %1093 = vmatpush1.bf16.msra.mxu0 0
    %1094 = vmatprep.subr.bf16.mxu0 0
    %1095 = vmatpush1.bf16.msra.mxu0 0
    %1096 = vmatprep.subr.bf16.mxu0 0
    %1097 = vmatpush1.bf16.msra.mxu0 0
    %1098 = vmatprep.subr.bf16.mxu0 0
    %1099 = vmatpush1.bf16.msra.mxu0 0
    %1100 = vmatprep.subr.bf16.mxu0 0
    %1101 = vmatpush1.bf16.msra.mxu0 0
    %1102 = vmatprep.subr.bf16.mxu0 0
    %1103 = vmatpush1.bf16.msra.mxu0 0
    %1104 = vmatprep.mubr.bf16.mxu0 0
    %1105 = vmatmul.mubr.bf16.gmra.mrb[0].mxu0 %v221
    %v1106 = vpop.f32.mrb[0].mxu0
    %v1107 = vadd.f32 0.0, %v1106
    %v1108 = vpop.f32.mrb[0].mxu0
    %v1109 = vadd.f32 0.0, %v1108
    %v1110 = vpop.f32.mrb[0].mxu0
    %v1111 = vpop.f32.mrb[0].mxu0
    %1112 = vdwg.mxu0
    %1113 = vmatprep.subr.bf16.mxu0 %v741
    %1114 = vmatpush1.bf16.msra.mxu0 %v740
    %1115 = vmatprep.subr.bf16.mxu0 %v757
    %1116 = vmatpush1.bf16.msra.mxu0 %v756
    %1117 = vmatprep.subr.bf16.mxu0 %v773
    %1118 = vmatpush1.bf16.msra.mxu0 %v772
    %1119 = vmatprep.subr.bf16.mxu0 %v789
    %1120 = vmatpush1.bf16.msra.mxu0 %v788
    %1121 = vmatprep.subr.bf16.mxu0 %v805
    %1122 = vmatpush1.bf16.msra.mxu0 %v804
    %1123 = vmatprep.subr.bf16.mxu0 %v821
    %1124 = vmatpush1.bf16.msra.mxu0 %v820
    %1125 = vmatprep.subr.bf16.mxu0 %v837
    %1126 = vmatpush1.bf16.msra.mxu0 %v836
    %1127 = vmatprep.subr.bf16.mxu0 %v853
    %1128 = vmatpush1.bf16.msra.mxu0 %v852
    %1129 = vmatprep.subr.bf16.mxu0 0
    %1130 = vmatpush1.bf16.msra.mxu0 0
    %1131 = vmatprep.subr.bf16.mxu0 0
    %1132 = vmatpush1.bf16.msra.mxu0 0
    %1133 = vmatprep.subr.bf16.mxu0 0
    %1134 = vmatpush1.bf16.msra.mxu0 0
    %1135 = vmatprep.subr.bf16.mxu0 0
    %1136 = vmatpush1.bf16.msra.mxu0 0
    %1137 = vmatprep.subr.bf16.mxu0 0
    %1138 = vmatpush1.bf16.msra.mxu0 0
    %1139 = vmatprep.subr.bf16.mxu0 0
    %1140 = vmatpush1.bf16.msra.mxu0 0
    %1141 = vmatprep.subr.bf16.mxu0 0
    %1142 = vmatpush1.bf16.msra.mxu0 0
    %1143 = vmatprep.subr.bf16.mxu0 0
    %1144 = vmatpush1.bf16.msra.mxu0 0
    %1145 = vmatprep.mubr.bf16.mxu0 0
    %1146 = vmatmul.mubr.bf16.gmra.mrb[0].mxu0 %v221
    %v1147 = vpop.f32.mrb[0].mxu0
    %v1148 = vadd.f32 0.0, %v1147
    %v1149 = vpop.f32.mrb[0].mxu0
    %v1150 = vadd.f32 0.0, %v1149
    %v1151 = vpop.f32.mrb[0].mxu0
    %v1152 = vpop.f32.mrb[0].mxu0
    %1153 = vdwg.mxu0
    %1154 = vmatprep.subr.bf16.mxu0 %v743
    %1155 = vmatpush1.bf16.msra.mxu0 %v742
    %1156 = vmatprep.subr.bf16.mxu0 %v759
    %1157 = vmatpush1.bf16.msra.mxu0 %v758
    %1158 = vmatprep.subr.bf16.mxu0 %v775
    %1159 = vmatpush1.bf16.msra.mxu0 %v774
    %1160 = vmatprep.subr.bf16.mxu0 %v791
    %1161 = vmatpush1.bf16.msra.mxu0 %v790
    %1162 = vmatprep.subr.bf16.mxu0 %v807
    %1163 = vmatpush1.bf16.msra.mxu0 %v806
    %1164 = vmatprep.subr.bf16.mxu0 %v823
    %1165 = vmatpush1.bf16.msra.mxu0 %v822
    %1166 = vmatprep.subr.bf16.mxu0 %v839
    %1167 = vmatpush1.bf16.msra.mxu0 %v838
    %1168 = vmatprep.subr.bf16.mxu0 %v855
    %1169 = vmatpush1.bf16.msra.mxu0 %v854
    %1170 = vmatprep.subr.bf16.mxu0 0
    %1171 = vmatpush1.bf16.msra.mxu0 0
    %1172 = vmatprep.subr.bf16.mxu0 0
    %1173 = vmatpush1.bf16.msra.mxu0 0
    %1174 = vmatprep.subr.bf16.mxu0 0
    %1175 = vmatpush1.bf16.msra.mxu0 0
    %1176 = vmatprep.subr.bf16.mxu0 0
    %1177 = vmatpush1.bf16.msra.mxu0 0
    %1178 = vmatprep.subr.bf16.mxu0 0
    %1179 = vmatpush1.bf16.msra.mxu0 0
    %1180 = vmatprep.subr.bf16.mxu0 0
    %1181 = vmatpush1.bf16.msra.mxu0 0
    %1182 = vmatprep.subr.bf16.mxu0 0
    %1183 = vmatpush1.bf16.msra.mxu0 0
    %1184 = vmatprep.subr.bf16.mxu0 0
    %1185 = vmatpush1.bf16.msra.mxu0 0
    %1186 = vmatprep.mubr.bf16.mxu0 0
    %1187 = vmatmul.mubr.bf16.gmra.mrb[0].mxu0 %v221
    %v1188 = vpop.f32.mrb[0].mxu0
    %v1189 = vadd.f32 0.0, %v1188
    %v1190 = vpop.f32.mrb[0].mxu0
    %v1191 = vadd.f32 0.0, %v1190
    %v1192 = vpop.f32.mrb[0].mxu0
    %v1193 = vpop.f32.mrb[0].mxu0
    %1194 = vdwg.mxu0
    %1195 = vmatprep.subr.bf16.mxu0 %v745
    %1196 = vmatpush1.bf16.msra.mxu0 %v744
    %1197 = vmatprep.subr.bf16.mxu0 %v761
    %1198 = vmatpush1.bf16.msra.mxu0 %v760
    %1199 = vmatprep.subr.bf16.mxu0 %v777
    %1200 = vmatpush1.bf16.msra.mxu0 %v776
    %1201 = vmatprep.subr.bf16.mxu0 %v793
    %1202 = vmatpush1.bf16.msra.mxu0 %v792
    %1203 = vmatprep.subr.bf16.mxu0 %v809
    %1204 = vmatpush1.bf16.msra.mxu0 %v808
    %1205 = vmatprep.subr.bf16.mxu0 %v825
    %1206 = vmatpush1.bf16.msra.mxu0 %v824
    %1207 = vmatprep.subr.bf16.mxu0 %v841
    %1208 = vmatpush1.bf16.msra.mxu0 %v840
    %1209 = vmatprep.subr.bf16.mxu0 %v857
    %1210 = vmatpush1.bf16.msra.mxu0 %v856
    %1211 = vmatprep.subr.bf16.mxu0 0
    %1212 = vmatpush1.bf16.msra.mxu0 0
    %1213 = vmatprep.subr.bf16.mxu0 0
    %1214 = vmatpush1.bf16.msra.mxu0 0
    %1215 = vmatprep.subr.bf16.mxu0 0
    %1216 = vmatpush1.bf16.msra.mxu0 0
    %1217 = vmatprep.subr.bf16.mxu0 0
    %1218 = vmatpush1.bf16.msra.mxu0 0
    %1219 = vmatprep.subr.bf16.mxu0 0
    %1220 = vmatpush1.bf16.msra.mxu0 0
    %1221 = vmatprep.subr.bf16.mxu0 0
    %1222 = vmatpush1.bf16.msra.mxu0 0
    %1223 = vmatprep.subr.bf16.mxu0 0
    %1224 = vmatpush1.bf16.msra.mxu0 0
    %1225 = vmatprep.subr.bf16.mxu0 0
    %1226 = vmatpush1.bf16.msra.mxu0 0
    %1227 = vmatprep.mubr.bf16.mxu0 0
    %1228 = vmatmul.mubr.bf16.gmra.mrb[0].mxu0 %v221
    %v1229 = vpop.f32.mrb[0].mxu0
    %v1230 = vadd.f32 0.0, %v1229
    %v1231 = vpop.f32.mrb[0].mxu0
    %v1232 = vadd.f32 0.0, %v1231
    %v1233 = vpop.f32.mrb[0].mxu0
    %v1234 = vpop.f32.mrb[0].mxu0
    %1235 = vdwg.mxu0
    %1236 = vmatprep.subr.bf16.mxu0 %v747
    %1237 = vmatpush1.bf16.msra.mxu0 %v746
    %1238 = vmatprep.subr.bf16.mxu0 %v763
    %1239 = vmatpush1.bf16.msra.mxu0 %v762
    %1240 = vmatprep.subr.bf16.mxu0 %v779
    %1241 = vmatpush1.bf16.msra.mxu0 %v778
    %1242 = vmatprep.subr.bf16.mxu0 %v795
    %1243 = vmatpush1.bf16.msra.mxu0 %v794
    %1244 = vmatprep.subr.bf16.mxu0 %v811
    %1245 = vmatpush1.bf16.msra.mxu0 %v810
    %1246 = vmatprep.subr.bf16.mxu0 %v827
    %1247 = vmatpush1.bf16.msra.mxu0 %v826
    %1248 = vmatprep.subr.bf16.mxu0 %v843
    %1249 = vmatpush1.bf16.msra.mxu0 %v842
    %1250 = vmatprep.subr.bf16.mxu0 %v859
    %1251 = vmatpush1.bf16.msra.mxu0 %v858
    %1252 = vmatprep.subr.bf16.mxu0 0
    %1253 = vmatpush1.bf16.msra.mxu0 0
    %1254 = vmatprep.subr.bf16.mxu0 0
    %1255 = vmatpush1.bf16.msra.mxu0 0
    %1256 = vmatprep.subr.bf16.mxu0 0
    %1257 = vmatpush1.bf16.msra.mxu0 0
    %1258 = vmatprep.subr.bf16.mxu0 0
    %1259 = vmatpush1.bf16.msra.mxu0 0
    %1260 = vmatprep.subr.bf16.mxu0 0
    %1261 = vmatpush1.bf16.msra.mxu0 0
    %1262 = vmatprep.subr.bf16.mxu0 0
    %1263 = vmatpush1.bf16.msra.mxu0 0
    %1264 = vmatprep.subr.bf16.mxu0 0
    %1265 = vmatpush1.bf16.msra.mxu0 0
    %1266 = vmatprep.subr.bf16.mxu0 0
    %1267 = vmatpush1.bf16.msra.mxu0 0
    %1268 = vmatprep.mubr.bf16.mxu0 0
    %1269 = vmatmul.mubr.bf16.gmra.mrb[0].mxu0 %v221
    %v1270 = vpop.f32.mrb[0].mxu0
    %v1271 = vadd.f32 0.0, %v1270
    %v1272 = vpop.f32.mrb[0].mxu0
    %v1273 = vadd.f32 0.0, %v1272
    %v1274 = vpop.f32.mrb[0].mxu0
    %v1275 = vpop.f32.mrb[0].mxu0
    %1276 = vdwg.mxu0
    %1277 = vmatprep.subr.bf16.mxu0 %v749
    %1278 = vmatpush1.bf16.msra.mxu0 %v748
    %1279 = vmatprep.subr.bf16.mxu0 %v765
    %1280 = vmatpush1.bf16.msra.mxu0 %v764
    %1281 = vmatprep.subr.bf16.mxu0 %v781
    %1282 = vmatpush1.bf16.msra.mxu0 %v780
    %1283 = vmatprep.subr.bf16.mxu0 %v797
    %1284 = vmatpush1.bf16.msra.mxu0 %v796
    %1285 = vmatprep.subr.bf16.mxu0 %v813
    %1286 = vmatpush1.bf16.msra.mxu0 %v812
    %1287 = vmatprep.subr.bf16.mxu0 %v829
    %1288 = vmatpush1.bf16.msra.mxu0 %v828
    %1289 = vmatprep.subr.bf16.mxu0 %v845
    %1290 = vmatpush1.bf16.msra.mxu0 %v844
    %1291 = vmatprep.subr.bf16.mxu0 %v861
    %1292 = vmatpush1.bf16.msra.mxu0 %v860
    %1293 = vmatprep.subr.bf16.mxu0 0
    %1294 = vmatpush1.bf16.msra.mxu0 0
    %1295 = vmatprep.subr.bf16.mxu0 0
    %1296 = vmatpush1.bf16.msra.mxu0 0
    %1297 = vmatprep.subr.bf16.mxu0 0
    %1298 = vmatpush1.bf16.msra.mxu0 0
    %1299 = vmatprep.subr.bf16.mxu0 0
    %1300 = vmatpush1.bf16.msra.mxu0 0
    %1301 = vmatprep.subr.bf16.mxu0 0
    %1302 = vmatpush1.bf16.msra.mxu0 0
    %1303 = vmatprep.subr.bf16.mxu0 0
    %1304 = vmatpush1.bf16.msra.mxu0 0
    %1305 = vmatprep.subr.bf16.mxu0 0
    %1306 = vmatpush1.bf16.msra.mxu0 0
    %1307 = vmatprep.subr.bf16.mxu0 0
    %1308 = vmatpush1.bf16.msra.mxu0 0
    %1309 = vmatprep.mubr.bf16.mxu0 0
    %1310 = vmatmul.mubr.bf16.gmra.mrb[0].mxu0 %v221
    %v1311 = vpop.f32.mrb[0].mxu0
    %v1312 = vadd.f32 0.0, %v1311
    %v1313 = vpop.f32.mrb[0].mxu0
    %v1314 = vadd.f32 0.0, %v1313
    %v1315 = vpop.f32.mrb[0].mxu0
    %v1316 = vpop.f32.mrb[0].mxu0
    %1317 = vdwg.mxu0
    %v1318 = vld [vmem:[#allocation16] ss:$8 sm:$0xf]
    %v1319 = vld [vmem:[#allocation16] ss:$8 sm:$0xf0]
    %v1320 = vor.u32 %v1318, %v1319
    %v1322 = vlaneseq
    %v1323 = vshrl.u32 %v1322, 7
    %v1324 = vsub.s32 0, %v1323
    %v1325 = vrot.slane %v1320, %v1324
    %v1326 = vlaneseq
    %v1327 = vshrl.u32 %v1326, 7
    %v1328 = vsub.s32 1, %v1327
    %v1329 = vrot.slane %v1320, %v1328
    %v1330 = vlaneseq
    %v1331 = vshrl.u32 %v1330, 7
    %v1332 = vsub.s32 2, %v1331
    %v1333 = vrot.slane %v1320, %v1332
    %v1334 = vlaneseq
    %v1335 = vshrl.u32 %v1334, 7
    %v1336 = vsub.s32 3, %v1335
    %v1337 = vrot.slane %v1320, %v1336
    %v1338 = vlaneseq
    %v1339 = vshrl.u32 %v1338, 7
    %v1340 = vsub.s32 4, %v1339
    %v1341 = vrot.slane %v1320, %v1340
    %v1342 = vlaneseq
    %v1343 = vshrl.u32 %v1342, 7
    %v1344 = vsub.s32 5, %v1343
    %v1345 = vrot.slane %v1320, %v1344
    %v1346 = vlaneseq
    %v1347 = vshrl.u32 %v1346, 7
    %v1348 = vsub.s32 6, %v1347
    %v1349 = vrot.slane %v1320, %v1348
    %v1350 = vlaneseq
    %v1351 = vshrl.u32 %v1350, 7
    %v1352 = vsub.s32 7, %v1351
    %v1353 = vrot.slane %v1320, %v1352
    %v1362 = vadd.f32 %v1189, %v1325
    %v1363 = vadd.f32 %v1191, %v1329
    %v1364 = vadd.f32 %v1230, %v1333
    %v1365 = vadd.f32 %v1232, %v1337
    %v1366 = vadd.f32 %v1271, %v1341
    %v1367 = vadd.f32 %v1273, %v1345
    %v1368 = vadd.f32 %v1312, %v1349
    %v1369 = vadd.f32 %v1314, %v1353
    %s1370 = scalar_lea.vmem [#allocation16], 1
    %v1371 = vld [vmem:[%s1370] ss:$8 sm:$0xf]
    %v1372 = vld [vmem:[%s1370] ss:$8 sm:$0xf0]
    %v1373 = vor.u32 %v1371, %v1372
    %s1374 = scalar_lea.vmem [#allocation16], 2
    %v1375 = vld [vmem:[%s1374] ss:$8 sm:$0xf]
    %v1376 = vld [vmem:[%s1374] ss:$8 sm:$0xf0]
    %v1377 = vor.u32 %v1375, %v1376
    %v1378 = vrot.slane %v1025, 4
    %v1379 = vadd.f32 %v1025, %v1378
    %v1380 = vrot.slane %v1379, 2
    %v1381 = vadd.f32 %v1379, %v1380
    %v1382 = vrot.slane %v1381, 1
    %v1383 = vadd.f32 %v1381, %v1382
    %v1384 = vrot.slane %v1027, 4
    %v1385 = vadd.f32 %v1027, %v1384
    %v1386 = vrot.slane %v1385, 2
    %v1387 = vadd.f32 %v1385, %v1386
    %v1388 = vrot.slane %v1387, 1
    %v1389 = vadd.f32 %v1387, %v1388
    %v1390 = vrot.slane %v1066, 4
    %v1391 = vadd.f32 %v1066, %v1390
    %v1392 = vrot.slane %v1391, 2
    %v1393 = vadd.f32 %v1391, %v1392
    %v1394 = vrot.slane %v1393, 1
    %v1395 = vadd.f32 %v1393, %v1394
    %v1396 = vrot.slane %v1068, 4
    %v1397 = vadd.f32 %v1068, %v1396
    %v1398 = vrot.slane %v1397, 2
    %v1399 = vadd.f32 %v1397, %v1398
    %v1400 = vrot.slane %v1399, 1
    %v1401 = vadd.f32 %v1399, %v1400
    %v1402 = vrot.slane %v1107, 4
    %v1403 = vadd.f32 %v1107, %v1402
    %v1404 = vrot.slane %v1403, 2
    %v1405 = vadd.f32 %v1403, %v1404
    %v1406 = vrot.slane %v1405, 1
    %v1407 = vadd.f32 %v1405, %v1406
    %v1408 = vrot.slane %v1109, 4
    %v1409 = vadd.f32 %v1109, %v1408
    %v1410 = vrot.slane %v1409, 2
    %v1411 = vadd.f32 %v1409, %v1410
    %v1412 = vrot.slane %v1411, 1
    %v1413 = vadd.f32 %v1411, %v1412
    %v1414 = vrot.slane %v1148, 4
    %v1415 = vadd.f32 %v1148, %v1414
    %v1416 = vrot.slane %v1415, 2
    %v1417 = vadd.f32 %v1415, %v1416
    %v1418 = vrot.slane %v1417, 1
    %v1419 = vadd.f32 %v1417, %v1418
    %v1420 = vrot.slane %v1150, 4
    %v1421 = vadd.f32 %v1150, %v1420
    %v1422 = vrot.slane %v1421, 2
    %v1423 = vadd.f32 %v1421, %v1422
    %v1424 = vrot.slane %v1423, 1
    %v1425 = vadd.f32 %v1423, %v1424
    %v1426 = vrcp.pop 8.0
    %v1427 = vmul.f32 %v1383, %v1426
    %v1428 = vmul.f32 %v1389, %v1426
    %v1429 = vmul.f32 %v1395, %v1426
    %v1430 = vmul.f32 %v1401, %v1426
    %v1431 = vmul.f32 %v1407, %v1426
    %v1432 = vmul.f32 %v1413, %v1426
    %v1433 = vmul.f32 %v1419, %v1426
    %v1434 = vmul.f32 %v1425, %v1426
    %v1435 = vmul.f32 %v1025, %v1025
    %v1436 = vmul.f32 %v1027, %v1027
    %v1437 = vmul.f32 %v1066, %v1066
    %v1438 = vmul.f32 %v1068, %v1068
    %v1439 = vmul.f32 %v1107, %v1107
    %v1440 = vmul.f32 %v1109, %v1109
    %v1441 = vmul.f32 %v1148, %v1148
    %v1442 = vmul.f32 %v1150, %v1150
    %v1443 = vrot.slane %v1435, 4
    %v1444 = vadd.f32 %v1435, %v1443
    %v1445 = vrot.slane %v1444, 2
    %v1446 = vadd.f32 %v1444, %v1445
    %v1447 = vrot.slane %v1446, 1
    %v1448 = vadd.f32 %v1446, %v1447
    %v1449 = vrot.slane %v1436, 4
    %v1450 = vadd.f32 %v1436, %v1449
    %v1451 = vrot.slane %v1450, 2
    %v1452 = vadd.f32 %v1450, %v1451
    %v1453 = vrot.slane %v1452, 1
    %v1454 = vadd.f32 %v1452, %v1453
    %v1455 = vrot.slane %v1437, 4
    %v1456 = vadd.f32 %v1437, %v1455
    %v1457 = vrot.slane %v1456, 2
    %v1458 = vadd.f32 %v1456, %v1457
    %v1459 = vrot.slane %v1458, 1
    %v1460 = vadd.f32 %v1458, %v1459
    %v1461 = vrot.slane %v1438, 4
    %v1462 = vadd.f32 %v1438, %v1461
    %v1463 = vrot.slane %v1462, 2
    %v1464 = vadd.f32 %v1462, %v1463
    %v1465 = vrot.slane %v1464, 1
    %v1466 = vadd.f32 %v1464, %v1465
    %v1467 = vrot.slane %v1439, 4
    %v1468 = vadd.f32 %v1439, %v1467
    %v1469 = vrot.slane %v1468, 2
    %v1470 = vadd.f32 %v1468, %v1469
    %v1471 = vrot.slane %v1470, 1
    %v1472 = vadd.f32 %v1470, %v1471
    %v1473 = vrot.slane %v1440, 4
    %v1474 = vadd.f32 %v1440, %v1473
    %v1475 = vrot.slane %v1474, 2
    %v1476 = vadd.f32 %v1474, %v1475
    %v1477 = vrot.slane %v1476, 1
    %v1478 = vadd.f32 %v1476, %v1477
    %v1479 = vrot.slane %v1441, 4
    %v1480 = vadd.f32 %v1441, %v1479
    %v1481 = vrot.slane %v1480, 2
    %v1482 = vadd.f32 %v1480, %v1481
    %v1483 = vrot.slane %v1482, 1
    %v1484 = vadd.f32 %v1482, %v1483
    %v1485 = vrot.slane %v1442, 4
    %v1486 = vadd.f32 %v1442, %v1485
    %v1487 = vrot.slane %v1486, 2
    %v1488 = vadd.f32 %v1486, %v1487
    %v1489 = vrot.slane %v1488, 1
    %v1490 = vadd.f32 %v1488, %v1489
    %v1491 = vmul.f32 %v1448, %v1426
    %v1492 = vmul.f32 %v1454, %v1426
    %v1493 = vmul.f32 %v1460, %v1426
    %v1494 = vmul.f32 %v1466, %v1426
    %v1495 = vmul.f32 %v1472, %v1426
    %v1496 = vmul.f32 %v1478, %v1426
    %v1497 = vmul.f32 %v1484, %v1426
    %v1498 = vmul.f32 %v1490, %v1426
    %v1499 = vmul.f32 %v1427, %v1427
    %v1500 = vmul.f32 %v1428, %v1428
    %v1501 = vmul.f32 %v1429, %v1429
    %v1502 = vmul.f32 %v1430, %v1430
    %v1503 = vmul.f32 %v1431, %v1431
    %v1504 = vmul.f32 %v1432, %v1432
    %v1505 = vmul.f32 %v1433, %v1433
    %v1506 = vmul.f32 %v1434, %v1434
    %v1507 = vsub.f32 %v1491, %v1499
    %v1508 = vsub.f32 %v1492, %v1500
    %v1509 = vsub.f32 %v1493, %v1501
    %v1510 = vsub.f32 %v1494, %v1502
    %v1511 = vsub.f32 %v1495, %v1503
    %v1512 = vsub.f32 %v1496, %v1504
    %v1513 = vsub.f32 %v1497, %v1505
    %v1514 = vsub.f32 %v1498, %v1506
    %v1515 = vmax.f32 %v1507, 0.0
    %v1516 = vmax.f32 %v1508, 0.0
    %v1517 = vmax.f32 %v1509, 0.0
    %v1518 = vmax.f32 %v1510, 0.0
    %v1519 = vmax.f32 %v1511, 0.0
    %v1520 = vmax.f32 %v1512, 0.0
    %v1521 = vmax.f32 %v1513, 0.0
    %v1522 = vmax.f32 %v1514, 0.0
    %v1523 = vadd.f32 %v1515, 1e-05
    %v1524 = vadd.f32 %v1516, 1e-05
    %v1525 = vadd.f32 %v1517, 1e-05
    %v1526 = vadd.f32 %v1518, 1e-05
    %v1527 = vadd.f32 %v1519, 1e-05
    %v1528 = vadd.f32 %v1520, 1e-05
    %v1529 = vadd.f32 %v1521, 1e-05
    %v1530 = vadd.f32 %v1522, 1e-05
    %v1531 = vrsqrt.pop %v1523
    %v1532 = vrsqrt.pop %v1524
    %v1533 = vrsqrt.pop %v1525
    %v1534 = vrsqrt.pop %v1526
    %v1535 = vrsqrt.pop %v1527
    %v1536 = vrsqrt.pop %v1528
    %v1537 = vrsqrt.pop %v1529
    %v1538 = vrsqrt.pop %v1530
    %v1547 = vcombine.low %v1531, %v1532
    %v1548 = vcombine.low %v1533, %v1534
    %v1549 = vcombine.low %v1535, %v1536
    %v1550 = vcombine.low %v1537, %v1538
    %v1552 = vunpack.c.l.s4 1966171168
    %v1553 = vunpack.c.0.s8 %v1552
    %v1554 = vlaneseq
    %v1555 = vshrl.u32 %v1554, 7
    %v1556 = vsub.s32 %v1553, %v1555
    %v1557 = vrot.slane %v1547, %v1556
    %v1559 = vunpack.c.l.s4 1966171168
    %v1560 = vunpack.c.0.s8 %v1559
    %v1561 = vlaneseq
    %v1562 = vshrl.u32 %v1561, 7
    %v1563 = vsub.s32 %v1560, %v1562
    %v1564 = vrot.slane %v1548, %v1563
    %v1566 = vunpack.c.l.s4 1966171168
    %v1567 = vunpack.c.0.s8 %v1566
    %v1568 = vlaneseq
    %v1569 = vshrl.u32 %v1568, 7
    %v1570 = vsub.s32 %v1567, %v1569
    %v1571 = vrot.slane %v1549, %v1570
    %v1573 = vunpack.c.l.s4 1966171168
    %v1574 = vunpack.c.0.s8 %v1573
    %v1575 = vlaneseq
    %v1576 = vshrl.u32 %v1575, 7
    %v1577 = vsub.s32 %v1574, %v1576
    %v1578 = vrot.slane %v1550, %v1577
    %v1579 = vcombine.low %v1557, %v1564
    %v1580 = vcombine.low %v1571, %v1578
    %v1582 = vunpack.c.l.s4 1966171168
    %v1583 = vunpack.c.0.s8 %v1582
    %v1584 = vlaneseq
    %v1585 = vshrl.u32 %v1584, 7
    %v1586 = vsub.s32 %v1583, %v1585
    %v1587 = vrot.slane %v1579, %v1586
    %v1589 = vunpack.c.l.s4 1966171168
    %v1590 = vunpack.c.0.s8 %v1589
    %v1591 = vlaneseq
    %v1592 = vshrl.u32 %v1591, 7
    %v1593 = vsub.s32 %v1590, %v1592
    %v1594 = vrot.slane %v1580, %v1593
    %v1595 = vcombine.low %v1587, %v1594
    %v1597 = vmul.f32 %v1373, %v1595
    %v1599 = vlaneseq
    %v1600 = vshrl.u32 %v1599, 7
    %v1601 = vsub.s32 0, %v1600
    %v1602 = vrot.slane %v1597, %v1601
    %v1603 = vlaneseq
    %v1604 = vshrl.u32 %v1603, 7
    %v1605 = vsub.s32 1, %v1604
    %v1606 = vrot.slane %v1597, %v1605
    %v1607 = vlaneseq
    %v1608 = vshrl.u32 %v1607, 7
    %v1609 = vsub.s32 2, %v1608
    %v1610 = vrot.slane %v1597, %v1609
    %v1611 = vlaneseq
    %v1612 = vshrl.u32 %v1611, 7
    %v1613 = vsub.s32 3, %v1612
    %v1614 = vrot.slane %v1597, %v1613
    %v1615 = vlaneseq
    %v1616 = vshrl.u32 %v1615, 7
    %v1617 = vsub.s32 4, %v1616
    %v1618 = vrot.slane %v1597, %v1617
    %v1619 = vlaneseq
    %v1620 = vshrl.u32 %v1619, 7
    %v1621 = vsub.s32 5, %v1620
    %v1622 = vrot.slane %v1597, %v1621
    %v1623 = vlaneseq
    %v1624 = vshrl.u32 %v1623, 7
    %v1625 = vsub.s32 6, %v1624
    %v1626 = vrot.slane %v1597, %v1625
    %v1627 = vlaneseq
    %v1628 = vshrl.u32 %v1627, 7
    %v1629 = vsub.s32 7, %v1628
    %v1630 = vrot.slane %v1597, %v1629
    %v1639 = vmul.f32 %v1025, %v1602
    %v1640 = vmul.f32 %v1027, %v1606
    %v1641 = vmul.f32 %v1066, %v1610
    %v1642 = vmul.f32 %v1068, %v1614
    %v1643 = vmul.f32 %v1107, %v1618
    %v1644 = vmul.f32 %v1109, %v1622
    %v1645 = vmul.f32 %v1148, %v1626
    %v1646 = vmul.f32 %v1150, %v1630
    %v1647 = vmul.f32 %v1427, %v1602
    %v1648 = vmul.f32 %v1428, %v1606
    %v1649 = vmul.f32 %v1429, %v1610
    %v1650 = vmul.f32 %v1430, %v1614
    %v1651 = vmul.f32 %v1431, %v1618
    %v1652 = vmul.f32 %v1432, %v1622
    %v1653 = vmul.f32 %v1433, %v1626
    %v1654 = vmul.f32 %v1434, %v1630
    %v1663 = vcombine.low %v1647, %v1648
    %v1664 = vcombine.low %v1649, %v1650
    %v1665 = vcombine.low %v1651, %v1652
    %v1666 = vcombine.low %v1653, %v1654
    %v1668 = vunpack.c.l.s4 1966171168
    %v1669 = vunpack.c.0.s8 %v1668
    %v1670 = vlaneseq
    %v1671 = vshrl.u32 %v1670, 7
    %v1672 = vsub.s32 %v1669, %v1671
    %v1673 = vrot.slane %v1663, %v1672
    %v1675 = vunpack.c.l.s4 1966171168
    %v1676 = vunpack.c.0.s8 %v1675
    %v1677 = vlaneseq
    %v1678 = vshrl.u32 %v1677, 7
    %v1679 = vsub.s32 %v1676, %v1678
    %v1680 = vrot.slane %v1664, %v1679
    %v1682 = vunpack.c.l.s4 1966171168
    %v1683 = vunpack.c.0.s8 %v1682
    %v1684 = vlaneseq
    %v1685 = vshrl.u32 %v1684, 7
    %v1686 = vsub.s32 %v1683, %v1685
    %v1687 = vrot.slane %v1665, %v1686
    %v1689 = vunpack.c.l.s4 1966171168
    %v1690 = vunpack.c.0.s8 %v1689
    %v1691 = vlaneseq
    %v1692 = vshrl.u32 %v1691, 7
    %v1693 = vsub.s32 %v1690, %v1692
    %v1694 = vrot.slane %v1666, %v1693
    %v1695 = vcombine.low %v1673, %v1680
    %v1696 = vcombine.low %v1687, %v1694
    %v1698 = vunpack.c.l.s4 1966171168
    %v1699 = vunpack.c.0.s8 %v1698
    %v1700 = vlaneseq
    %v1701 = vshrl.u32 %v1700, 7
    %v1702 = vsub.s32 %v1699, %v1701
    %v1703 = vrot.slane %v1695, %v1702
    %v1705 = vunpack.c.l.s4 1966171168
    %v1706 = vunpack.c.0.s8 %v1705
    %v1707 = vlaneseq
    %v1708 = vshrl.u32 %v1707, 7
    %v1709 = vsub.s32 %v1706, %v1708
    %v1710 = vrot.slane %v1696, %v1709
    %v1711 = vcombine.low %v1703, %v1710
    %v1713 = vsub.f32 %v1377, %v1711
    %v1715 = vlaneseq
    %v1716 = vshrl.u32 %v1715, 7
    %v1717 = vsub.s32 0, %v1716
    %v1718 = vrot.slane %v1713, %v1717
    %v1719 = vlaneseq
    %v1720 = vshrl.u32 %v1719, 7
    %v1721 = vsub.s32 1, %v1720
    %v1722 = vrot.slane %v1713, %v1721
    %v1723 = vlaneseq
    %v1724 = vshrl.u32 %v1723, 7
    %v1725 = vsub.s32 2, %v1724
    %v1726 = vrot.slane %v1713, %v1725
    %v1727 = vlaneseq
    %v1728 = vshrl.u32 %v1727, 7
    %v1729 = vsub.s32 3, %v1728
    %v1730 = vrot.slane %v1713, %v1729
    %v1731 = vlaneseq
    %v1732 = vshrl.u32 %v1731, 7
    %v1733 = vsub.s32 4, %v1732
    %v1734 = vrot.slane %v1713, %v1733
    %v1735 = vlaneseq
    %v1736 = vshrl.u32 %v1735, 7
    %v1737 = vsub.s32 5, %v1736
    %v1738 = vrot.slane %v1713, %v1737
    %v1739 = vlaneseq
    %v1740 = vshrl.u32 %v1739, 7
    %v1741 = vsub.s32 6, %v1740
    %v1742 = vrot.slane %v1713, %v1741
    %v1743 = vlaneseq
    %v1744 = vshrl.u32 %v1743, 7
    %v1745 = vsub.s32 7, %v1744
    %v1746 = vrot.slane %v1713, %v1745
    %v1755 = vadd.f32 %v1639, %v1718
    %v1756 = vadd.f32 %v1640, %v1722
    %v1757 = vadd.f32 %v1641, %v1726
    %v1758 = vadd.f32 %v1642, %v1730
    %v1759 = vadd.f32 %v1643, %v1734
    %v1760 = vadd.f32 %v1644, %v1738
    %v1761 = vadd.f32 %v1645, %v1742
    %v1762 = vadd.f32 %v1646, %v1746
    %v1763 = vmax.f32 %v1755, 0.0
    %v1764 = vmax.f32 %v1756, 0.0
    %v1765 = vmax.f32 %v1757, 0.0
    %v1766 = vmax.f32 %v1758, 0.0
    %v1767 = vmax.f32 %v1759, 0.0
    %v1768 = vmax.f32 %v1760, 0.0
    %v1769 = vmax.f32 %v1761, 0.0
    %v1770 = vmax.f32 %v1762, 0.0
    %s1771 = smul.u32 4, 128
    %s1772 = smul.u32 %s1771, 8
    %s1773 = sshll.u32 %s1772, 4
    %1774 = dma.done [#allocation10], %s1773
    %v1775 = vpack.c.bf16 %v1763, %v1763
    %v1776 = vpack.c.bf16 %v1764, %v1764
    %v1777 = vpack.c.bf16 %v1765, %v1765
    %v1778 = vpack.c.bf16 %v1766, %v1766
    %v1779 = vpack.c.bf16 %v1767, %v1767
    %v1780 = vpack.c.bf16 %v1768, %v1768
    %v1781 = vpack.c.bf16 %v1769, %v1769
    %v1782 = vpack.c.bf16 %v1770, %v1770
    %v1783 = vld [vmem:[#allocation2] sm:$0xff]
    %v1784 = vld [vmem:[#allocation2 + $0x8] sm:$0xff]
    %v1785 = vld [vmem:[#allocation2 + $0x10] sm:$0xff]
    %v1786 = vld [vmem:[#allocation2 + $0x18] sm:$0xff]
    %v1787 = vld [vmem:[#allocation2 + $0x20] sm:$0xff]
    %v1788 = vld [vmem:[#allocation2 + $0x28] sm:$0xff]
    %v1789 = vld [vmem:[#allocation2 + $0x30] sm:$0xff]
    %v1790 = vld [vmem:[#allocation2 + $0x38] sm:$0xff]
    %v1791 = vld [vmem:[#allocation2 + $0x40] sm:$0xff]
    %v1792 = vld [vmem:[#allocation2 + $0x48] sm:$0xff]
    %v1793 = vld [vmem:[#allocation2 + $0x50] sm:$0xff]
    %v1794 = vld [vmem:[#allocation2 + $0x58] sm:$0xff]
    %v1795 = vld [vmem:[#allocation2 + $0x60] sm:$0xff]
    %v1796 = vld [vmem:[#allocation2 + $0x68] sm:$0xff]
    %v1797 = vld [vmem:[#allocation2 + $0x70] sm:$0xff]
    %v1798 = vld [vmem:[#allocation2 + $0x78] sm:$0xff]
    %v1799 = vld [vmem:[#allocation2 + $0x80] sm:$0xff]
    %v1800 = vld [vmem:[#allocation2 + $0x88] sm:$0xff]
    %v1801 = vld [vmem:[#allocation2 + $0x90] sm:$0xff]
    %v1802 = vld [vmem:[#allocation2 + $0x98] sm:$0xff]
    %v1803 = vld [vmem:[#allocation2 + $0xa0] sm:$0xff]
    %v1804 = vld [vmem:[#allocation2 + $0xa8] sm:$0xff]
    %v1805 = vld [vmem:[#allocation2 + $0xb0] sm:$0xff]
    %v1806 = vld [vmem:[#allocation2 + $0xb8] sm:$0xff]
    %v1807 = vld [vmem:[#allocation2 + $0xc0] sm:$0xff]
    %v1808 = vld [vmem:[#allocation2 + $0xc8] sm:$0xff]
    %v1809 = vld [vmem:[#allocation2 + $0xd0] sm:$0xff]
    %v1810 = vld [vmem:[#allocation2 + $0xd8] sm:$0xff]
    %v1811 = vld [vmem:[#allocation2 + $0xe0] sm:$0xff]
    %v1812 = vld [vmem:[#allocation2 + $0xe8] sm:$0xff]
    %v1813 = vld [vmem:[#allocation2 + $0xf0] sm:$0xff]
    %v1814 = vld [vmem:[#allocation2 + $0xf8] sm:$0xff]
    %v1815 = vld [vmem:[#allocation2 + $0x100] sm:$0xff]
    %v1816 = vld [vmem:[#allocation2 + $0x108] sm:$0xff]
    %v1817 = vld [vmem:[#allocation2 + $0x110] sm:$0xff]
    %v1818 = vld [vmem:[#allocation2 + $0x118] sm:$0xff]
    %v1819 = vld [vmem:[#allocation2 + $0x120] sm:$0xff]
    %v1820 = vld [vmem:[#allocation2 + $0x128] sm:$0xff]
    %v1821 = vld [vmem:[#allocation2 + $0x130] sm:$0xff]
    %v1822 = vld [vmem:[#allocation2 + $0x138] sm:$0xff]
    %v1823 = vld [vmem:[#allocation2 + $0x140] sm:$0xff]
    %v1824 = vld [vmem:[#allocation2 + $0x148] sm:$0xff]
    %v1825 = vld [vmem:[#allocation2 + $0x150] sm:$0xff]
    %v1826 = vld [vmem:[#allocation2 + $0x158] sm:$0xff]
    %v1827 = vld [vmem:[#allocation2 + $0x160] sm:$0xff]
    %v1828 = vld [vmem:[#allocation2 + $0x168] sm:$0xff]
    %v1829 = vld [vmem:[#allocation2 + $0x170] sm:$0xff]
    %v1830 = vld [vmem:[#allocation2 + $0x178] sm:$0xff]
    %v1831 = vld [vmem:[#allocation2 + $0x180] sm:$0xff]
    %v1832 = vld [vmem:[#allocation2 + $0x188] sm:$0xff]
    %v1833 = vld [vmem:[#allocation2 + $0x190] sm:$0xff]
    %v1834 = vld [vmem:[#allocation2 + $0x198] sm:$0xff]
    %v1835 = vld [vmem:[#allocation2 + $0x1a0] sm:$0xff]
    %v1836 = vld [vmem:[#allocation2 + $0x1a8] sm:$0xff]
    %v1837 = vld [vmem:[#allocation2 + $0x1b0] sm:$0xff]
    %v1838 = vld [vmem:[#allocation2 + $0x1b8] sm:$0xff]
    %v1839 = vld [vmem:[#allocation2 + $0x1c0] sm:$0xff]
    %v1840 = vld [vmem:[#allocation2 + $0x1c8] sm:$0xff]
    %v1841 = vld [vmem:[#allocation2 + $0x1d0] sm:$0xff]
    %v1842 = vld [vmem:[#allocation2 + $0x1d8] sm:$0xff]
    %v1843 = vld [vmem:[#allocation2 + $0x1e0] sm:$0xff]
    %v1844 = vld [vmem:[#allocation2 + $0x1e8] sm:$0xff]
    %v1845 = vld [vmem:[#allocation2 + $0x1f0] sm:$0xff]
    %v1846 = vld [vmem:[#allocation2 + $0x1f8] sm:$0xff]
    %v1847 = vld [vmem:[#allocation2 + $0x200] sm:$0xff]
    %v1848 = vld [vmem:[#allocation2 + $0x208] sm:$0xff]
    %v1849 = vld [vmem:[#allocation2 + $0x210] sm:$0xff]
    %v1850 = vld [vmem:[#allocation2 + $0x218] sm:$0xff]
    %v1851 = vld [vmem:[#allocation2 + $0x220] sm:$0xff]
    %v1852 = vld [vmem:[#allocation2 + $0x228] sm:$0xff]
    %v1853 = vld [vmem:[#allocation2 + $0x230] sm:$0xff]
    %v1854 = vld [vmem:[#allocation2 + $0x238] sm:$0xff]
    %v1855 = vld [vmem:[#allocation2 + $0x240] sm:$0xff]
    %v1856 = vld [vmem:[#allocation2 + $0x248] sm:$0xff]
    %v1857 = vld [vmem:[#allocation2 + $0x250] sm:$0xff]
    %v1858 = vld [vmem:[#allocation2 + $0x258] sm:$0xff]
    %v1859 = vld [vmem:[#allocation2 + $0x260] sm:$0xff]
    %v1860 = vld [vmem:[#allocation2 + $0x268] sm:$0xff]
    %v1861 = vld [vmem:[#allocation2 + $0x270] sm:$0xff]
    %v1862 = vld [vmem:[#allocation2 + $0x278] sm:$0xff]
    %v1863 = vld [vmem:[#allocation2 + $0x280] sm:$0xff]
    %v1864 = vld [vmem:[#allocation2 + $0x288] sm:$0xff]
    %v1865 = vld [vmem:[#allocation2 + $0x290] sm:$0xff]
    %v1866 = vld [vmem:[#allocation2 + $0x298] sm:$0xff]
    %v1867 = vld [vmem:[#allocation2 + $0x2a0] sm:$0xff]
    %v1868 = vld [vmem:[#allocation2 + $0x2a8] sm:$0xff]
    %v1869 = vld [vmem:[#allocation2 + $0x2b0] sm:$0xff]
    %v1870 = vld [vmem:[#allocation2 + $0x2b8] sm:$0xff]
    %v1871 = vld [vmem:[#allocation2 + $0x2c0] sm:$0xff]
    %v1872 = vld [vmem:[#allocation2 + $0x2c8] sm:$0xff]
    %v1873 = vld [vmem:[#allocation2 + $0x2d0] sm:$0xff]
    %v1874 = vld [vmem:[#allocation2 + $0x2d8] sm:$0xff]
    %v1875 = vld [vmem:[#allocation2 + $0x2e0] sm:$0xff]
    %v1876 = vld [vmem:[#allocation2 + $0x2e8] sm:$0xff]
    %v1877 = vld [vmem:[#allocation2 + $0x2f0] sm:$0xff]
    %v1878 = vld [vmem:[#allocation2 + $0x2f8] sm:$0xff]
    %v1879 = vld [vmem:[#allocation2 + $0x300] sm:$0xff]
    %v1880 = vld [vmem:[#allocation2 + $0x308] sm:$0xff]
    %v1881 = vld [vmem:[#allocation2 + $0x310] sm:$0xff]
    %v1882 = vld [vmem:[#allocation2 + $0x318] sm:$0xff]
    %v1883 = vld [vmem:[#allocation2 + $0x320] sm:$0xff]
    %v1884 = vld [vmem:[#allocation2 + $0x328] sm:$0xff]
    %v1885 = vld [vmem:[#allocation2 + $0x330] sm:$0xff]
    %v1886 = vld [vmem:[#allocation2 + $0x338] sm:$0xff]
    %v1887 = vld [vmem:[#allocation2 + $0x340] sm:$0xff]
    %v1888 = vld [vmem:[#allocation2 + $0x348] sm:$0xff]
    %v1889 = vld [vmem:[#allocation2 + $0x350] sm:$0xff]
    %v1890 = vld [vmem:[#allocation2 + $0x358] sm:$0xff]
    %v1891 = vld [vmem:[#allocation2 + $0x360] sm:$0xff]
    %v1892 = vld [vmem:[#allocation2 + $0x368] sm:$0xff]
    %v1893 = vld [vmem:[#allocation2 + $0x370] sm:$0xff]
    %v1894 = vld [vmem:[#allocation2 + $0x378] sm:$0xff]
    %v1895 = vld [vmem:[#allocation2 + $0x380] sm:$0xff]
    %v1896 = vld [vmem:[#allocation2 + $0x388] sm:$0xff]
    %v1897 = vld [vmem:[#allocation2 + $0x390] sm:$0xff]
    %v1898 = vld [vmem:[#allocation2 + $0x398] sm:$0xff]
    %v1899 = vld [vmem:[#allocation2 + $0x3a0] sm:$0xff]
    %v1900 = vld [vmem:[#allocation2 + $0x3a8] sm:$0xff]
    %v1901 = vld [vmem:[#allocation2 + $0x3b0] sm:$0xff]
    %v1902 = vld [vmem:[#allocation2 + $0x3b8] sm:$0xff]
    %v1903 = vld [vmem:[#allocation2 + $0x3c0] sm:$0xff]
    %v1904 = vld [vmem:[#allocation2 + $0x3c8] sm:$0xff]
    %v1905 = vld [vmem:[#allocation2 + $0x3d0] sm:$0xff]
    %v1906 = vld [vmem:[#allocation2 + $0x3d8] sm:$0xff]
    %v1907 = vld [vmem:[#allocation2 + $0x3e0] sm:$0xff]
    %v1908 = vld [vmem:[#allocation2 + $0x3e8] sm:$0xff]
    %v1909 = vld [vmem:[#allocation2 + $0x3f0] sm:$0xff]
    %v1910 = vld [vmem:[#allocation2 + $0x3f8] sm:$0xff]
    %v1911 = vld [vmem:[#allocation2 + $0x400] sm:$0xff]
    %v1912 = vld [vmem:[#allocation2 + $0x408] sm:$0xff]
    %v1913 = vld [vmem:[#allocation2 + $0x410] sm:$0xff]
    %v1914 = vld [vmem:[#allocation2 + $0x418] sm:$0xff]
    %v1915 = vld [vmem:[#allocation2 + $0x420] sm:$0xff]
    %v1916 = vld [vmem:[#allocation2 + $0x428] sm:$0xff]
    %v1917 = vld [vmem:[#allocation2 + $0x430] sm:$0xff]
    %v1918 = vld [vmem:[#allocation2 + $0x438] sm:$0xff]
    %v1919 = vld [vmem:[#allocation2 + $0x440] sm:$0xff]
    %v1920 = vld [vmem:[#allocation2 + $0x448] sm:$0xff]
    %v1921 = vld [vmem:[#allocation2 + $0x450] sm:$0xff]
    %v1922 = vld [vmem:[#allocation2 + $0x458] sm:$0xff]
    %v1923 = vld [vmem:[#allocation2 + $0x460] sm:$0xff]
    %v1924 = vld [vmem:[#allocation2 + $0x468] sm:$0xff]
    %v1925 = vld [vmem:[#allocation2 + $0x470] sm:$0xff]
    %v1926 = vld [vmem:[#allocation2 + $0x478] sm:$0xff]
    %v1927 = vld [vmem:[#allocation2 + $0x480] sm:$0xff]
    %v1928 = vld [vmem:[#allocation2 + $0x488] sm:$0xff]
    %v1929 = vld [vmem:[#allocation2 + $0x490] sm:$0xff]
    %v1930 = vld [vmem:[#allocation2 + $0x498] sm:$0xff]
    %v1931 = vld [vmem:[#allocation2 + $0x4a0] sm:$0xff]
    %v1932 = vld [vmem:[#allocation2 + $0x4a8] sm:$0xff]
    %v1933 = vld [vmem:[#allocation2 + $0x4b0] sm:$0xff]
    %v1934 = vld [vmem:[#allocation2 + $0x4b8] sm:$0xff]
    %v1935 = vld [vmem:[#allocation2 + $0x4c0] sm:$0xff]
    %v1936 = vld [vmem:[#allocation2 + $0x4c8] sm:$0xff]
    %v1937 = vld [vmem:[#allocation2 + $0x4d0] sm:$0xff]
    %v1938 = vld [vmem:[#allocation2 + $0x4d8] sm:$0xff]
    %v1939 = vld [vmem:[#allocation2 + $0x4e0] sm:$0xff]
    %v1940 = vld [vmem:[#allocation2 + $0x4e8] sm:$0xff]
    %v1941 = vld [vmem:[#allocation2 + $0x4f0] sm:$0xff]
    %v1942 = vld [vmem:[#allocation2 + $0x4f8] sm:$0xff]
    %v1943 = vld [vmem:[#allocation2 + $0x500] sm:$0xff]
    %v1944 = vld [vmem:[#allocation2 + $0x508] sm:$0xff]
    %v1945 = vld [vmem:[#allocation2 + $0x510] sm:$0xff]
    %v1946 = vld [vmem:[#allocation2 + $0x518] sm:$0xff]
    %v1947 = vld [vmem:[#allocation2 + $0x520] sm:$0xff]
    %v1948 = vld [vmem:[#allocation2 + $0x528] sm:$0xff]
    %v1949 = vld [vmem:[#allocation2 + $0x530] sm:$0xff]
    %v1950 = vld [vmem:[#allocation2 + $0x538] sm:$0xff]
    %v1951 = vld [vmem:[#allocation2 + $0x540] sm:$0xff]
    %v1952 = vld [vmem:[#allocation2 + $0x548] sm:$0xff]
    %v1953 = vld [vmem:[#allocation2 + $0x550] sm:$0xff]
    %v1954 = vld [vmem:[#allocation2 + $0x558] sm:$0xff]
    %v1955 = vld [vmem:[#allocation2 + $0x560] sm:$0xff]
    %v1956 = vld [vmem:[#allocation2 + $0x568] sm:$0xff]
    %v1957 = vld [vmem:[#allocation2 + $0x570] sm:$0xff]
    %v1958 = vld [vmem:[#allocation2 + $0x578] sm:$0xff]
    %v1959 = vld [vmem:[#allocation2 + $0x580] sm:$0xff]
    %v1960 = vld [vmem:[#allocation2 + $0x588] sm:$0xff]
    %v1961 = vld [vmem:[#allocation2 + $0x590] sm:$0xff]
    %v1962 = vld [vmem:[#allocation2 + $0x598] sm:$0xff]
    %v1963 = vld [vmem:[#allocation2 + $0x5a0] sm:$0xff]
    %v1964 = vld [vmem:[#allocation2 + $0x5a8] sm:$0xff]
    %v1965 = vld [vmem:[#allocation2 + $0x5b0] sm:$0xff]
    %v1966 = vld [vmem:[#allocation2 + $0x5b8] sm:$0xff]
    %v1967 = vld [vmem:[#allocation2 + $0x5c0] sm:$0xff]
    %v1968 = vld [vmem:[#allocation2 + $0x5c8] sm:$0xff]
    %v1969 = vld [vmem:[#allocation2 + $0x5d0] sm:$0xff]
    %v1970 = vld [vmem:[#allocation2 + $0x5d8] sm:$0xff]
    %v1971 = vld [vmem:[#allocation2 + $0x5e0] sm:$0xff]
    %v1972 = vld [vmem:[#allocation2 + $0x5e8] sm:$0xff]
    %v1973 = vld [vmem:[#allocation2 + $0x5f0] sm:$0xff]
    %v1974 = vld [vmem:[#allocation2 + $0x5f8] sm:$0xff]
    %v1975 = vld [vmem:[#allocation2 + $0x600] sm:$0xff]
    %v1976 = vld [vmem:[#allocation2 + $0x608] sm:$0xff]
    %v1977 = vld [vmem:[#allocation2 + $0x610] sm:$0xff]
    %v1978 = vld [vmem:[#allocation2 + $0x618] sm:$0xff]
    %v1979 = vld [vmem:[#allocation2 + $0x620] sm:$0xff]
    %v1980 = vld [vmem:[#allocation2 + $0x628] sm:$0xff]
    %v1981 = vld [vmem:[#allocation2 + $0x630] sm:$0xff]
    %v1982 = vld [vmem:[#allocation2 + $0x638] sm:$0xff]
    %v1983 = vld [vmem:[#allocation2 + $0x640] sm:$0xff]
    %v1984 = vld [vmem:[#allocation2 + $0x648] sm:$0xff]
    %v1985 = vld [vmem:[#allocation2 + $0x650] sm:$0xff]
    %v1986 = vld [vmem:[#allocation2 + $0x658] sm:$0xff]
    %v1987 = vld [vmem:[#allocation2 + $0x660] sm:$0xff]
    %v1988 = vld [vmem:[#allocation2 + $0x668] sm:$0xff]
    %v1989 = vld [vmem:[#allocation2 + $0x670] sm:$0xff]
    %v1990 = vld [vmem:[#allocation2 + $0x678] sm:$0xff]
    %v1991 = vld [vmem:[#allocation2 + $0x680] sm:$0xff]
    %v1992 = vld [vmem:[#allocation2 + $0x688] sm:$0xff]
    %v1993 = vld [vmem:[#allocation2 + $0x690] sm:$0xff]
    %v1994 = vld [vmem:[#allocation2 + $0x698] sm:$0xff]
    %v1995 = vld [vmem:[#allocation2 + $0x6a0] sm:$0xff]
    %v1996 = vld [vmem:[#allocation2 + $0x6a8] sm:$0xff]
    %v1997 = vld [vmem:[#allocation2 + $0x6b0] sm:$0xff]
    %v1998 = vld [vmem:[#allocation2 + $0x6b8] sm:$0xff]
    %v1999 = vld [vmem:[#allocation2 + $0x6c0] sm:$0xff]
    %v2000 = vld [vmem:[#allocation2 + $0x6c8] sm:$0xff]
    %v2001 = vld [vmem:[#allocation2 + $0x6d0] sm:$0xff]
    %v2002 = vld [vmem:[#allocation2 + $0x6d8] sm:$0xff]
    %v2003 = vld [vmem:[#allocation2 + $0x6e0] sm:$0xff]
    %v2004 = vld [vmem:[#allocation2 + $0x6e8] sm:$0xff]
    %v2005 = vld [vmem:[#allocation2 + $0x6f0] sm:$0xff]
    %v2006 = vld [vmem:[#allocation2 + $0x6f8] sm:$0xff]
    %v2007 = vld [vmem:[#allocation2 + $0x700] sm:$0xff]
    %v2008 = vld [vmem:[#allocation2 + $0x708] sm:$0xff]
    %v2009 = vld [vmem:[#allocation2 + $0x710] sm:$0xff]
    %v2010 = vld [vmem:[#allocation2 + $0x718] sm:$0xff]
    %v2011 = vld [vmem:[#allocation2 + $0x720] sm:$0xff]
    %v2012 = vld [vmem:[#allocation2 + $0x728] sm:$0xff]
    %v2013 = vld [vmem:[#allocation2 + $0x730] sm:$0xff]
    %v2014 = vld [vmem:[#allocation2 + $0x738] sm:$0xff]
    %v2015 = vld [vmem:[#allocation2 + $0x740] sm:$0xff]
    %v2016 = vld [vmem:[#allocation2 + $0x748] sm:$0xff]
    %v2017 = vld [vmem:[#allocation2 + $0x750] sm:$0xff]
    %v2018 = vld [vmem:[#allocation2 + $0x758] sm:$0xff]
    %v2019 = vld [vmem:[#allocation2 + $0x760] sm:$0xff]
    %v2020 = vld [vmem:[#allocation2 + $0x768] sm:$0xff]
    %v2021 = vld [vmem:[#allocation2 + $0x770] sm:$0xff]
    %v2022 = vld [vmem:[#allocation2 + $0x778] sm:$0xff]
    %v2023 = vld [vmem:[#allocation2 + $0x780] sm:$0xff]
    %v2024 = vld [vmem:[#allocation2 + $0x788] sm:$0xff]
    %v2025 = vld [vmem:[#allocation2 + $0x790] sm:$0xff]
    %v2026 = vld [vmem:[#allocation2 + $0x798] sm:$0xff]
    %v2027 = vld [vmem:[#allocation2 + $0x7a0] sm:$0xff]
    %v2028 = vld [vmem:[#allocation2 + $0x7a8] sm:$0xff]
    %v2029 = vld [vmem:[#allocation2 + $0x7b0] sm:$0xff]
    %v2030 = vld [vmem:[#allocation2 + $0x7b8] sm:$0xff]
    %v2031 = vld [vmem:[#allocation2 + $0x7c0] sm:$0xff]
    %v2032 = vld [vmem:[#allocation2 + $0x7c8] sm:$0xff]
    %v2033 = vld [vmem:[#allocation2 + $0x7d0] sm:$0xff]
    %v2034 = vld [vmem:[#allocation2 + $0x7d8] sm:$0xff]
    %v2035 = vld [vmem:[#allocation2 + $0x7e0] sm:$0xff]
    %v2036 = vld [vmem:[#allocation2 + $0x7e8] sm:$0xff]
    %v2037 = vld [vmem:[#allocation2 + $0x7f0] sm:$0xff]
    %v2038 = vld [vmem:[#allocation2 + $0x7f8] sm:$0xff]
    %v2039 = vld [vmem:[#allocation2 + $0x800] sm:$0xff]
    %v2040 = vld [vmem:[#allocation2 + $0x808] sm:$0xff]
    %v2041 = vld [vmem:[#allocation2 + $0x810] sm:$0xff]
    %v2042 = vld [vmem:[#allocation2 + $0x818] sm:$0xff]
    %v2043 = vld [vmem:[#allocation2 + $0x820] sm:$0xff]
    %v2044 = vld [vmem:[#allocation2 + $0x828] sm:$0xff]
    %v2045 = vld [vmem:[#allocation2 + $0x830] sm:$0xff]
    %v2046 = vld [vmem:[#allocation2 + $0x838] sm:$0xff]
    %v2047 = vld [vmem:[#allocation2 + $0x840] sm:$0xff]
    %v2048 = vld [vmem:[#allocation2 + $0x848] sm:$0xff]
    %v2049 = vld [vmem:[#allocation2 + $0x850] sm:$0xff]
    %v2050 = vld [vmem:[#allocation2 + $0x858] sm:$0xff]
    %v2051 = vld [vmem:[#allocation2 + $0x860] sm:$0xff]
    %v2052 = vld [vmem:[#allocation2 + $0x868] sm:$0xff]
    %v2053 = vld [vmem:[#allocation2 + $0x870] sm:$0xff]
    %v2054 = vld [vmem:[#allocation2 + $0x878] sm:$0xff]
    %v2055 = vld [vmem:[#allocation2 + $0x880] sm:$0xff]
    %v2056 = vld [vmem:[#allocation2 + $0x888] sm:$0xff]
    %v2057 = vld [vmem:[#allocation2 + $0x890] sm:$0xff]
    %v2058 = vld [vmem:[#allocation2 + $0x898] sm:$0xff]
    %v2059 = vld [vmem:[#allocation2 + $0x8a0] sm:$0xff]
    %v2060 = vld [vmem:[#allocation2 + $0x8a8] sm:$0xff]
    %v2061 = vld [vmem:[#allocation2 + $0x8b0] sm:$0xff]
    %v2062 = vld [vmem:[#allocation2 + $0x8b8] sm:$0xff]
    %v2063 = vld [vmem:[#allocation2 + $0x8c0] sm:$0xff]
    %v2064 = vld [vmem:[#allocation2 + $0x8c8] sm:$0xff]
    %v2065 = vld [vmem:[#allocation2 + $0x8d0] sm:$0xff]
    %v2066 = vld [vmem:[#allocation2 + $0x8d8] sm:$0xff]
    %v2067 = vld [vmem:[#allocation2 + $0x8e0] sm:$0xff]
    %v2068 = vld [vmem:[#allocation2 + $0x8e8] sm:$0xff]
    %v2069 = vld [vmem:[#allocation2 + $0x8f0] sm:$0xff]
    %v2070 = vld [vmem:[#allocation2 + $0x8f8] sm:$0xff]
    %v2071 = vld [vmem:[#allocation2 + $0x900] sm:$0xff]
    %v2072 = vld [vmem:[#allocation2 + $0x908] sm:$0xff]
    %v2073 = vld [vmem:[#allocation2 + $0x910] sm:$0xff]
    %v2074 = vld [vmem:[#allocation2 + $0x918] sm:$0xff]
    %v2075 = vld [vmem:[#allocation2 + $0x920] sm:$0xff]
    %v2076 = vld [vmem:[#allocation2 + $0x928] sm:$0xff]
    %v2077 = vld [vmem:[#allocation2 + $0x930] sm:$0xff]
    %v2078 = vld [vmem:[#allocation2 + $0x938] sm:$0xff]
    %v2079 = vld [vmem:[#allocation2 + $0x940] sm:$0xff]
    %v2080 = vld [vmem:[#allocation2 + $0x948] sm:$0xff]
    %v2081 = vld [vmem:[#allocation2 + $0x950] sm:$0xff]
    %v2082 = vld [vmem:[#allocation2 + $0x958] sm:$0xff]
    %v2083 = vld [vmem:[#allocation2 + $0x960] sm:$0xff]
    %v2084 = vld [vmem:[#allocation2 + $0x968] sm:$0xff]
    %v2085 = vld [vmem:[#allocation2 + $0x970] sm:$0xff]
    %v2086 = vld [vmem:[#allocation2 + $0x978] sm:$0xff]
    %v2087 = vld [vmem:[#allocation2 + $0x980] sm:$0xff]
    %v2088 = vld [vmem:[#allocation2 + $0x988] sm:$0xff]
    %v2089 = vld [vmem:[#allocation2 + $0x990] sm:$0xff]
    %v2090 = vld [vmem:[#allocation2 + $0x998] sm:$0xff]
    %v2091 = vld [vmem:[#allocation2 + $0x9a0] sm:$0xff]
    %v2092 = vld [vmem:[#allocation2 + $0x9a8] sm:$0xff]
    %v2093 = vld [vmem:[#allocation2 + $0x9b0] sm:$0xff]
    %v2094 = vld [vmem:[#allocation2 + $0x9b8] sm:$0xff]
    %v2095 = vld [vmem:[#allocation2 + $0x9c0] sm:$0xff]
    %v2096 = vld [vmem:[#allocation2 + $0x9c8] sm:$0xff]
    %v2097 = vld [vmem:[#allocation2 + $0x9d0] sm:$0xff]
    %v2098 = vld [vmem:[#allocation2 + $0x9d8] sm:$0xff]
    %v2099 = vld [vmem:[#allocation2 + $0x9e0] sm:$0xff]
    %v2100 = vld [vmem:[#allocation2 + $0x9e8] sm:$0xff]
    %v2101 = vld [vmem:[#allocation2 + $0x9f0] sm:$0xff]
    %v2102 = vld [vmem:[#allocation2 + $0x9f8] sm:$0xff]
    %v2103 = vld [vmem:[#allocation2 + $0xa00] sm:$0xff]
    %v2104 = vld [vmem:[#allocation2 + $0xa08] sm:$0xff]
    %v2105 = vld [vmem:[#allocation2 + $0xa10] sm:$0xff]
    %v2106 = vld [vmem:[#allocation2 + $0xa18] sm:$0xff]
    %v2107 = vld [vmem:[#allocation2 + $0xa20] sm:$0xff]
    %v2108 = vld [vmem:[#allocation2 + $0xa28] sm:$0xff]
    %v2109 = vld [vmem:[#allocation2 + $0xa30] sm:$0xff]
    %v2110 = vld [vmem:[#allocation2 + $0xa38] sm:$0xff]
    %v2111 = vld [vmem:[#allocation2 + $0xa40] sm:$0xff]
    %v2112 = vld [vmem:[#allocation2 + $0xa48] sm:$0xff]
    %v2113 = vld [vmem:[#allocation2 + $0xa50] sm:$0xff]
    %v2114 = vld [vmem:[#allocation2 + $0xa58] sm:$0xff]
    %v2115 = vld [vmem:[#allocation2 + $0xa60] sm:$0xff]
    %v2116 = vld [vmem:[#allocation2 + $0xa68] sm:$0xff]
    %v2117 = vld [vmem:[#allocation2 + $0xa70] sm:$0xff]
    %v2118 = vld [vmem:[#allocation2 + $0xa78] sm:$0xff]
    %v2119 = vld [vmem:[#allocation2 + $0xa80] sm:$0xff]
    %v2120 = vld [vmem:[#allocation2 + $0xa88] sm:$0xff]
    %v2121 = vld [vmem:[#allocation2 + $0xa90] sm:$0xff]
    %v2122 = vld [vmem:[#allocation2 + $0xa98] sm:$0xff]
    %v2123 = vld [vmem:[#allocation2 + $0xaa0] sm:$0xff]
    %v2124 = vld [vmem:[#allocation2 + $0xaa8] sm:$0xff]
    %v2125 = vld [vmem:[#allocation2 + $0xab0] sm:$0xff]
    %v2126 = vld [vmem:[#allocation2 + $0xab8] sm:$0xff]
    %v2127 = vld [vmem:[#allocation2 + $0xac0] sm:$0xff]
    %v2128 = vld [vmem:[#allocation2 + $0xac8] sm:$0xff]
    %v2129 = vld [vmem:[#allocation2 + $0xad0] sm:$0xff]
    %v2130 = vld [vmem:[#allocation2 + $0xad8] sm:$0xff]
    %v2131 = vld [vmem:[#allocation2 + $0xae0] sm:$0xff]
    %v2132 = vld [vmem:[#allocation2 + $0xae8] sm:$0xff]
    %v2133 = vld [vmem:[#allocation2 + $0xaf0] sm:$0xff]
    %v2134 = vld [vmem:[#allocation2 + $0xaf8] sm:$0xff]
    %v2135 = vld [vmem:[#allocation2 + $0xb00] sm:$0xff]
    %v2136 = vld [vmem:[#allocation2 + $0xb08] sm:$0xff]
    %v2137 = vld [vmem:[#allocation2 + $0xb10] sm:$0xff]
    %v2138 = vld [vmem:[#allocation2 + $0xb18] sm:$0xff]
    %v2139 = vld [vmem:[#allocation2 + $0xb20] sm:$0xff]
    %v2140 = vld [vmem:[#allocation2 + $0xb28] sm:$0xff]
    %v2141 = vld [vmem:[#allocation2 + $0xb30] sm:$0xff]
    %v2142 = vld [vmem:[#allocation2 + $0xb38] sm:$0xff]
    %v2143 = vld [vmem:[#allocation2 + $0xb40] sm:$0xff]
    %v2144 = vld [vmem:[#allocation2 + $0xb48] sm:$0xff]
    %v2145 = vld [vmem:[#allocation2 + $0xb50] sm:$0xff]
    %v2146 = vld [vmem:[#allocation2 + $0xb58] sm:$0xff]
    %v2147 = vld [vmem:[#allocation2 + $0xb60] sm:$0xff]
    %v2148 = vld [vmem:[#allocation2 + $0xb68] sm:$0xff]
    %v2149 = vld [vmem:[#allocation2 + $0xb70] sm:$0xff]
    %v2150 = vld [vmem:[#allocation2 + $0xb78] sm:$0xff]
    %v2151 = vld [vmem:[#allocation2 + $0xb80] sm:$0xff]
    %v2152 = vld [vmem:[#allocation2 + $0xb88] sm:$0xff]
    %v2153 = vld [vmem:[#allocation2 + $0xb90] sm:$0xff]
    %v2154 = vld [vmem:[#allocation2 + $0xb98] sm:$0xff]
    %v2155 = vld [vmem:[#allocation2 + $0xba0] sm:$0xff]
    %v2156 = vld [vmem:[#allocation2 + $0xba8] sm:$0xff]
    %v2157 = vld [vmem:[#allocation2 + $0xbb0] sm:$0xff]
    %v2158 = vld [vmem:[#allocation2 + $0xbb8] sm:$0xff]
    %v2159 = vld [vmem:[#allocation2 + $0xbc0] sm:$0xff]
    %v2160 = vld [vmem:[#allocation2 + $0xbc8] sm:$0xff]
    %v2161 = vld [vmem:[#allocation2 + $0xbd0] sm:$0xff]
    %v2162 = vld [vmem:[#allocation2 + $0xbd8] sm:$0xff]
    %v2163 = vld [vmem:[#allocation2 + $0xbe0] sm:$0xff]
    %v2164 = vld [vmem:[#allocation2 + $0xbe8] sm:$0xff]
    %v2165 = vld [vmem:[#allocation2 + $0xbf0] sm:$0xff]
    %v2166 = vld [vmem:[#allocation2 + $0xbf8] sm:$0xff]
    %v2167 = vld [vmem:[#allocation2 + $0xc00] sm:$0xff]
    %v2168 = vld [vmem:[#allocation2 + $0xc08] sm:$0xff]
    %v2169 = vld [vmem:[#allocation2 + $0xc10] sm:$0xff]
    %v2170 = vld [vmem:[#allocation2 + $0xc18] sm:$0xff]
    %v2171 = vld [vmem:[#allocation2 + $0xc20] sm:$0xff]
    %v2172 = vld [vmem:[#allocation2 + $0xc28] sm:$0xff]
    %v2173 = vld [vmem:[#allocation2 + $0xc30] sm:$0xff]
    %v2174 = vld [vmem:[#allocation2 + $0xc38] sm:$0xff]
    %v2175 = vld [vmem:[#allocation2 + $0xc40] sm:$0xff]
    %v2176 = vld [vmem:[#allocation2 + $0xc48] sm:$0xff]
    %v2177 = vld [vmem:[#allocation2 + $0xc50] sm:$0xff]
    %v2178 = vld [vmem:[#allocation2 + $0xc58] sm:$0xff]
    %v2179 = vld [vmem:[#allocation2 + $0xc60] sm:$0xff]
    %v2180 = vld [vmem:[#allocation2 + $0xc68] sm:$0xff]
    %v2181 = vld [vmem:[#allocation2 + $0xc70] sm:$0xff]
    %v2182 = vld [vmem:[#allocation2 + $0xc78] sm:$0xff]
    %v2183 = vld [vmem:[#allocation2 + $0xc80] sm:$0xff]
    %v2184 = vld [vmem:[#allocation2 + $0xc88] sm:$0xff]
    %v2185 = vld [vmem:[#allocation2 + $0xc90] sm:$0xff]
    %v2186 = vld [vmem:[#allocation2 + $0xc98] sm:$0xff]
    %v2187 = vld [vmem:[#allocation2 + $0xca0] sm:$0xff]
    %v2188 = vld [vmem:[#allocation2 + $0xca8] sm:$0xff]
    %v2189 = vld [vmem:[#allocation2 + $0xcb0] sm:$0xff]
    %v2190 = vld [vmem:[#allocation2 + $0xcb8] sm:$0xff]
    %v2191 = vld [vmem:[#allocation2 + $0xcc0] sm:$0xff]
    %v2192 = vld [vmem:[#allocation2 + $0xcc8] sm:$0xff]
    %v2193 = vld [vmem:[#allocation2 + $0xcd0] sm:$0xff]
    %v2194 = vld [vmem:[#allocation2 + $0xcd8] sm:$0xff]
    %v2195 = vld [vmem:[#allocation2 + $0xce0] sm:$0xff]
    %v2196 = vld [vmem:[#allocation2 + $0xce8] sm:$0xff]
    %v2197 = vld [vmem:[#allocation2 + $0xcf0] sm:$0xff]
    %v2198 = vld [vmem:[#allocation2 + $0xcf8] sm:$0xff]
    %v2199 = vld [vmem:[#allocation2 + $0xd00] sm:$0xff]
    %v2200 = vld [vmem:[#allocation2 + $0xd08] sm:$0xff]
    %v2201 = vld [vmem:[#allocation2 + $0xd10] sm:$0xff]
    %v2202 = vld [vmem:[#allocation2 + $0xd18] sm:$0xff]
    %v2203 = vld [vmem:[#allocation2 + $0xd20] sm:$0xff]
    %v2204 = vld [vmem:[#allocation2 + $0xd28] sm:$0xff]
    %v2205 = vld [vmem:[#allocation2 + $0xd30] sm:$0xff]
    %v2206 = vld [vmem:[#allocation2 + $0xd38] sm:$0xff]
    %v2207 = vld [vmem:[#allocation2 + $0xd40] sm:$0xff]
    %v2208 = vld [vmem:[#allocation2 + $0xd48] sm:$0xff]
    %v2209 = vld [vmem:[#allocation2 + $0xd50] sm:$0xff]
    %v2210 = vld [vmem:[#allocation2 + $0xd58] sm:$0xff]
    %v2211 = vld [vmem:[#allocation2 + $0xd60] sm:$0xff]
    %v2212 = vld [vmem:[#allocation2 + $0xd68] sm:$0xff]
    %v2213 = vld [vmem:[#allocation2 + $0xd70] sm:$0xff]
    %v2214 = vld [vmem:[#allocation2 + $0xd78] sm:$0xff]
    %v2215 = vld [vmem:[#allocation2 + $0xd80] sm:$0xff]
    %v2216 = vld [vmem:[#allocation2 + $0xd88] sm:$0xff]
    %v2217 = vld [vmem:[#allocation2 + $0xd90] sm:$0xff]
    %v2218 = vld [vmem:[#allocation2 + $0xd98] sm:$0xff]
    %v2219 = vld [vmem:[#allocation2 + $0xda0] sm:$0xff]
    %v2220 = vld [vmem:[#allocation2 + $0xda8] sm:$0xff]
    %v2221 = vld [vmem:[#allocation2 + $0xdb0] sm:$0xff]
    %v2222 = vld [vmem:[#allocation2 + $0xdb8] sm:$0xff]
    %v2223 = vld [vmem:[#allocation2 + $0xdc0] sm:$0xff]
    %v2224 = vld [vmem:[#allocation2 + $0xdc8] sm:$0xff]
    %v2225 = vld [vmem:[#allocation2 + $0xdd0] sm:$0xff]
    %v2226 = vld [vmem:[#allocation2 + $0xdd8] sm:$0xff]
    %v2227 = vld [vmem:[#allocation2 + $0xde0] sm:$0xff]
    %v2228 = vld [vmem:[#allocation2 + $0xde8] sm:$0xff]
    %v2229 = vld [vmem:[#allocation2 + $0xdf0] sm:$0xff]
    %v2230 = vld [vmem:[#allocation2 + $0xdf8] sm:$0xff]
    %v2231 = vld [vmem:[#allocation2 + $0xe00] sm:$0xff]
    %v2232 = vld [vmem:[#allocation2 + $0xe08] sm:$0xff]
    %v2233 = vld [vmem:[#allocation2 + $0xe10] sm:$0xff]
    %v2234 = vld [vmem:[#allocation2 + $0xe18] sm:$0xff]
    %v2235 = vld [vmem:[#allocation2 + $0xe20] sm:$0xff]
    %v2236 = vld [vmem:[#allocation2 + $0xe28] sm:$0xff]
    %v2237 = vld [vmem:[#allocation2 + $0xe30] sm:$0xff]
    %v2238 = vld [vmem:[#allocation2 + $0xe38] sm:$0xff]
    %v2239 = vld [vmem:[#allocation2 + $0xe40] sm:$0xff]
    %v2240 = vld [vmem:[#allocation2 + $0xe48] sm:$0xff]
    %v2241 = vld [vmem:[#allocation2 + $0xe50] sm:$0xff]
    %v2242 = vld [vmem:[#allocation2 + $0xe58] sm:$0xff]
    %v2243 = vld [vmem:[#allocation2 + $0xe60] sm:$0xff]
    %v2244 = vld [vmem:[#allocation2 + $0xe68] sm:$0xff]
    %v2245 = vld [vmem:[#allocation2 + $0xe70] sm:$0xff]
    %v2246 = vld [vmem:[#allocation2 + $0xe78] sm:$0xff]
    %v2247 = vld [vmem:[#allocation2 + $0xe80] sm:$0xff]
    %v2248 = vld [vmem:[#allocation2 + $0xe88] sm:$0xff]
    %v2249 = vld [vmem:[#allocation2 + $0xe90] sm:$0xff]
    %v2250 = vld [vmem:[#allocation2 + $0xe98] sm:$0xff]
    %v2251 = vld [vmem:[#allocation2 + $0xea0] sm:$0xff]
    %v2252 = vld [vmem:[#allocation2 + $0xea8] sm:$0xff]
    %v2253 = vld [vmem:[#allocation2 + $0xeb0] sm:$0xff]
    %v2254 = vld [vmem:[#allocation2 + $0xeb8] sm:$0xff]
    %v2255 = vld [vmem:[#allocation2 + $0xec0] sm:$0xff]
    %v2256 = vld [vmem:[#allocation2 + $0xec8] sm:$0xff]
    %v2257 = vld [vmem:[#allocation2 + $0xed0] sm:$0xff]
    %v2258 = vld [vmem:[#allocation2 + $0xed8] sm:$0xff]
    %v2259 = vld [vmem:[#allocation2 + $0xee0] sm:$0xff]
    %v2260 = vld [vmem:[#allocation2 + $0xee8] sm:$0xff]
    %v2261 = vld [vmem:[#allocation2 + $0xef0] sm:$0xff]
    %v2262 = vld [vmem:[#allocation2 + $0xef8] sm:$0xff]
    %v2263 = vld [vmem:[#allocation2 + $0xf00] sm:$0xff]
    %v2264 = vld [vmem:[#allocation2 + $0xf08] sm:$0xff]
    %v2265 = vld [vmem:[#allocation2 + $0xf10] sm:$0xff]
    %v2266 = vld [vmem:[#allocation2 + $0xf18] sm:$0xff]
    %v2267 = vld [vmem:[#allocation2 + $0xf20] sm:$0xff]
    %v2268 = vld [vmem:[#allocation2 + $0xf28] sm:$0xff]
    %v2269 = vld [vmem:[#allocation2 + $0xf30] sm:$0xff]
    %v2270 = vld [vmem:[#allocation2 + $0xf38] sm:$0xff]
    %v2271 = vld [vmem:[#allocation2 + $0xf40] sm:$0xff]
    %v2272 = vld [vmem:[#allocation2 + $0xf48] sm:$0xff]
    %v2273 = vld [vmem:[#allocation2 + $0xf50] sm:$0xff]
    %v2274 = vld [vmem:[#allocation2 + $0xf58] sm:$0xff]
    %v2275 = vld [vmem:[#allocation2 + $0xf60] sm:$0xff]
    %v2276 = vld [vmem:[#allocation2 + $0xf68] sm:$0xff]
    %v2277 = vld [vmem:[#allocation2 + $0xf70] sm:$0xff]
    %v2278 = vld [vmem:[#allocation2 + $0xf78] sm:$0xff]
    %v2279 = vld [vmem:[#allocation2 + $0xf80] sm:$0xff]
    %v2280 = vld [vmem:[#allocation2 + $0xf88] sm:$0xff]
    %v2281 = vld [vmem:[#allocation2 + $0xf90] sm:$0xff]
    %v2282 = vld [vmem:[#allocation2 + $0xf98] sm:$0xff]
    %v2283 = vld [vmem:[#allocation2 + $0xfa0] sm:$0xff]
    %v2284 = vld [vmem:[#allocation2 + $0xfa8] sm:$0xff]
    %v2285 = vld [vmem:[#allocation2 + $0xfb0] sm:$0xff]
    %v2286 = vld [vmem:[#allocation2 + $0xfb8] sm:$0xff]
    %v2287 = vld [vmem:[#allocation2 + $0xfc0] sm:$0xff]
    %v2288 = vld [vmem:[#allocation2 + $0xfc8] sm:$0xff]
    %v2289 = vld [vmem:[#allocation2 + $0xfd0] sm:$0xff]
    %v2290 = vld [vmem:[#allocation2 + $0xfd8] sm:$0xff]
    %v2291 = vld [vmem:[#allocation2 + $0xfe0] sm:$0xff]
    %v2292 = vld [vmem:[#allocation2 + $0xfe8] sm:$0xff]
    %v2293 = vld [vmem:[#allocation2 + $0xff0] sm:$0xff]
    %v2294 = vld [vmem:[#allocation2 + $0xff8] sm:$0xff]
    %2295 = vmatprep.subr.bf16.mxu0 %v1784
    %2296 = vmatpush1.bf16.msra.mxu0 %v1783
    %2297 = vmatprep.subr.bf16.mxu0 %v1792
    %2298 = vmatpush1.bf16.msra.mxu0 %v1791
    %2299 = vmatprep.subr.bf16.mxu0 %v1800
    %2300 = vmatpush1.bf16.msra.mxu0 %v1799
    %2301 = vmatprep.subr.bf16.mxu0 %v1808
    %2302 = vmatpush1.bf16.msra.mxu0 %v1807
    %2303 = vmatprep.subr.bf16.mxu0 %v1816
    %2304 = vmatpush1.bf16.msra.mxu0 %v1815
    %2305 = vmatprep.subr.bf16.mxu0 %v1824
    %2306 = vmatpush1.bf16.msra.mxu0 %v1823
    %2307 = vmatprep.subr.bf16.mxu0 %v1832
    %2308 = vmatpush1.bf16.msra.mxu0 %v1831
    %2309 = vmatprep.subr.bf16.mxu0 %v1840
    %2310 = vmatpush1.bf16.msra.mxu0 %v1839
    %2311 = vmatprep.subr.bf16.mxu0 %v1848
    %2312 = vmatpush1.bf16.msra.mxu0 %v1847
    %2313 = vmatprep.subr.bf16.mxu0 %v1856
    %2314 = vmatpush1.bf16.msra.mxu0 %v1855
    %2315 = vmatprep.subr.bf16.mxu0 %v1864
    %2316 = vmatpush1.bf16.msra.mxu0 %v1863
    %2317 = vmatprep.subr.bf16.mxu0 %v1872
    %2318 = vmatpush1.bf16.msra.mxu0 %v1871
    %2319 = vmatprep.subr.bf16.mxu0 %v1880
    %2320 = vmatpush1.bf16.msra.mxu0 %v1879
    %2321 = vmatprep.subr.bf16.mxu0 %v1888
    %2322 = vmatpush1.bf16.msra.mxu0 %v1887
    %2323 = vmatprep.subr.bf16.mxu0 %v1896
    %2324 = vmatpush1.bf16.msra.mxu0 %v1895
    %2325 = vmatprep.subr.bf16.mxu0 %v1904
    %2326 = vmatpush1.bf16.msra.mxu0 %v1903
    %2327 = vmatprep.mubr.bf16.mxu0 %v1776
    %2328 = vmatmul.mubr.bf16.gmra.mrb[0].mxu0 %v1775
    %v2329 = vpop.f32.mrb[0].mxu0
    %v2330 = vadd.f32 0.0, %v2329
    %v2331 = vpop.f32.mrb[0].mxu0
    %v2332 = vadd.f32 0.0, %v2331
    %v2333 = vpop.f32.mrb[0].mxu0
    %v2334 = vpop.f32.mrb[0].mxu0
    %2335 = vdwg.mxu0
    %2336 = vmatprep.subr.bf16.mxu0 %v1912
    %2337 = vmatpush1.bf16.msra.mxu0 %v1911
    %2338 = vmatprep.subr.bf16.mxu0 %v1920
    %2339 = vmatpush1.bf16.msra.mxu0 %v1919
    %2340 = vmatprep.subr.bf16.mxu0 %v1928
    %2341 = vmatpush1.bf16.msra.mxu0 %v1927
    %2342 = vmatprep.subr.bf16.mxu0 %v1936
    %2343 = vmatpush1.bf16.msra.mxu0 %v1935
    %2344 = vmatprep.subr.bf16.mxu0 %v1944
    %2345 = vmatpush1.bf16.msra.mxu0 %v1943
    %2346 = vmatprep.subr.bf16.mxu0 %v1952
    %2347 = vmatpush1.bf16.msra.mxu0 %v1951
    %2348 = vmatprep.subr.bf16.mxu0 %v1960
    %2349 = vmatpush1.bf16.msra.mxu0 %v1959
    %2350 = vmatprep.subr.bf16.mxu0 %v1968
    %2351 = vmatpush1.bf16.msra.mxu0 %v1967
    %2352 = vmatprep.subr.bf16.mxu0 %v1976
    %2353 = vmatpush1.bf16.msra.mxu0 %v1975
    %2354 = vmatprep.subr.bf16.mxu0 %v1984
    %2355 = vmatpush1.bf16.msra.mxu0 %v1983
    %2356 = vmatprep.subr.bf16.mxu0 %v1992
    %2357 = vmatpush1.bf16.msra.mxu0 %v1991
    %2358 = vmatprep.subr.bf16.mxu0 %v2000
    %2359 = vmatpush1.bf16.msra.mxu0 %v1999
    %2360 = vmatprep.subr.bf16.mxu0 %v2008
    %2361 = vmatpush1.bf16.msra.mxu0 %v2007
    %2362 = vmatprep.subr.bf16.mxu0 %v2016
    %2363 = vmatpush1.bf16.msra.mxu0 %v2015
    %2364 = vmatprep.subr.bf16.mxu0 %v2024
    %2365 = vmatpush1.bf16.msra.mxu0 %v2023
    %2366 = vmatprep.subr.bf16.mxu0 %v2032
    %2367 = vmatpush1.bf16.msra.mxu0 %v2031
    %2368 = vmatprep.mubr.bf16.mxu0 %v1778
    %2369 = vmatmul.mubr.bf16.gmra.mrb[0].mxu0 %v1777
    %v2370 = vpop.f32.mrb[0].mxu0
    %v2371 = vadd.f32 %v2330, %v2370
    %v2372 = vpop.f32.mrb[0].mxu0
    %v2373 = vadd.f32 %v2332, %v2372
    %v2374 = vpop.f32.mrb[0].mxu0
    %v2375 = vpop.f32.mrb[0].mxu0
    %2376 = vdwg.mxu0
    %2377 = vmatprep.subr.bf16.mxu0 %v2040
    %2378 = vmatpush1.bf16.msra.mxu0 %v2039
    %2379 = vmatprep.subr.bf16.mxu0 %v2048
    %2380 = vmatpush1.bf16.msra.mxu0 %v2047
    %2381 = vmatprep.subr.bf16.mxu0 %v2056
    %2382 = vmatpush1.bf16.msra.mxu0 %v2055
    %2383 = vmatprep.subr.bf16.mxu0 %v2064
    %2384 = vmatpush1.bf16.msra.mxu0 %v2063
    %2385 = vmatprep.subr.bf16.mxu0 %v2072
    %2386 = vmatpush1.bf16.msra.mxu0 %v2071
    %2387 = vmatprep.subr.bf16.mxu0 %v2080
    %2388 = vmatpush1.bf16.msra.mxu0 %v2079
    %2389 = vmatprep.subr.bf16.mxu0 %v2088
    %2390 = vmatpush1.bf16.msra.mxu0 %v2087
    %2391 = vmatprep.subr.bf16.mxu0 %v2096
    %2392 = vmatpush1.bf16.msra.mxu0 %v2095
    %2393 = vmatprep.subr.bf16.mxu0 %v2104
    %2394 = vmatpush1.bf16.msra.mxu0 %v2103
    %2395 = vmatprep.subr.bf16.mxu0 %v2112
    %2396 = vmatpush1.bf16.msra.mxu0 %v2111
    %2397 = vmatprep.subr.bf16.mxu0 %v2120
    %2398 = vmatpush1.bf16.msra.mxu0 %v2119
    %2399 = vmatprep.subr.bf16.mxu0 %v2128
    %2400 = vmatpush1.bf16.msra.mxu0 %v2127
    %2401 = vmatprep.subr.bf16.mxu0 %v2136
    %2402 = vmatpush1.bf16.msra.mxu0 %v2135
    %2403 = vmatprep.subr.bf16.mxu0 %v2144
    %2404 = vmatpush1.bf16.msra.mxu0 %v2143
    %2405 = vmatprep.subr.bf16.mxu0 %v2152
    %2406 = vmatpush1.bf16.msra.mxu0 %v2151
    %2407 = vmatprep.subr.bf16.mxu0 %v2160
    %2408 = vmatpush1.bf16.msra.mxu0 %v2159
    %2409 = vmatprep.mubr.bf16.mxu0 %v1780
    %2410 = vmatmul.mubr.bf16.gmra.mrb[0].mxu0 %v1779
    %v2411 = vpop.f32.mrb[0].mxu0
    %v2412 = vadd.f32 %v2371, %v2411
    %v2413 = vpop.f32.mrb[0].mxu0
    %v2414 = vadd.f32 %v2373, %v2413
    %v2415 = vpop.f32.mrb[0].mxu0
    %v2416 = vpop.f32.mrb[0].mxu0
    %2417 = vdwg.mxu0
    %2418 = vmatprep.subr.bf16.mxu0 %v2168
    %2419 = vmatpush1.bf16.msra.mxu0 %v2167
    %2420 = vmatprep.subr.bf16.mxu0 %v2176
    %2421 = vmatpush1.bf16.msra.mxu0 %v2175
    %2422 = vmatprep.subr.bf16.mxu0 %v2184
    %2423 = vmatpush1.bf16.msra.mxu0 %v2183
    %2424 = vmatprep.subr.bf16.mxu0 %v2192
    %2425 = vmatpush1.bf16.msra.mxu0 %v2191
    %2426 = vmatprep.subr.bf16.mxu0 %v2200
    %2427 = vmatpush1.bf16.msra.mxu0 %v2199
    %2428 = vmatprep.subr.bf16.mxu0 %v2208
    %2429 = vmatpush1.bf16.msra.mxu0 %v2207
    %2430 = vmatprep.subr.bf16.mxu0 %v2216
    %2431 = vmatpush1.bf16.msra.mxu0 %v2215
    %2432 = vmatprep.subr.bf16.mxu0 %v2224
    %2433 = vmatpush1.bf16.msra.mxu0 %v2223
    %2434 = vmatprep.subr.bf16.mxu0 %v2232
    %2435 = vmatpush1.bf16.msra.mxu0 %v2231
    %2436 = vmatprep.subr.bf16.mxu0 %v2240
    %2437 = vmatpush1.bf16.msra.mxu0 %v2239
    %2438 = vmatprep.subr.bf16.mxu0 %v2248
    %2439 = vmatpush1.bf16.msra.mxu0 %v2247
    %2440 = vmatprep.subr.bf16.mxu0 %v2256
    %2441 = vmatpush1.bf16.msra.mxu0 %v2255
    %2442 = vmatprep.subr.bf16.mxu0 %v2264
    %2443 = vmatpush1.bf16.msra.mxu0 %v2263
    %2444 = vmatprep.subr.bf16.mxu0 %v2272
    %2445 = vmatpush1.bf16.msra.mxu0 %v2271
    %2446 = vmatprep.subr.bf16.mxu0 %v2280
    %2447 = vmatpush1.bf16.msra.mxu0 %v2279
    %2448 = vmatprep.subr.bf16.mxu0 %v2288
    %2449 = vmatpush1.bf16.msra.mxu0 %v2287
    %2450 = vmatprep.mubr.bf16.mxu0 %v1782
    %2451 = vmatmul.mubr.bf16.gmra.mrb[0].mxu0 %v1781
    %v2452 = vpop.f32.mrb[0].mxu0
    %v2453 = vadd.f32 %v2412, %v2452
    %v2454 = vpop.f32.mrb[0].mxu0
    %v2455 = vadd.f32 %v2414, %v2454
    %v2456 = vpop.f32.mrb[0].mxu0
    %v2457 = vpop.f32.mrb[0].mxu0
    %2458 = vdwg.mxu0
    %2459 = vmatprep.subr.bf16.mxu0 %v1786
    %2460 = vmatpush1.bf16.msra.mxu0 %v1785
    %2461 = vmatprep.subr.bf16.mxu0 %v1794
    %2462 = vmatpush1.bf16.msra.mxu0 %v1793
    %2463 = vmatprep.subr.bf16.mxu0 %v1802
    %2464 = vmatpush1.bf16.msra.mxu0 %v1801
    %2465 = vmatprep.subr.bf16.mxu0 %v1810
    %2466 = vmatpush1.bf16.msra.mxu0 %v1809
    %2467 = vmatprep.subr.bf16.mxu0 %v1818
    %2468 = vmatpush1.bf16.msra.mxu0 %v1817
    %2469 = vmatprep.subr.bf16.mxu0 %v1826
    %2470 = vmatpush1.bf16.msra.mxu0 %v1825
    %2471 = vmatprep.subr.bf16.mxu0 %v1834
    %2472 = vmatpush1.bf16.msra.mxu0 %v1833
    %2473 = vmatprep.subr.bf16.mxu0 %v1842
    %2474 = vmatpush1.bf16.msra.mxu0 %v1841
    %2475 = vmatprep.subr.bf16.mxu0 %v1850
    %2476 = vmatpush1.bf16.msra.mxu0 %v1849
    %2477 = vmatprep.subr.bf16.mxu0 %v1858
    %2478 = vmatpush1.bf16.msra.mxu0 %v1857
    %2479 = vmatprep.subr.bf16.mxu0 %v1866
    %2480 = vmatpush1.bf16.msra.mxu0 %v1865
    %2481 = vmatprep.subr.bf16.mxu0 %v1874
    %2482 = vmatpush1.bf16.msra.mxu0 %v1873
    %2483 = vmatprep.subr.bf16.mxu0 %v1882
    %2484 = vmatpush1.bf16.msra.mxu0 %v1881
    %2485 = vmatprep.subr.bf16.mxu0 %v1890
    %2486 = vmatpush1.bf16.msra.mxu0 %v1889
    %2487 = vmatprep.subr.bf16.mxu0 %v1898
    %2488 = vmatpush1.bf16.msra.mxu0 %v1897
    %2489 = vmatprep.subr.bf16.mxu0 %v1906
    %2490 = vmatpush1.bf16.msra.mxu0 %v1905
    %2491 = vmatprep.mubr.bf16.mxu0 %v1776
    %2492 = vmatmul.mubr.bf16.gmra.mrb[0].mxu0 %v1775
    %v2493 = vpop.f32.mrb[0].mxu0
    %v2494 = vadd.f32 0.0, %v2493
    %v2495 = vpop.f32.mrb[0].mxu0
    %v2496 = vadd.f32 0.0, %v2495
    %v2497 = vpop.f32.mrb[0].mxu0
    %v2498 = vpop.f32.mrb[0].mxu0
    %2499 = vdwg.mxu0
    %2500 = vmatprep.subr.bf16.mxu0 %v1914
    %2501 = vmatpush1.bf16.msra.mxu0 %v1913
    %2502 = vmatprep.subr.bf16.mxu0 %v1922
    %2503 = vmatpush1.bf16.msra.mxu0 %v1921
    %2504 = vmatprep.subr.bf16.mxu0 %v1930
    %2505 = vmatpush1.bf16.msra.mxu0 %v1929
    %2506 = vmatprep.subr.bf16.mxu0 %v1938
    %2507 = vmatpush1.bf16.msra.mxu0 %v1937
    %2508 = vmatprep.subr.bf16.mxu0 %v1946
    %2509 = vmatpush1.bf16.msra.mxu0 %v1945
    %2510 = vmatprep.subr.bf16.mxu0 %v1954
    %2511 = vmatpush1.bf16.msra.mxu0 %v1953
    %2512 = vmatprep.subr.bf16.mxu0 %v1962
    %2513 = vmatpush1.bf16.msra.mxu0 %v1961
    %2514 = vmatprep.subr.bf16.mxu0 %v1970
    %2515 = vmatpush1.bf16.msra.mxu0 %v1969
    %2516 = vmatprep.subr.bf16.mxu0 %v1978
    %2517 = vmatpush1.bf16.msra.mxu0 %v1977
    %2518 = vmatprep.subr.bf16.mxu0 %v1986
    %2519 = vmatpush1.bf16.msra.mxu0 %v1985
    %2520 = vmatprep.subr.bf16.mxu0 %v1994
    %2521 = vmatpush1.bf16.msra.mxu0 %v1993
    %2522 = vmatprep.subr.bf16.mxu0 %v2002
    %2523 = vmatpush1.bf16.msra.mxu0 %v2001
    %2524 = vmatprep.subr.bf16.mxu0 %v2010
    %2525 = vmatpush1.bf16.msra.mxu0 %v2009
    %2526 = vmatprep.subr.bf16.mxu0 %v2018
    %2527 = vmatpush1.bf16.msra.mxu0 %v2017
    %2528 = vmatprep.subr.bf16.mxu0 %v2026
    %2529 = vmatpush1.bf16.msra.mxu0 %v2025
    %2530 = vmatprep.subr.bf16.mxu0 %v2034
    %2531 = vmatpush1.bf16.msra.mxu0 %v2033
    %2532 = vmatprep.mubr.bf16.mxu0 %v1778
    %2533 = vmatmul.mubr.bf16.gmra.mrb[0].mxu0 %v1777
    %v2534 = vpop.f32.mrb[0].mxu0
    %v2535 = vadd.f32 %v2494, %v2534
    %v2536 = vpop.f32.mrb[0].mxu0
    %v2537 = vadd.f32 %v2496, %v2536
    %v2538 = vpop.f32.mrb[0].mxu0
    %v2539 = vpop.f32.mrb[0].mxu0
    %2540 = vdwg.mxu0
    %2541 = vmatprep.subr.bf16.mxu0 %v2042
    %2542 = vmatpush1.bf16.msra.mxu0 %v2041
    %2543 = vmatprep.subr.bf16.mxu0 %v2050
    %2544 = vmatpush1.bf16.msra.mxu0 %v2049
    %2545 = vmatprep.subr.bf16.mxu0 %v2058
    %2546 = vmatpush1.bf16.msra.mxu0 %v2057
    %2547 = vmatprep.subr.bf16.mxu0 %v2066
    %2548 = vmatpush1.bf16.msra.mxu0 %v2065
    %2549 = vmatprep.subr.bf16.mxu0 %v2074
    %2550 = vmatpush1.bf16.msra.mxu0 %v2073
    %2551 = vmatprep.subr.bf16.mxu0 %v2082
    %2552 = vmatpush1.bf16.msra.mxu0 %v2081
    %2553 = vmatprep.subr.bf16.mxu0 %v2090
    %2554 = vmatpush1.bf16.msra.mxu0 %v2089
    %2555 = vmatprep.subr.bf16.mxu0 %v2098
    %2556 = vmatpush1.bf16.msra.mxu0 %v2097
    %2557 = vmatprep.subr.bf16.mxu0 %v2106
    %2558 = vmatpush1.bf16.msra.mxu0 %v2105
    %2559 = vmatprep.subr.bf16.mxu0 %v2114
    %2560 = vmatpush1.bf16.msra.mxu0 %v2113
    %2561 = vmatprep.subr.bf16.mxu0 %v2122
    %2562 = vmatpush1.bf16.msra.mxu0 %v2121
    %2563 = vmatprep.subr.bf16.mxu0 %v2130
    %2564 = vmatpush1.bf16.msra.mxu0 %v2129
    %2565 = vmatprep.subr.bf16.mxu0 %v2138
    %2566 = vmatpush1.bf16.msra.mxu0 %v2137
    %2567 = vmatprep.subr.bf16.mxu0 %v2146
    %2568 = vmatpush1.bf16.msra.mxu0 %v2145
    %2569 = vmatprep.subr.bf16.mxu0 %v2154
    %2570 = vmatpush1.bf16.msra.mxu0 %v2153
    %2571 = vmatprep.subr.bf16.mxu0 %v2162
    %2572 = vmatpush1.bf16.msra.mxu0 %v2161
    %2573 = vmatprep.mubr.bf16.mxu0 %v1780
    %2574 = vmatmul.mubr.bf16.gmra.mrb[0].mxu0 %v1779
    %v2575 = vpop.f32.mrb[0].mxu0
    %v2576 = vadd.f32 %v2535, %v2575
    %v2577 = vpop.f32.mrb[0].mxu0
    %v2578 = vadd.f32 %v2537, %v2577
    %v2579 = vpop.f32.mrb[0].mxu0
    %v2580 = vpop.f32.mrb[0].mxu0
    %2581 = vdwg.mxu0
    %2582 = vmatprep.subr.bf16.mxu0 %v2170
    %2583 = vmatpush1.bf16.msra.mxu0 %v2169
    %2584 = vmatprep.subr.bf16.mxu0 %v2178
    %2585 = vmatpush1.bf16.msra.mxu0 %v2177
    %2586 = vmatprep.subr.bf16.mxu0 %v2186
    %2587 = vmatpush1.bf16.msra.mxu0 %v2185
    %2588 = vmatprep.subr.bf16.mxu0 %v2194
    %2589 = vmatpush1.bf16.msra.mxu0 %v2193
    %2590 = vmatprep.subr.bf16.mxu0 %v2202
    %2591 = vmatpush1.bf16.msra.mxu0 %v2201
    %2592 = vmatprep.subr.bf16.mxu0 %v2210
    %2593 = vmatpush1.bf16.msra.mxu0 %v2209
    %2594 = vmatprep.subr.bf16.mxu0 %v2218
    %2595 = vmatpush1.bf16.msra.mxu0 %v2217
    %2596 = vmatprep.subr.bf16.mxu0 %v2226
    %2597 = vmatpush1.bf16.msra.mxu0 %v2225
    %2598 = vmatprep.subr.bf16.mxu0 %v2234
    %2599 = vmatpush1.bf16.msra.mxu0 %v2233
    %2600 = vmatprep.subr.bf16.mxu0 %v2242
    %2601 = vmatpush1.bf16.msra.mxu0 %v2241
    %2602 = vmatprep.subr.bf16.mxu0 %v2250
    %2603 = vmatpush1.bf16.msra.mxu0 %v2249
    %2604 = vmatprep.subr.bf16.mxu0 %v2258
    %2605 = vmatpush1.bf16.msra.mxu0 %v2257
    %2606 = vmatprep.subr.bf16.mxu0 %v2266
    %2607 = vmatpush1.bf16.msra.mxu0 %v2265
    %2608 = vmatprep.subr.bf16.mxu0 %v2274
    %2609 = vmatpush1.bf16.msra.mxu0 %v2273
    %2610 = vmatprep.subr.bf16.mxu0 %v2282
    %2611 = vmatpush1.bf16.msra.mxu0 %v2281
    %2612 = vmatprep.subr.bf16.mxu0 %v2290
    %2613 = vmatpush1.bf16.msra.mxu0 %v2289
    %2614 = vmatprep.mubr.bf16.mxu0 %v1782
    %2615 = vmatmul.mubr.bf16.gmra.mrb[0].mxu0 %v1781
    %v2616 = vpop.f32.mrb[0].mxu0
    %v2617 = vadd.f32 %v2576, %v2616
    %v2618 = vpop.f32.mrb[0].mxu0
    %v2619 = vadd.f32 %v2578, %v2618
    %v2620 = vpop.f32.mrb[0].mxu0
    %v2621 = vpop.f32.mrb[0].mxu0
    %2622 = vdwg.mxu0
    %2623 = vmatprep.subr.bf16.mxu0 %v1788
    %2624 = vmatpush1.bf16.msra.mxu0 %v1787
    %2625 = vmatprep.subr.bf16.mxu0 %v1796
    %2626 = vmatpush1.bf16.msra.mxu0 %v1795
    %2627 = vmatprep.subr.bf16.mxu0 %v1804
    %2628 = vmatpush1.bf16.msra.mxu0 %v1803
    %2629 = vmatprep.subr.bf16.mxu0 %v1812
    %2630 = vmatpush1.bf16.msra.mxu0 %v1811
    %2631 = vmatprep.subr.bf16.mxu0 %v1820
    %2632 = vmatpush1.bf16.msra.mxu0 %v1819
    %2633 = vmatprep.subr.bf16.mxu0 %v1828
    %2634 = vmatpush1.bf16.msra.mxu0 %v1827
    %2635 = vmatprep.subr.bf16.mxu0 %v1836
    %2636 = vmatpush1.bf16.msra.mxu0 %v1835
    %2637 = vmatprep.subr.bf16.mxu0 %v1844
    %2638 = vmatpush1.bf16.msra.mxu0 %v1843
    %2639 = vmatprep.subr.bf16.mxu0 %v1852
    %2640 = vmatpush1.bf16.msra.mxu0 %v1851
    %2641 = vmatprep.subr.bf16.mxu0 %v1860
    %2642 = vmatpush1.bf16.msra.mxu0 %v1859
    %2643 = vmatprep.subr.bf16.mxu0 %v1868
    %2644 = vmatpush1.bf16.msra.mxu0 %v1867
    %2645 = vmatprep.subr.bf16.mxu0 %v1876
    %2646 = vmatpush1.bf16.msra.mxu0 %v1875
    %2647 = vmatprep.subr.bf16.mxu0 %v1884
    %2648 = vmatpush1.bf16.msra.mxu0 %v1883
    %2649 = vmatprep.subr.bf16.mxu0 %v1892
    %2650 = vmatpush1.bf16.msra.mxu0 %v1891
    %2651 = vmatprep.subr.bf16.mxu0 %v1900
    %2652 = vmatpush1.bf16.msra.mxu0 %v1899
    %2653 = vmatprep.subr.bf16.mxu0 %v1908
    %2654 = vmatpush1.bf16.msra.mxu0 %v1907
    %2655 = vmatprep.mubr.bf16.mxu0 %v1776
    %2656 = vmatmul.mubr.bf16.gmra.mrb[0].mxu0 %v1775
    %v2657 = vpop.f32.mrb[0].mxu0
    %v2658 = vadd.f32 0.0, %v2657
    %v2659 = vpop.f32.mrb[0].mxu0
    %v2660 = vadd.f32 0.0, %v2659
    %v2661 = vpop.f32.mrb[0].mxu0
    %v2662 = vpop.f32.mrb[0].mxu0
    %2663 = vdwg.mxu0
    %2664 = vmatprep.subr.bf16.mxu0 %v1916
    %2665 = vmatpush1.bf16.msra.mxu0 %v1915
    %2666 = vmatprep.subr.bf16.mxu0 %v1924
    %2667 = vmatpush1.bf16.msra.mxu0 %v1923
    %2668 = vmatprep.subr.bf16.mxu0 %v1932
    %2669 = vmatpush1.bf16.msra.mxu0 %v1931
    %2670 = vmatprep.subr.bf16.mxu0 %v1940
    %2671 = vmatpush1.bf16.msra.mxu0 %v1939
    %2672 = vmatprep.subr.bf16.mxu0 %v1948
    %2673 = vmatpush1.bf16.msra.mxu0 %v1947
    %2674 = vmatprep.subr.bf16.mxu0 %v1956
    %2675 = vmatpush1.bf16.msra.mxu0 %v1955
    %2676 = vmatprep.subr.bf16.mxu0 %v1964
    %2677 = vmatpush1.bf16.msra.mxu0 %v1963
    %2678 = vmatprep.subr.bf16.mxu0 %v1972
    %2679 = vmatpush1.bf16.msra.mxu0 %v1971
    %2680 = vmatprep.subr.bf16.mxu0 %v1980
    %2681 = vmatpush1.bf16.msra.mxu0 %v1979
    %2682 = vmatprep.subr.bf16.mxu0 %v1988
    %2683 = vmatpush1.bf16.msra.mxu0 %v1987
    %2684 = vmatprep.subr.bf16.mxu0 %v1996
    %2685 = vmatpush1.bf16.msra.mxu0 %v1995
    %2686 = vmatprep.subr.bf16.mxu0 %v2004
    %2687 = vmatpush1.bf16.msra.mxu0 %v2003
    %2688 = vmatprep.subr.bf16.mxu0 %v2012
    %2689 = vmatpush1.bf16.msra.mxu0 %v2011
    %2690 = vmatprep.subr.bf16.mxu0 %v2020
    %2691 = vmatpush1.bf16.msra.mxu0 %v2019
    %2692 = vmatprep.subr.bf16.mxu0 %v2028
    %2693 = vmatpush1.bf16.msra.mxu0 %v2027
    %2694 = vmatprep.subr.bf16.mxu0 %v2036
    %2695 = vmatpush1.bf16.msra.mxu0 %v2035
    %2696 = vmatprep.mubr.bf16.mxu0 %v1778
    %2697 = vmatmul.mubr.bf16.gmra.mrb[0].mxu0 %v1777
    %v2698 = vpop.f32.mrb[0].mxu0
    %v2699 = vadd.f32 %v2658, %v2698
    %v2700 = vpop.f32.mrb[0].mxu0
    %v2701 = vadd.f32 %v2660, %v2700
    %v2702 = vpop.f32.mrb[0].mxu0
    %v2703 = vpop.f32.mrb[0].mxu0
    %2704 = vdwg.mxu0
    %2705 = vmatprep.subr.bf16.mxu0 %v2044
    %2706 = vmatpush1.bf16.msra.mxu0 %v2043
    %2707 = vmatprep.subr.bf16.mxu0 %v2052
    %2708 = vmatpush1.bf16.msra.mxu0 %v2051
    %2709 = vmatprep.subr.bf16.mxu0 %v2060
    %2710 = vmatpush1.bf16.msra.mxu0 %v2059
    %2711 = vmatprep.subr.bf16.mxu0 %v2068
    %2712 = vmatpush1.bf16.msra.mxu0 %v2067
    %2713 = vmatprep.subr.bf16.mxu0 %v2076
    %2714 = vmatpush1.bf16.msra.mxu0 %v2075
    %2715 = vmatprep.subr.bf16.mxu0 %v2084
    %2716 = vmatpush1.bf16.msra.mxu0 %v2083
    %2717 = vmatprep.subr.bf16.mxu0 %v2092
    %2718 = vmatpush1.bf16.msra.mxu0 %v2091
    %2719 = vmatprep.subr.bf16.mxu0 %v2100
    %2720 = vmatpush1.bf16.msra.mxu0 %v2099
    %2721 = vmatprep.subr.bf16.mxu0 %v2108
    %2722 = vmatpush1.bf16.msra.mxu0 %v2107
    %2723 = vmatprep.subr.bf16.mxu0 %v2116
    %2724 = vmatpush1.bf16.msra.mxu0 %v2115
    %2725 = vmatprep.subr.bf16.mxu0 %v2124
    %2726 = vmatpush1.bf16.msra.mxu0 %v2123
    %2727 = vmatprep.subr.bf16.mxu0 %v2132
    %2728 = vmatpush1.bf16.msra.mxu0 %v2131
    %2729 = vmatprep.subr.bf16.mxu0 %v2140
    %2730 = vmatpush1.bf16.msra.mxu0 %v2139
    %2731 = vmatprep.subr.bf16.mxu0 %v2148
    %2732 = vmatpush1.bf16.msra.mxu0 %v2147
    %2733 = vmatprep.subr.bf16.mxu0 %v2156
    %2734 = vmatpush1.bf16.msra.mxu0 %v2155
    %2735 = vmatprep.subr.bf16.mxu0 %v2164
    %2736 = vmatpush1.bf16.msra.mxu0 %v2163
    %2737 = vmatprep.mubr.bf16.mxu0 %v1780
    %2738 = vmatmul.mubr.bf16.gmra.mrb[0].mxu0 %v1779
    %v2739 = vpop.f32.mrb[0].mxu0
    %v2740 = vadd.f32 %v2699, %v2739
    %v2741 = vpop.f32.mrb[0].mxu0
    %v2742 = vadd.f32 %v2701, %v2741
    %v2743 = vpop.f32.mrb[0].mxu0
    %v2744 = vpop.f32.mrb[0].mxu0
    %2745 = vdwg.mxu0
    %2746 = vmatprep.subr.bf16.mxu0 %v2172
    %2747 = vmatpush1.bf16.msra.mxu0 %v2171
    %2748 = vmatprep.subr.bf16.mxu0 %v2180
    %2749 = vmatpush1.bf16.msra.mxu0 %v2179
    %2750 = vmatprep.subr.bf16.mxu0 %v2188
    %2751 = vmatpush1.bf16.msra.mxu0 %v2187
    %2752 = vmatprep.subr.bf16.mxu0 %v2196
    %2753 = vmatpush1.bf16.msra.mxu0 %v2195
    %2754 = vmatprep.subr.bf16.mxu0 %v2204
    %2755 = vmatpush1.bf16.msra.mxu0 %v2203
    %2756 = vmatprep.subr.bf16.mxu0 %v2212
    %2757 = vmatpush1.bf16.msra.mxu0 %v2211
    %2758 = vmatprep.subr.bf16.mxu0 %v2220
    %2759 = vmatpush1.bf16.msra.mxu0 %v2219
    %2760 = vmatprep.subr.bf16.mxu0 %v2228
    %2761 = vmatpush1.bf16.msra.mxu0 %v2227
    %2762 = vmatprep.subr.bf16.mxu0 %v2236
    %2763 = vmatpush1.bf16.msra.mxu0 %v2235
    %2764 = vmatprep.subr.bf16.mxu0 %v2244
    %2765 = vmatpush1.bf16.msra.mxu0 %v2243
    %2766 = vmatprep.subr.bf16.mxu0 %v2252
    %2767 = vmatpush1.bf16.msra.mxu0 %v2251
    %2768 = vmatprep.subr.bf16.mxu0 %v2260
    %2769 = vmatpush1.bf16.msra.mxu0 %v2259
    %2770 = vmatprep.subr.bf16.mxu0 %v2268
    %2771 = vmatpush1.bf16.msra.mxu0 %v2267
    %2772 = vmatprep.subr.bf16.mxu0 %v2276
    %2773 = vmatpush1.bf16.msra.mxu0 %v2275
    %2774 = vmatprep.subr.bf16.mxu0 %v2284
    %2775 = vmatpush1.bf16.msra.mxu0 %v2283
    %2776 = vmatprep.subr.bf16.mxu0 %v2292
    %2777 = vmatpush1.bf16.msra.mxu0 %v2291
    %2778 = vmatprep.mubr.bf16.mxu0 %v1782
    %2779 = vmatmul.mubr.bf16.gmra.mrb[0].mxu0 %v1781
    %v2780 = vpop.f32.mrb[0].mxu0
    %v2781 = vadd.f32 %v2740, %v2780
    %v2782 = vpop.f32.mrb[0].mxu0
    %v2783 = vadd.f32 %v2742, %v2782
    %v2784 = vpop.f32.mrb[0].mxu0
    %v2785 = vpop.f32.mrb[0].mxu0
    %2786 = vdwg.mxu0
    %2787 = vmatprep.subr.bf16.mxu0 %v1790
    %2788 = vmatpush1.bf16.msra.mxu0 %v1789
    %2789 = vmatprep.subr.bf16.mxu0 %v1798
    %2790 = vmatpush1.bf16.msra.mxu0 %v1797
    %2791 = vmatprep.subr.bf16.mxu0 %v1806
    %2792 = vmatpush1.bf16.msra.mxu0 %v1805
    %2793 = vmatprep.subr.bf16.mxu0 %v1814
    %2794 = vmatpush1.bf16.msra.mxu0 %v1813
    %2795 = vmatprep.subr.bf16.mxu0 %v1822
    %2796 = vmatpush1.bf16.msra.mxu0 %v1821
    %2797 = vmatprep.subr.bf16.mxu0 %v1830
    %2798 = vmatpush1.bf16.msra.mxu0 %v1829
    %2799 = vmatprep.subr.bf16.mxu0 %v1838
    %2800 = vmatpush1.bf16.msra.mxu0 %v1837
    %2801 = vmatprep.subr.bf16.mxu0 %v1846
    %2802 = vmatpush1.bf16.msra.mxu0 %v1845
    %2803 = vmatprep.subr.bf16.mxu0 %v1854
    %2804 = vmatpush1.bf16.msra.mxu0 %v1853
    %2805 = vmatprep.subr.bf16.mxu0 %v1862
    %2806 = vmatpush1.bf16.msra.mxu0 %v1861
    %2807 = vmatprep.subr.bf16.mxu0 %v1870
    %2808 = vmatpush1.bf16.msra.mxu0 %v1869
    %2809 = vmatprep.subr.bf16.mxu0 %v1878
    %2810 = vmatpush1.bf16.msra.mxu0 %v1877
    %2811 = vmatprep.subr.bf16.mxu0 %v1886
    %2812 = vmatpush1.bf16.msra.mxu0 %v1885
    %2813 = vmatprep.subr.bf16.mxu0 %v1894
    %2814 = vmatpush1.bf16.msra.mxu0 %v1893
    %2815 = vmatprep.subr.bf16.mxu0 %v1902
    %2816 = vmatpush1.bf16.msra.mxu0 %v1901
    %2817 = vmatprep.subr.bf16.mxu0 %v1910
    %2818 = vmatpush1.bf16.msra.mxu0 %v1909
    %2819 = vmatprep.mubr.bf16.mxu0 %v1776
    %2820 = vmatmul.mubr.bf16.gmra.mrb[0].mxu0 %v1775
    %v2821 = vpop.f32.mrb[0].mxu0
    %v2822 = vadd.f32 0.0, %v2821
    %v2823 = vpop.f32.mrb[0].mxu0
    %v2824 = vadd.f32 0.0, %v2823
    %v2825 = vpop.f32.mrb[0].mxu0
    %v2826 = vpop.f32.mrb[0].mxu0
    %2827 = vdwg.mxu0
    %2828 = vmatprep.subr.bf16.mxu0 %v1918
    %2829 = vmatpush1.bf16.msra.mxu0 %v1917
    %2830 = vmatprep.subr.bf16.mxu0 %v1926
    %2831 = vmatpush1.bf16.msra.mxu0 %v1925
    %2832 = vmatprep.subr.bf16.mxu0 %v1934
    %2833 = vmatpush1.bf16.msra.mxu0 %v1933
    %2834 = vmatprep.subr.bf16.mxu0 %v1942
    %2835 = vmatpush1.bf16.msra.mxu0 %v1941
    %2836 = vmatprep.subr.bf16.mxu0 %v1950
    %2837 = vmatpush1.bf16.msra.mxu0 %v1949
    %2838 = vmatprep.subr.bf16.mxu0 %v1958
    %2839 = vmatpush1.bf16.msra.mxu0 %v1957
    %2840 = vmatprep.subr.bf16.mxu0 %v1966
    %2841 = vmatpush1.bf16.msra.mxu0 %v1965
    %2842 = vmatprep.subr.bf16.mxu0 %v1974
    %2843 = vmatpush1.bf16.msra.mxu0 %v1973
    %2844 = vmatprep.subr.bf16.mxu0 %v1982
    %2845 = vmatpush1.bf16.msra.mxu0 %v1981
    %2846 = vmatprep.subr.bf16.mxu0 %v1990
    %2847 = vmatpush1.bf16.msra.mxu0 %v1989
    %2848 = vmatprep.subr.bf16.mxu0 %v1998
    %2849 = vmatpush1.bf16.msra.mxu0 %v1997
    %2850 = vmatprep.subr.bf16.mxu0 %v2006
    %2851 = vmatpush1.bf16.msra.mxu0 %v2005
    %2852 = vmatprep.subr.bf16.mxu0 %v2014
    %2853 = vmatpush1.bf16.msra.mxu0 %v2013
    %2854 = vmatprep.subr.bf16.mxu0 %v2022
    %2855 = vmatpush1.bf16.msra.mxu0 %v2021
    %2856 = vmatprep.subr.bf16.mxu0 %v2030
    %2857 = vmatpush1.bf16.msra.mxu0 %v2029
    %2858 = vmatprep.subr.bf16.mxu0 %v2038
    %2859 = vmatpush1.bf16.msra.mxu0 %v2037
    %2860 = vmatprep.mubr.bf16.mxu0 %v1778
    %2861 = vmatmul.mubr.bf16.gmra.mrb[0].mxu0 %v1777
    %v2862 = vpop.f32.mrb[0].mxu0
    %v2863 = vadd.f32 %v2822, %v2862
    %v2864 = vpop.f32.mrb[0].mxu0
    %v2865 = vadd.f32 %v2824, %v2864
    %v2866 = vpop.f32.mrb[0].mxu0
    %v2867 = vpop.f32.mrb[0].mxu0
    %2868 = vdwg.mxu0
    %2869 = vmatprep.subr.bf16.mxu0 %v2046
    %2870 = vmatpush1.bf16.msra.mxu0 %v2045
    %2871 = vmatprep.subr.bf16.mxu0 %v2054
    %2872 = vmatpush1.bf16.msra.mxu0 %v2053
    %2873 = vmatprep.subr.bf16.mxu0 %v2062
    %2874 = vmatpush1.bf16.msra.mxu0 %v2061
    %2875 = vmatprep.subr.bf16.mxu0 %v2070
    %2876 = vmatpush1.bf16.msra.mxu0 %v2069
    %2877 = vmatprep.subr.bf16.mxu0 %v2078
    %2878 = vmatpush1.bf16.msra.mxu0 %v2077
    %2879 = vmatprep.subr.bf16.mxu0 %v2086
    %2880 = vmatpush1.bf16.msra.mxu0 %v2085
    %2881 = vmatprep.subr.bf16.mxu0 %v2094
    %2882 = vmatpush1.bf16.msra.mxu0 %v2093
    %2883 = vmatprep.subr.bf16.mxu0 %v2102
    %2884 = vmatpush1.bf16.msra.mxu0 %v2101
    %2885 = vmatprep.subr.bf16.mxu0 %v2110
    %2886 = vmatpush1.bf16.msra.mxu0 %v2109
    %2887 = vmatprep.subr.bf16.mxu0 %v2118
    %2888 = vmatpush1.bf16.msra.mxu0 %v2117
    %2889 = vmatprep.subr.bf16.mxu0 %v2126
    %2890 = vmatpush1.bf16.msra.mxu0 %v2125
    %2891 = vmatprep.subr.bf16.mxu0 %v2134
    %2892 = vmatpush1.bf16.msra.mxu0 %v2133
    %2893 = vmatprep.subr.bf16.mxu0 %v2142
    %2894 = vmatpush1.bf16.msra.mxu0 %v2141
    %2895 = vmatprep.subr.bf16.mxu0 %v2150
    %2896 = vmatpush1.bf16.msra.mxu0 %v2149
    %2897 = vmatprep.subr.bf16.mxu0 %v2158
    %2898 = vmatpush1.bf16.msra.mxu0 %v2157
    %2899 = vmatprep.subr.bf16.mxu0 %v2166
    %2900 = vmatpush1.bf16.msra.mxu0 %v2165
    %2901 = vmatprep.mubr.bf16.mxu0 %v1780
    %2902 = vmatmul.mubr.bf16.gmra.mrb[0].mxu0 %v1779
    %v2903 = vpop.f32.mrb[0].mxu0
    %v2904 = vadd.f32 %v2863, %v2903
    %v2905 = vpop.f32.mrb[0].mxu0
    %v2906 = vadd.f32 %v2865, %v2905
    %v2907 = vpop.f32.mrb[0].mxu0
    %v2908 = vpop.f32.mrb[0].mxu0
    %2909 = vdwg.mxu0
    %2910 = vmatprep.subr.bf16.mxu0 %v2174
    %2911 = vmatpush1.bf16.msra.mxu0 %v2173
    %2912 = vmatprep.subr.bf16.mxu0 %v2182
    %2913 = vmatpush1.bf16.msra.mxu0 %v2181
    %2914 = vmatprep.subr.bf16.mxu0 %v2190
    %2915 = vmatpush1.bf16.msra.mxu0 %v2189
    %2916 = vmatprep.subr.bf16.mxu0 %v2198
    %2917 = vmatpush1.bf16.msra.mxu0 %v2197
    %2918 = vmatprep.subr.bf16.mxu0 %v2206
    %2919 = vmatpush1.bf16.msra.mxu0 %v2205
    %2920 = vmatprep.subr.bf16.mxu0 %v2214
    %2921 = vmatpush1.bf16.msra.mxu0 %v2213
    %2922 = vmatprep.subr.bf16.mxu0 %v2222
    %2923 = vmatpush1.bf16.msra.mxu0 %v2221
    %2924 = vmatprep.subr.bf16.mxu0 %v2230
    %2925 = vmatpush1.bf16.msra.mxu0 %v2229
    %2926 = vmatprep.subr.bf16.mxu0 %v2238
    %2927 = vmatpush1.bf16.msra.mxu0 %v2237
    %2928 = vmatprep.subr.bf16.mxu0 %v2246
    %2929 = vmatpush1.bf16.msra.mxu0 %v2245
    %2930 = vmatprep.subr.bf16.mxu0 %v2254
    %2931 = vmatpush1.bf16.msra.mxu0 %v2253
    %2932 = vmatprep.subr.bf16.mxu0 %v2262
    %2933 = vmatpush1.bf16.msra.mxu0 %v2261
    %2934 = vmatprep.subr.bf16.mxu0 %v2270
    %2935 = vmatpush1.bf16.msra.mxu0 %v2269
    %2936 = vmatprep.subr.bf16.mxu0 %v2278
    %2937 = vmatpush1.bf16.msra.mxu0 %v2277
    %2938 = vmatprep.subr.bf16.mxu0 %v2286
    %2939 = vmatpush1.bf16.msra.mxu0 %v2285
    %2940 = vmatprep.subr.bf16.mxu0 %v2294
    %2941 = vmatpush1.bf16.msra.mxu0 %v2293
    %2942 = vmatprep.mubr.bf16.mxu0 %v1782
    %2943 = vmatmul.mubr.bf16.gmra.mrb[0].mxu0 %v1781
    %v2944 = vpop.f32.mrb[0].mxu0
    %v2945 = vadd.f32 %v2904, %v2944
    %v2946 = vpop.f32.mrb[0].mxu0
    %v2947 = vadd.f32 %v2906, %v2946
    %v2948 = vpop.f32.mrb[0].mxu0
    %v2949 = vpop.f32.mrb[0].mxu0
    %2950 = vdwg.mxu0
    %s2951 = scalar_lea.vmem [#allocation16], 3
    %v2952 = vld [vmem:[%s2951] ss:$8 sm:$0xf]
    %v2953 = vld [vmem:[%s2951] ss:$8 sm:$0xf0]
    %v2954 = vor.u32 %v2952, %v2953
    %s2955 = scalar_lea.vmem [#allocation16], 4
    %v2956 = vld [vmem:[%s2955] ss:$8 sm:$0xf]
    %v2957 = vld [vmem:[%s2955] ss:$8 sm:$0xf0]
    %v2958 = vor.u32 %v2956, %v2957
    %v2959 = vrot.slane %v2453, 4
    %v2960 = vadd.f32 %v2453, %v2959
    %v2961 = vrot.slane %v2960, 2
    %v2962 = vadd.f32 %v2960, %v2961
    %v2963 = vrot.slane %v2962, 1
    %v2964 = vadd.f32 %v2962, %v2963
    %v2965 = vrot.slane %v2455, 4
    %v2966 = vadd.f32 %v2455, %v2965
    %v2967 = vrot.slane %v2966, 2
    %v2968 = vadd.f32 %v2966, %v2967
    %v2969 = vrot.slane %v2968, 1
    %v2970 = vadd.f32 %v2968, %v2969
    %v2971 = vrot.slane %v2617, 4
    %v2972 = vadd.f32 %v2617, %v2971
    %v2973 = vrot.slane %v2972, 2
    %v2974 = vadd.f32 %v2972, %v2973
    %v2975 = vrot.slane %v2974, 1
    %v2976 = vadd.f32 %v2974, %v2975
    %v2977 = vrot.slane %v2619, 4
    %v2978 = vadd.f32 %v2619, %v2977
    %v2979 = vrot.slane %v2978, 2
    %v2980 = vadd.f32 %v2978, %v2979
    %v2981 = vrot.slane %v2980, 1
    %v2982 = vadd.f32 %v2980, %v2981
    %v2983 = vrot.slane %v2781, 4
    %v2984 = vadd.f32 %v2781, %v2983
    %v2985 = vrot.slane %v2984, 2
    %v2986 = vadd.f32 %v2984, %v2985
    %v2987 = vrot.slane %v2986, 1
    %v2988 = vadd.f32 %v2986, %v2987
    %v2989 = vrot.slane %v2783, 4
    %v2990 = vadd.f32 %v2783, %v2989
    %v2991 = vrot.slane %v2990, 2
    %v2992 = vadd.f32 %v2990, %v2991
    %v2993 = vrot.slane %v2992, 1
    %v2994 = vadd.f32 %v2992, %v2993
    %v2995 = vrot.slane %v2945, 4
    %v2996 = vadd.f32 %v2945, %v2995
    %v2997 = vrot.slane %v2996, 2
    %v2998 = vadd.f32 %v2996, %v2997
    %v2999 = vrot.slane %v2998, 1
    %v3000 = vadd.f32 %v2998, %v2999
    %v3001 = vrot.slane %v2947, 4
    %v3002 = vadd.f32 %v2947, %v3001
    %v3003 = vrot.slane %v3002, 2
    %v3004 = vadd.f32 %v3002, %v3003
    %v3005 = vrot.slane %v3004, 1
    %v3006 = vadd.f32 %v3004, %v3005
    %v3007 = vmul.f32 %v2964, %v1426
    %v3008 = vmul.f32 %v2970, %v1426
    %v3009 = vmul.f32 %v2976, %v1426
    %v3010 = vmul.f32 %v2982, %v1426
    %v3011 = vmul.f32 %v2988, %v1426
    %v3012 = vmul.f32 %v2994, %v1426
    %v3013 = vmul.f32 %v3000, %v1426
    %v3014 = vmul.f32 %v3006, %v1426
    %v3015 = vmul.f32 %v2453, %v2453
    %v3016 = vmul.f32 %v2455, %v2455
    %v3017 = vmul.f32 %v2617, %v2617
    %v3018 = vmul.f32 %v2619, %v2619
    %v3019 = vmul.f32 %v2781, %v2781
    %v3020 = vmul.f32 %v2783, %v2783
    %v3021 = vmul.f32 %v2945, %v2945
    %v3022 = vmul.f32 %v2947, %v2947
    %v3023 = vrot.slane %v3015, 4
    %v3024 = vadd.f32 %v3015, %v3023
    %v3025 = vrot.slane %v3024, 2
    %v3026 = vadd.f32 %v3024, %v3025
    %v3027 = vrot.slane %v3026, 1
    %v3028 = vadd.f32 %v3026, %v3027
    %v3029 = vrot.slane %v3016, 4
    %v3030 = vadd.f32 %v3016, %v3029
    %v3031 = vrot.slane %v3030, 2
    %v3032 = vadd.f32 %v3030, %v3031
    %v3033 = vrot.slane %v3032, 1
    %v3034 = vadd.f32 %v3032, %v3033
    %v3035 = vrot.slane %v3017, 4
    %v3036 = vadd.f32 %v3017, %v3035
    %v3037 = vrot.slane %v3036, 2
    %v3038 = vadd.f32 %v3036, %v3037
    %v3039 = vrot.slane %v3038, 1
    %v3040 = vadd.f32 %v3038, %v3039
    %v3041 = vrot.slane %v3018, 4
    %v3042 = vadd.f32 %v3018, %v3041
    %v3043 = vrot.slane %v3042, 2
    %v3044 = vadd.f32 %v3042, %v3043
    %v3045 = vrot.slane %v3044, 1
    %v3046 = vadd.f32 %v3044, %v3045
    %v3047 = vrot.slane %v3019, 4
    %v3048 = vadd.f32 %v3019, %v3047
    %v3049 = vrot.slane %v3048, 2
    %v3050 = vadd.f32 %v3048, %v3049
    %v3051 = vrot.slane %v3050, 1
    %v3052 = vadd.f32 %v3050, %v3051
    %v3053 = vrot.slane %v3020, 4
    %v3054 = vadd.f32 %v3020, %v3053
    %v3055 = vrot.slane %v3054, 2
    %v3056 = vadd.f32 %v3054, %v3055
    %v3057 = vrot.slane %v3056, 1
    %v3058 = vadd.f32 %v3056, %v3057
    %v3059 = vrot.slane %v3021, 4
    %v3060 = vadd.f32 %v3021, %v3059
    %v3061 = vrot.slane %v3060, 2
    %v3062 = vadd.f32 %v3060, %v3061
    %v3063 = vrot.slane %v3062, 1
    %v3064 = vadd.f32 %v3062, %v3063
    %v3065 = vrot.slane %v3022, 4
    %v3066 = vadd.f32 %v3022, %v3065
    %v3067 = vrot.slane %v3066, 2
    %v3068 = vadd.f32 %v3066, %v3067
    %v3069 = vrot.slane %v3068, 1
    %v3070 = vadd.f32 %v3068, %v3069
    %v3071 = vmul.f32 %v3028, %v1426
    %v3072 = vmul.f32 %v3034, %v1426
    %v3073 = vmul.f32 %v3040, %v1426
    %v3074 = vmul.f32 %v3046, %v1426
    %v3075 = vmul.f32 %v3052, %v1426
    %v3076 = vmul.f32 %v3058, %v1426
    %v3077 = vmul.f32 %v3064, %v1426
    %v3078 = vmul.f32 %v3070, %v1426
    %v3079 = vmul.f32 %v3007, %v3007
    %v3080 = vmul.f32 %v3008, %v3008
    %v3081 = vmul.f32 %v3009, %v3009
    %v3082 = vmul.f32 %v3010, %v3010
    %v3083 = vmul.f32 %v3011, %v3011
    %v3084 = vmul.f32 %v3012, %v3012
    %v3085 = vmul.f32 %v3013, %v3013
    %v3086 = vmul.f32 %v3014, %v3014
    %v3087 = vsub.f32 %v3071, %v3079
    %v3088 = vsub.f32 %v3072, %v3080
    %v3089 = vsub.f32 %v3073, %v3081
    %v3090 = vsub.f32 %v3074, %v3082
    %v3091 = vsub.f32 %v3075, %v3083
    %v3092 = vsub.f32 %v3076, %v3084
    %v3093 = vsub.f32 %v3077, %v3085
    %v3094 = vsub.f32 %v3078, %v3086
    %v3095 = vmax.f32 %v3087, 0.0
    %v3096 = vmax.f32 %v3088, 0.0
    %v3097 = vmax.f32 %v3089, 0.0
    %v3098 = vmax.f32 %v3090, 0.0
    %v3099 = vmax.f32 %v3091, 0.0
    %v3100 = vmax.f32 %v3092, 0.0
    %v3101 = vmax.f32 %v3093, 0.0
    %v3102 = vmax.f32 %v3094, 0.0
    %v3103 = vadd.f32 %v3095, 1e-05
    %v3104 = vadd.f32 %v3096, 1e-05
    %v3105 = vadd.f32 %v3097, 1e-05
    %v3106 = vadd.f32 %v3098, 1e-05
    %v3107 = vadd.f32 %v3099, 1e-05
    %v3108 = vadd.f32 %v3100, 1e-05
    %v3109 = vadd.f32 %v3101, 1e-05
    %v3110 = vadd.f32 %v3102, 1e-05
    %v3111 = vrsqrt.pop %v3103
    %v3112 = vrsqrt.pop %v3104
    %v3113 = vrsqrt.pop %v3105
    %v3114 = vrsqrt.pop %v3106
    %v3115 = vrsqrt.pop %v3107
    %v3116 = vrsqrt.pop %v3108
    %v3117 = vrsqrt.pop %v3109
    %v3118 = vrsqrt.pop %v3110
    %v3127 = vcombine.low %v3111, %v3112
    %v3128 = vcombine.low %v3113, %v3114
    %v3129 = vcombine.low %v3115, %v3116
    %v3130 = vcombine.low %v3117, %v3118
    %v3132 = vunpack.c.l.s4 1966171168
    %v3133 = vunpack.c.0.s8 %v3132
    %v3134 = vlaneseq
    %v3135 = vshrl.u32 %v3134, 7
    %v3136 = vsub.s32 %v3133, %v3135
    %v3137 = vrot.slane %v3127, %v3136
    %v3139 = vunpack.c.l.s4 1966171168
    %v3140 = vunpack.c.0.s8 %v3139
    %v3141 = vlaneseq
    %v3142 = vshrl.u32 %v3141, 7
    %v3143 = vsub.s32 %v3140, %v3142
    %v3144 = vrot.slane %v3128, %v3143
    %v3146 = vunpack.c.l.s4 1966171168
    %v3147 = vunpack.c.0.s8 %v3146
    %v3148 = vlaneseq
    %v3149 = vshrl.u32 %v3148, 7
    %v3150 = vsub.s32 %v3147, %v3149
    %v3151 = vrot.slane %v3129, %v3150
    %v3153 = vunpack.c.l.s4 1966171168
    %v3154 = vunpack.c.0.s8 %v3153
    %v3155 = vlaneseq
    %v3156 = vshrl.u32 %v3155, 7
    %v3157 = vsub.s32 %v3154, %v3156
    %v3158 = vrot.slane %v3130, %v3157
    %v3159 = vcombine.low %v3137, %v3144
    %v3160 = vcombine.low %v3151, %v3158
    %v3162 = vunpack.c.l.s4 1966171168
    %v3163 = vunpack.c.0.s8 %v3162
    %v3164 = vlaneseq
    %v3165 = vshrl.u32 %v3164, 7
    %v3166 = vsub.s32 %v3163, %v3165
    %v3167 = vrot.slane %v3159, %v3166
    %v3169 = vunpack.c.l.s4 1966171168
    %v3170 = vunpack.c.0.s8 %v3169
    %v3171 = vlaneseq
    %v3172 = vshrl.u32 %v3171, 7
    %v3173 = vsub.s32 %v3170, %v3172
    %v3174 = vrot.slane %v3160, %v3173
    %v3175 = vcombine.low %v3167, %v3174
    %v3177 = vmul.f32 %v2954, %v3175
    %v3179 = vlaneseq
    %v3180 = vshrl.u32 %v3179, 7
    %v3181 = vsub.s32 0, %v3180
    %v3182 = vrot.slane %v3177, %v3181
    %v3183 = vlaneseq
    %v3184 = vshrl.u32 %v3183, 7
    %v3185 = vsub.s32 1, %v3184
    %v3186 = vrot.slane %v3177, %v3185
    %v3187 = vlaneseq
    %v3188 = vshrl.u32 %v3187, 7
    %v3189 = vsub.s32 2, %v3188
    %v3190 = vrot.slane %v3177, %v3189
    %v3191 = vlaneseq
    %v3192 = vshrl.u32 %v3191, 7
    %v3193 = vsub.s32 3, %v3192
    %v3194 = vrot.slane %v3177, %v3193
    %v3195 = vlaneseq
    %v3196 = vshrl.u32 %v3195, 7
    %v3197 = vsub.s32 4, %v3196
    %v3198 = vrot.slane %v3177, %v3197
    %v3199 = vlaneseq
    %v3200 = vshrl.u32 %v3199, 7
    %v3201 = vsub.s32 5, %v3200
    %v3202 = vrot.slane %v3177, %v3201
    %v3203 = vlaneseq
    %v3204 = vshrl.u32 %v3203, 7
    %v3205 = vsub.s32 6, %v3204
    %v3206 = vrot.slane %v3177, %v3205
    %v3207 = vlaneseq
    %v3208 = vshrl.u32 %v3207, 7
    %v3209 = vsub.s32 7, %v3208
    %v3210 = vrot.slane %v3177, %v3209
    %v3219 = vmul.f32 %v2453, %v3182
    %v3220 = vmul.f32 %v2455, %v3186
    %v3221 = vmul.f32 %v2617, %v3190
    %v3222 = vmul.f32 %v2619, %v3194
    %v3223 = vmul.f32 %v2781, %v3198
    %v3224 = vmul.f32 %v2783, %v3202
    %v3225 = vmul.f32 %v2945, %v3206
    %v3226 = vmul.f32 %v2947, %v3210
    %v3227 = vmul.f32 %v3007, %v3182
    %v3228 = vmul.f32 %v3008, %v3186
    %v3229 = vmul.f32 %v3009, %v3190
    %v3230 = vmul.f32 %v3010, %v3194
    %v3231 = vmul.f32 %v3011, %v3198
    %v3232 = vmul.f32 %v3012, %v3202
    %v3233 = vmul.f32 %v3013, %v3206
    %v3234 = vmul.f32 %v3014, %v3210
    %v3243 = vcombine.low %v3227, %v3228
    %v3244 = vcombine.low %v3229, %v3230
    %v3245 = vcombine.low %v3231, %v3232
    %v3246 = vcombine.low %v3233, %v3234
    %v3248 = vunpack.c.l.s4 1966171168
    %v3249 = vunpack.c.0.s8 %v3248
    %v3250 = vlaneseq
    %v3251 = vshrl.u32 %v3250, 7
    %v3252 = vsub.s32 %v3249, %v3251
    %v3253 = vrot.slane %v3243, %v3252
    %v3255 = vunpack.c.l.s4 1966171168
    %v3256 = vunpack.c.0.s8 %v3255
    %v3257 = vlaneseq
    %v3258 = vshrl.u32 %v3257, 7
    %v3259 = vsub.s32 %v3256, %v3258
    %v3260 = vrot.slane %v3244, %v3259
    %v3262 = vunpack.c.l.s4 1966171168
    %v3263 = vunpack.c.0.s8 %v3262
    %v3264 = vlaneseq
    %v3265 = vshrl.u32 %v3264, 7
    %v3266 = vsub.s32 %v3263, %v3265
    %v3267 = vrot.slane %v3245, %v3266
    %v3269 = vunpack.c.l.s4 1966171168
    %v3270 = vunpack.c.0.s8 %v3269
    %v3271 = vlaneseq
    %v3272 = vshrl.u32 %v3271, 7
    %v3273 = vsub.s32 %v3270, %v3272
    %v3274 = vrot.slane %v3246, %v3273
    %v3275 = vcombine.low %v3253, %v3260
    %v3276 = vcombine.low %v3267, %v3274
    %v3278 = vunpack.c.l.s4 1966171168
    %v3279 = vunpack.c.0.s8 %v3278
    %v3280 = vlaneseq
    %v3281 = vshrl.u32 %v3280, 7
    %v3282 = vsub.s32 %v3279, %v3281
    %v3283 = vrot.slane %v3275, %v3282
    %v3285 = vunpack.c.l.s4 1966171168
    %v3286 = vunpack.c.0.s8 %v3285
    %v3287 = vlaneseq
    %v3288 = vshrl.u32 %v3287, 7
    %v3289 = vsub.s32 %v3286, %v3288
    %v3290 = vrot.slane %v3276, %v3289
    %v3291 = vcombine.low %v3283, %v3290
    %v3293 = vsub.f32 %v2958, %v3291
    %v3295 = vlaneseq
    %v3296 = vshrl.u32 %v3295, 7
    %v3297 = vsub.s32 0, %v3296
    %v3298 = vrot.slane %v3293, %v3297
    %v3299 = vlaneseq
    %v3300 = vshrl.u32 %v3299, 7
    %v3301 = vsub.s32 1, %v3300
    %v3302 = vrot.slane %v3293, %v3301
    %v3303 = vlaneseq
    %v3304 = vshrl.u32 %v3303, 7
    %v3305 = vsub.s32 2, %v3304
    %v3306 = vrot.slane %v3293, %v3305
    %v3307 = vlaneseq
    %v3308 = vshrl.u32 %v3307, 7
    %v3309 = vsub.s32 3, %v3308
    %v3310 = vrot.slane %v3293, %v3309
    %v3311 = vlaneseq
    %v3312 = vshrl.u32 %v3311, 7
    %v3313 = vsub.s32 4, %v3312
    %v3314 = vrot.slane %v3293, %v3313
    %v3315 = vlaneseq
    %v3316 = vshrl.u32 %v3315, 7
    %v3317 = vsub.s32 5, %v3316
    %v3318 = vrot.slane %v3293, %v3317
    %v3319 = vlaneseq
    %v3320 = vshrl.u32 %v3319, 7
    %v3321 = vsub.s32 6, %v3320
    %v3322 = vrot.slane %v3293, %v3321
    %v3323 = vlaneseq
    %v3324 = vshrl.u32 %v3323, 7
    %v3325 = vsub.s32 7, %v3324
    %v3326 = vrot.slane %v3293, %v3325
    %v3335 = vadd.f32 %v3219, %v3298
    %v3336 = vadd.f32 %v3220, %v3302
    %v3337 = vadd.f32 %v3221, %v3306
    %v3338 = vadd.f32 %v3222, %v3310
    %v3339 = vadd.f32 %v3223, %v3314
    %v3340 = vadd.f32 %v3224, %v3318
    %v3341 = vadd.f32 %v3225, %v3322
    %v3342 = vadd.f32 %v3226, %v3326
    %v3343 = vadd.f32 %v3335, %v1362
    %v3344 = vadd.f32 %v3336, %v1363
    %v3345 = vadd.f32 %v3337, %v1364
    %v3346 = vadd.f32 %v3338, %v1365
    %v3347 = vadd.f32 %v3339, %v1366
    %v3348 = vadd.f32 %v3340, %v1367
    %v3349 = vadd.f32 %v3341, %v1368
    %v3350 = vadd.f32 %v3342, %v1369
    %v3351 = vmax.f32 %v3343, 0.0
    %v3352 = vmax.f32 %v3344, 0.0
    %v3353 = vmax.f32 %v3345, 0.0
    %v3354 = vmax.f32 %v3346, 0.0
    %v3355 = vmax.f32 %v3347, 0.0
    %v3356 = vmax.f32 %v3348, 0.0
    %v3357 = vmax.f32 %v3349, 0.0
    %v3358 = vmax.f32 %v3350, 0.0
    %s3359 = smul.u32 %s1771, 2
    %s3360 = sshll.u32 %s3359, 4
    %3361 = dma.done %s113, %s3360
    %v3362 = vpack.c.bf16 %v3351, %v3351
    %v3363 = vpack.c.bf16 %v3352, %v3352
    %v3364 = vpack.c.bf16 %v3353, %v3353
    %v3365 = vpack.c.bf16 %v3354, %v3354
    %v3366 = vpack.c.bf16 %v3355, %v3355
    %v3367 = vpack.c.bf16 %v3356, %v3356
    %v3368 = vpack.c.bf16 %v3357, %v3357
    %v3369 = vpack.c.bf16 %v3358, %v3358
    %v3370 = vld [vmem:[#allocation3] sm:$0xff]
    %v3371 = vld [vmem:[#allocation3 + $0x8] sm:$0xff]
    %v3372 = vld [vmem:[#allocation3 + $0x10] sm:$0xff]
    %v3373 = vld [vmem:[#allocation3 + $0x18] sm:$0xff]
    %v3374 = vld [vmem:[#allocation3 + $0x20] sm:$0xff]
    %v3375 = vld [vmem:[#allocation3 + $0x28] sm:$0xff]
    %v3376 = vld [vmem:[#allocation3 + $0x30] sm:$0xff]
    %v3377 = vld [vmem:[#allocation3 + $0x38] sm:$0xff]
    %v3378 = vld [vmem:[#allocation3 + $0x40] sm:$0xff]
    %v3379 = vld [vmem:[#allocation3 + $0x48] sm:$0xff]
    %v3380 = vld [vmem:[#allocation3 + $0x50] sm:$0xff]
    %v3381 = vld [vmem:[#allocation3 + $0x58] sm:$0xff]
    %v3382 = vld [vmem:[#allocation3 + $0x60] sm:$0xff]
    %v3383 = vld [vmem:[#allocation3 + $0x68] sm:$0xff]
    %v3384 = vld [vmem:[#allocation3 + $0x70] sm:$0xff]
    %v3385 = vld [vmem:[#allocation3 + $0x78] sm:$0xff]
    %v3386 = vld [vmem:[#allocation3 + $0x80] sm:$0xff]
    %v3387 = vld [vmem:[#allocation3 + $0x88] sm:$0xff]
    %v3388 = vld [vmem:[#allocation3 + $0x90] sm:$0xff]
    %v3389 = vld [vmem:[#allocation3 + $0x98] sm:$0xff]
    %v3390 = vld [vmem:[#allocation3 + $0xa0] sm:$0xff]
    %v3391 = vld [vmem:[#allocation3 + $0xa8] sm:$0xff]
    %v3392 = vld [vmem:[#allocation3 + $0xb0] sm:$0xff]
    %v3393 = vld [vmem:[#allocation3 + $0xb8] sm:$0xff]
    %v3394 = vld [vmem:[#allocation3 + $0xc0] sm:$0xff]
    %v3395 = vld [vmem:[#allocation3 + $0xc8] sm:$0xff]
    %v3396 = vld [vmem:[#allocation3 + $0xd0] sm:$0xff]
    %v3397 = vld [vmem:[#allocation3 + $0xd8] sm:$0xff]
    %v3398 = vld [vmem:[#allocation3 + $0xe0] sm:$0xff]
    %v3399 = vld [vmem:[#allocation3 + $0xe8] sm:$0xff]
    %v3400 = vld [vmem:[#allocation3 + $0xf0] sm:$0xff]
    %v3401 = vld [vmem:[#allocation3 + $0xf8] sm:$0xff]
    %v3402 = vld [vmem:[#allocation3 + $0x100] sm:$0xff]
    %v3403 = vld [vmem:[#allocation3 + $0x108] sm:$0xff]
    %v3404 = vld [vmem:[#allocation3 + $0x110] sm:$0xff]
    %v3405 = vld [vmem:[#allocation3 + $0x118] sm:$0xff]
    %v3406 = vld [vmem:[#allocation3 + $0x120] sm:$0xff]
    %v3407 = vld [vmem:[#allocation3 + $0x128] sm:$0xff]
    %v3408 = vld [vmem:[#allocation3 + $0x130] sm:$0xff]
    %v3409 = vld [vmem:[#allocation3 + $0x138] sm:$0xff]
    %v3410 = vld [vmem:[#allocation3 + $0x140] sm:$0xff]
    %v3411 = vld [vmem:[#allocation3 + $0x148] sm:$0xff]
    %v3412 = vld [vmem:[#allocation3 + $0x150] sm:$0xff]
    %v3413 = vld [vmem:[#allocation3 + $0x158] sm:$0xff]
    %v3414 = vld [vmem:[#allocation3 + $0x160] sm:$0xff]
    %v3415 = vld [vmem:[#allocation3 + $0x168] sm:$0xff]
    %v3416 = vld [vmem:[#allocation3 + $0x170] sm:$0xff]
    %v3417 = vld [vmem:[#allocation3 + $0x178] sm:$0xff]
    %v3418 = vld [vmem:[#allocation3 + $0x180] sm:$0xff]
    %v3419 = vld [vmem:[#allocation3 + $0x188] sm:$0xff]
    %v3420 = vld [vmem:[#allocation3 + $0x190] sm:$0xff]
    %v3421 = vld [vmem:[#allocation3 + $0x198] sm:$0xff]
    %v3422 = vld [vmem:[#allocation3 + $0x1a0] sm:$0xff]
    %v3423 = vld [vmem:[#allocation3 + $0x1a8] sm:$0xff]
    %v3424 = vld [vmem:[#allocation3 + $0x1b0] sm:$0xff]
    %v3425 = vld [vmem:[#allocation3 + $0x1b8] sm:$0xff]
    %v3426 = vld [vmem:[#allocation3 + $0x1c0] sm:$0xff]
    %v3427 = vld [vmem:[#allocation3 + $0x1c8] sm:$0xff]
    %v3428 = vld [vmem:[#allocation3 + $0x1d0] sm:$0xff]
    %v3429 = vld [vmem:[#allocation3 + $0x1d8] sm:$0xff]
    %v3430 = vld [vmem:[#allocation3 + $0x1e0] sm:$0xff]
    %v3431 = vld [vmem:[#allocation3 + $0x1e8] sm:$0xff]
    %v3432 = vld [vmem:[#allocation3 + $0x1f0] sm:$0xff]
    %v3433 = vld [vmem:[#allocation3 + $0x1f8] sm:$0xff]
    %v3434 = vld [vmem:[#allocation3 + $0x200] sm:$0xff]
    %v3435 = vld [vmem:[#allocation3 + $0x208] sm:$0xff]
    %v3436 = vld [vmem:[#allocation3 + $0x210] sm:$0xff]
    %v3437 = vld [vmem:[#allocation3 + $0x218] sm:$0xff]
    %v3438 = vld [vmem:[#allocation3 + $0x220] sm:$0xff]
    %v3439 = vld [vmem:[#allocation3 + $0x228] sm:$0xff]
    %v3440 = vld [vmem:[#allocation3 + $0x230] sm:$0xff]
    %v3441 = vld [vmem:[#allocation3 + $0x238] sm:$0xff]
    %v3442 = vld [vmem:[#allocation3 + $0x240] sm:$0xff]
    %v3443 = vld [vmem:[#allocation3 + $0x248] sm:$0xff]
    %v3444 = vld [vmem:[#allocation3 + $0x250] sm:$0xff]
    %v3445 = vld [vmem:[#allocation3 + $0x258] sm:$0xff]
    %v3446 = vld [vmem:[#allocation3 + $0x260] sm:$0xff]
    %v3447 = vld [vmem:[#allocation3 + $0x268] sm:$0xff]
    %v3448 = vld [vmem:[#allocation3 + $0x270] sm:$0xff]
    %v3449 = vld [vmem:[#allocation3 + $0x278] sm:$0xff]
    %v3450 = vld [vmem:[#allocation3 + $0x280] sm:$0xff]
    %v3451 = vld [vmem:[#allocation3 + $0x288] sm:$0xff]
    %v3452 = vld [vmem:[#allocation3 + $0x290] sm:$0xff]
    %v3453 = vld [vmem:[#allocation3 + $0x298] sm:$0xff]
    %v3454 = vld [vmem:[#allocation3 + $0x2a0] sm:$0xff]
    %v3455 = vld [vmem:[#allocation3 + $0x2a8] sm:$0xff]
    %v3456 = vld [vmem:[#allocation3 + $0x2b0] sm:$0xff]
    %v3457 = vld [vmem:[#allocation3 + $0x2b8] sm:$0xff]
    %v3458 = vld [vmem:[#allocation3 + $0x2c0] sm:$0xff]
    %v3459 = vld [vmem:[#allocation3 + $0x2c8] sm:$0xff]
    %v3460 = vld [vmem:[#allocation3 + $0x2d0] sm:$0xff]
    %v3461 = vld [vmem:[#allocation3 + $0x2d8] sm:$0xff]
    %v3462 = vld [vmem:[#allocation3 + $0x2e0] sm:$0xff]
    %v3463 = vld [vmem:[#allocation3 + $0x2e8] sm:$0xff]
    %v3464 = vld [vmem:[#allocation3 + $0x2f0] sm:$0xff]
    %v3465 = vld [vmem:[#allocation3 + $0x2f8] sm:$0xff]
    %v3466 = vld [vmem:[#allocation3 + $0x300] sm:$0xff]
    %v3467 = vld [vmem:[#allocation3 + $0x308] sm:$0xff]
    %v3468 = vld [vmem:[#allocation3 + $0x310] sm:$0xff]
    %v3469 = vld [vmem:[#allocation3 + $0x318] sm:$0xff]
    %v3470 = vld [vmem:[#allocation3 + $0x320] sm:$0xff]
    %v3471 = vld [vmem:[#allocation3 + $0x328] sm:$0xff]
    %v3472 = vld [vmem:[#allocation3 + $0x330] sm:$0xff]
    %v3473 = vld [vmem:[#allocation3 + $0x338] sm:$0xff]
    %v3474 = vld [vmem:[#allocation3 + $0x340] sm:$0xff]
    %v3475 = vld [vmem:[#allocation3 + $0x348] sm:$0xff]
    %v3476 = vld [vmem:[#allocation3 + $0x350] sm:$0xff]
    %v3477 = vld [vmem:[#allocation3 + $0x358] sm:$0xff]
    %v3478 = vld [vmem:[#allocation3 + $0x360] sm:$0xff]
    %v3479 = vld [vmem:[#allocation3 + $0x368] sm:$0xff]
    %v3480 = vld [vmem:[#allocation3 + $0x370] sm:$0xff]
    %v3481 = vld [vmem:[#allocation3 + $0x378] sm:$0xff]
    %v3482 = vld [vmem:[#allocation3 + $0x380] sm:$0xff]
    %v3483 = vld [vmem:[#allocation3 + $0x388] sm:$0xff]
    %v3484 = vld [vmem:[#allocation3 + $0x390] sm:$0xff]
    %v3485 = vld [vmem:[#allocation3 + $0x398] sm:$0xff]
    %v3486 = vld [vmem:[#allocation3 + $0x3a0] sm:$0xff]
    %v3487 = vld [vmem:[#allocation3 + $0x3a8] sm:$0xff]
    %v3488 = vld [vmem:[#allocation3 + $0x3b0] sm:$0xff]
    %v3489 = vld [vmem:[#allocation3 + $0x3b8] sm:$0xff]
    %v3490 = vld [vmem:[#allocation3 + $0x3c0] sm:$0xff]
    %v3491 = vld [vmem:[#allocation3 + $0x3c8] sm:$0xff]
    %v3492 = vld [vmem:[#allocation3 + $0x3d0] sm:$0xff]
    %v3493 = vld [vmem:[#allocation3 + $0x3d8] sm:$0xff]
    %v3494 = vld [vmem:[#allocation3 + $0x3e0] sm:$0xff]
    %v3495 = vld [vmem:[#allocation3 + $0x3e8] sm:$0xff]
    %v3496 = vld [vmem:[#allocation3 + $0x3f0] sm:$0xff]
    %v3497 = vld [vmem:[#allocation3 + $0x3f8] sm:$0xff]
    %3498 = vmatprep.subr.bf16.mxu0 %v3371
    %3499 = vmatpush1.bf16.msra.mxu0 %v3370
    %3500 = vmatprep.subr.bf16.mxu0 %v3373
    %3501 = vmatpush1.bf16.msra.mxu0 %v3372
    %3502 = vmatprep.subr.bf16.mxu0 %v3375
    %3503 = vmatpush1.bf16.msra.mxu0 %v3374
    %3504 = vmatprep.subr.bf16.mxu0 %v3377
    %3505 = vmatpush1.bf16.msra.mxu0 %v3376
    %3506 = vmatprep.subr.bf16.mxu0 %v3379
    %3507 = vmatpush1.bf16.msra.mxu0 %v3378
    %3508 = vmatprep.subr.bf16.mxu0 %v3381
    %3509 = vmatpush1.bf16.msra.mxu0 %v3380
    %3510 = vmatprep.subr.bf16.mxu0 %v3383
    %3511 = vmatpush1.bf16.msra.mxu0 %v3382
    %3512 = vmatprep.subr.bf16.mxu0 %v3385
    %3513 = vmatpush1.bf16.msra.mxu0 %v3384
    %3514 = vmatprep.subr.bf16.mxu0 %v3387
    %3515 = vmatpush1.bf16.msra.mxu0 %v3386
    %3516 = vmatprep.subr.bf16.mxu0 %v3389
    %3517 = vmatpush1.bf16.msra.mxu0 %v3388
    %3518 = vmatprep.subr.bf16.mxu0 %v3391
    %3519 = vmatpush1.bf16.msra.mxu0 %v3390
    %3520 = vmatprep.subr.bf16.mxu0 %v3393
    %3521 = vmatpush1.bf16.msra.mxu0 %v3392
    %3522 = vmatprep.subr.bf16.mxu0 %v3395
    %3523 = vmatpush1.bf16.msra.mxu0 %v3394
    %3524 = vmatprep.subr.bf16.mxu0 %v3397
    %3525 = vmatpush1.bf16.msra.mxu0 %v3396
    %3526 = vmatprep.subr.bf16.mxu0 %v3399
    %3527 = vmatpush1.bf16.msra.mxu0 %v3398
    %3528 = vmatprep.subr.bf16.mxu0 %v3401
    %3529 = vmatpush1.bf16.msra.mxu0 %v3400
    %3530 = vmatprep.mubr.bf16.mxu0 %v3363
    %3531 = vmatmul.mubr.bf16.gmra.mrb[0].mxu0 %v3362
    %v3532 = vpop.f32.mrb[0].mxu0
    %v3533 = vadd.f32 0.0, %v3532
    %v3534 = vpop.f32.mrb[0].mxu0
    %v3535 = vadd.f32 0.0, %v3534
    %v3536 = vpop.f32.mrb[0].mxu0
    %v3537 = vpop.f32.mrb[0].mxu0
    %3538 = vdwg.mxu0
    %3539 = vmatprep.subr.bf16.mxu0 %v3403
    %3540 = vmatpush1.bf16.msra.mxu0 %v3402
    %3541 = vmatprep.subr.bf16.mxu0 %v3405
    %3542 = vmatpush1.bf16.msra.mxu0 %v3404
    %3543 = vmatprep.subr.bf16.mxu0 %v3407
    %3544 = vmatpush1.bf16.msra.mxu0 %v3406
    %3545 = vmatprep.subr.bf16.mxu0 %v3409
    %3546 = vmatpush1.bf16.msra.mxu0 %v3408
    %3547 = vmatprep.subr.bf16.mxu0 %v3411
    %3548 = vmatpush1.bf16.msra.mxu0 %v3410
    %3549 = vmatprep.subr.bf16.mxu0 %v3413
    %3550 = vmatpush1.bf16.msra.mxu0 %v3412
    %3551 = vmatprep.subr.bf16.mxu0 %v3415
    %3552 = vmatpush1.bf16.msra.mxu0 %v3414
    %3553 = vmatprep.subr.bf16.mxu0 %v3417
    %3554 = vmatpush1.bf16.msra.mxu0 %v3416
    %3555 = vmatprep.subr.bf16.mxu0 %v3419
    %3556 = vmatpush1.bf16.msra.mxu0 %v3418
    %3557 = vmatprep.subr.bf16.mxu0 %v3421
    %3558 = vmatpush1.bf16.msra.mxu0 %v3420
    %3559 = vmatprep.subr.bf16.mxu0 %v3423
    %3560 = vmatpush1.bf16.msra.mxu0 %v3422
    %3561 = vmatprep.subr.bf16.mxu0 %v3425
    %3562 = vmatpush1.bf16.msra.mxu0 %v3424
    %3563 = vmatprep.subr.bf16.mxu0 %v3427
    %3564 = vmatpush1.bf16.msra.mxu0 %v3426
    %3565 = vmatprep.subr.bf16.mxu0 %v3429
    %3566 = vmatpush1.bf16.msra.mxu0 %v3428
    %3567 = vmatprep.subr.bf16.mxu0 %v3431
    %3568 = vmatpush1.bf16.msra.mxu0 %v3430
    %3569 = vmatprep.subr.bf16.mxu0 %v3433
    %3570 = vmatpush1.bf16.msra.mxu0 %v3432
    %3571 = vmatprep.mubr.bf16.mxu0 %v3365
    %3572 = vmatmul.mubr.bf16.gmra.mrb[0].mxu0 %v3364
    %v3573 = vpop.f32.mrb[0].mxu0
    %v3574 = vadd.f32 %v3533, %v3573
    %v3575 = vpop.f32.mrb[0].mxu0
    %v3576 = vadd.f32 %v3535, %v3575
    %v3577 = vpop.f32.mrb[0].mxu0
    %v3578 = vpop.f32.mrb[0].mxu0
    %3579 = vdwg.mxu0
    %3580 = vmatprep.subr.bf16.mxu0 %v3435
    %3581 = vmatpush1.bf16.msra.mxu0 %v3434
    %3582 = vmatprep.subr.bf16.mxu0 %v3437
    %3583 = vmatpush1.bf16.msra.mxu0 %v3436
    %3584 = vmatprep.subr.bf16.mxu0 %v3439
    %3585 = vmatpush1.bf16.msra.mxu0 %v3438
    %3586 = vmatprep.subr.bf16.mxu0 %v3441
    %3587 = vmatpush1.bf16.msra.mxu0 %v3440
    %3588 = vmatprep.subr.bf16.mxu0 %v3443
    %3589 = vmatpush1.bf16.msra.mxu0 %v3442
    %3590 = vmatprep.subr.bf16.mxu0 %v3445
    %3591 = vmatpush1.bf16.msra.mxu0 %v3444
    %3592 = vmatprep.subr.bf16.mxu0 %v3447
    %3593 = vmatpush1.bf16.msra.mxu0 %v3446
    %3594 = vmatprep.subr.bf16.mxu0 %v3449
    %3595 = vmatpush1.bf16.msra.mxu0 %v3448
    %3596 = vmatprep.subr.bf16.mxu0 %v3451
    %3597 = vmatpush1.bf16.msra.mxu0 %v3450
    %3598 = vmatprep.subr.bf16.mxu0 %v3453
    %3599 = vmatpush1.bf16.msra.mxu0 %v3452
    %3600 = vmatprep.subr.bf16.mxu0 %v3455
    %3601 = vmatpush1.bf16.msra.mxu0 %v3454
    %3602 = vmatprep.subr.bf16.mxu0 %v3457
    %3603 = vmatpush1.bf16.msra.mxu0 %v3456
    %3604 = vmatprep.subr.bf16.mxu0 %v3459
    %3605 = vmatpush1.bf16.msra.mxu0 %v3458
    %3606 = vmatprep.subr.bf16.mxu0 %v3461
    %3607 = vmatpush1.bf16.msra.mxu0 %v3460
    %3608 = vmatprep.subr.bf16.mxu0 %v3463
    %3609 = vmatpush1.bf16.msra.mxu0 %v3462
    %3610 = vmatprep.subr.bf16.mxu0 %v3465
    %3611 = vmatpush1.bf16.msra.mxu0 %v3464
    %3612 = vmatprep.mubr.bf16.mxu0 %v3367
    %3613 = vmatmul.mubr.bf16.gmra.mrb[0].mxu0 %v3366
    %v3614 = vpop.f32.mrb[0].mxu0
    %v3615 = vadd.f32 %v3574, %v3614
    %v3616 = vpop.f32.mrb[0].mxu0
    %v3617 = vadd.f32 %v3576, %v3616
    %v3618 = vpop.f32.mrb[0].mxu0
    %v3619 = vpop.f32.mrb[0].mxu0
    %3620 = vdwg.mxu0
    %3621 = vmatprep.subr.bf16.mxu0 %v3467
    %3622 = vmatpush1.bf16.msra.mxu0 %v3466
    %3623 = vmatprep.subr.bf16.mxu0 %v3469
    %3624 = vmatpush1.bf16.msra.mxu0 %v3468
    %3625 = vmatprep.subr.bf16.mxu0 %v3471
    %3626 = vmatpush1.bf16.msra.mxu0 %v3470
    %3627 = vmatprep.subr.bf16.mxu0 %v3473
    %3628 = vmatpush1.bf16.msra.mxu0 %v3472
    %3629 = vmatprep.subr.bf16.mxu0 %v3475
    %3630 = vmatpush1.bf16.msra.mxu0 %v3474
    %3631 = vmatprep.subr.bf16.mxu0 %v3477
    %3632 = vmatpush1.bf16.msra.mxu0 %v3476
    %3633 = vmatprep.subr.bf16.mxu0 %v3479
    %3634 = vmatpush1.bf16.msra.mxu0 %v3478
    %3635 = vmatprep.subr.bf16.mxu0 %v3481
    %3636 = vmatpush1.bf16.msra.mxu0 %v3480
    %3637 = vmatprep.subr.bf16.mxu0 %v3483
    %3638 = vmatpush1.bf16.msra.mxu0 %v3482
    %3639 = vmatprep.subr.bf16.mxu0 %v3485
    %3640 = vmatpush1.bf16.msra.mxu0 %v3484
    %3641 = vmatprep.subr.bf16.mxu0 %v3487
    %3642 = vmatpush1.bf16.msra.mxu0 %v3486
    %3643 = vmatprep.subr.bf16.mxu0 %v3489
    %3644 = vmatpush1.bf16.msra.mxu0 %v3488
    %3645 = vmatprep.subr.bf16.mxu0 %v3491
    %3646 = vmatpush1.bf16.msra.mxu0 %v3490
    %3647 = vmatprep.subr.bf16.mxu0 %v3493
    %3648 = vmatpush1.bf16.msra.mxu0 %v3492
    %3649 = vmatprep.subr.bf16.mxu0 %v3495
    %3650 = vmatpush1.bf16.msra.mxu0 %v3494
    %3651 = vmatprep.subr.bf16.mxu0 %v3497
    %3652 = vmatpush1.bf16.msra.mxu0 %v3496
    %3653 = vmatprep.mubr.bf16.mxu0 %v3369
    %3654 = vmatmul.mubr.bf16.gmra.mrb[0].mxu0 %v3368
    %v3655 = vpop.f32.mrb[0].mxu0
    %v3656 = vadd.f32 %v3615, %v3655
    %v3657 = vpop.f32.mrb[0].mxu0
    %v3658 = vadd.f32 %v3617, %v3657
    %v3659 = vpop.f32.mrb[0].mxu0
    %v3660 = vpop.f32.mrb[0].mxu0
    %3661 = vdwg.mxu0
    %v3662 = vld [vmem:[#allocation17] sm:$0x1]
    %v3663 = vlaneseq
    %v3664 = vshrl.u32 %v3663, 7
    %v3665 = vsub.s32 0, %v3664
    %v3666 = vrot.slane %v3662, %v3665
    %v3667 = vadd.f32 %v3658, %v3666
    %v3668 = vld [vmem:[#allocation17 + $0x1] sm:$0x1]
    %v3669 = vld [vmem:[#allocation17 + $0x2] sm:$0x1]
    %v3670 = vrot.slane %v3656, 4
    %v3671 = vadd.f32 %v3656, %v3670
    %v3672 = vrot.slane %v3671, 2
    %v3673 = vadd.f32 %v3671, %v3672
    %v3674 = vrot.slane %v3673, 1
    %v3675 = vadd.f32 %v3673, %v3674
    %v3676 = vmul.f32 %v3675, %v1426
    %v3677 = vmul.f32 %v3656, %v3656
    %v3678 = vrot.slane %v3677, 4
    %v3679 = vadd.f32 %v3677, %v3678
    %v3680 = vrot.slane %v3679, 2
    %v3681 = vadd.f32 %v3679, %v3680
    %v3682 = vrot.slane %v3681, 1
    %v3683 = vadd.f32 %v3681, %v3682
    %v3684 = vmul.f32 %v3683, %v1426
    %v3685 = vmul.f32 %v3676, %v3676
    %v3686 = vsub.f32 %v3684, %v3685
    %v3687 = vmax.f32 %v3686, 0.0
    %v3688 = vadd.f32 %v3687, 1e-05
    %v3689 = vrsqrt.pop %v3688
    %v3690 = vmul.f32 %v3668, %v3689
    %v3691 = vlaneseq
    %v3692 = vshrl.u32 %v3691, 7
    %v3693 = vsub.s32 0, %v3692
    %v3694 = vrot.slane %v3690, %v3693
    %v3695 = vmul.f32 %v3656, %v3694
    %v3696 = vmul.f32 %v3676, %v3690
    %v3697 = vsub.f32 %v3669, %v3696
    %v3698 = vlaneseq
    %v3699 = vshrl.u32 %v3698, 7
    %v3700 = vsub.s32 0, %v3699
    %v3701 = vrot.slane %v3697, %v3700
    %v3702 = vadd.f32 %v3695, %v3701
    %v3703 = vmax.f32 %v3702, 0.0
    %s3704 = smul.u32 4, 16
    %s3705 = smul.u32 %s3704, 1
    %s3706 = sshll.u32 %s3705, 4
    %3707 = dma.done %s148, %s3706
    %v3708 = vpack.c.bf16 %v3703, %v3703
    %v3709 = vld [vmem:[#allocation4] sm:$0xff]
    %v3710 = vld [vmem:[#allocation4 + $0x8] sm:$0xff]
    %v3711 = vld [vmem:[#allocation4 + $0x10] sm:$0xff]
    %v3712 = vld [vmem:[#allocation4 + $0x18] sm:$0xff]
    %v3713 = vld [vmem:[#allocation4 + $0x20] sm:$0xff]
    %v3714 = vld [vmem:[#allocation4 + $0x28] sm:$0xff]
    %v3715 = vld [vmem:[#allocation4 + $0x30] sm:$0xff]
    %v3716 = vld [vmem:[#allocation4 + $0x38] sm:$0xff]
    %3717 = vmatprep.subr.bf16.mxu0 0
    %3718 = vmatpush1.bf16.msra.mxu0 %v3709
    %3719 = vmatprep.subr.bf16.mxu0 0
    %3720 = vmatpush1.bf16.msra.mxu0 %v3710
    %3721 = vmatprep.subr.bf16.mxu0 0
    %3722 = vmatpush1.bf16.msra.mxu0 %v3711
    %3723 = vmatprep.subr.bf16.mxu0 0
    %3724 = vmatpush1.bf16.msra.mxu0 %v3712
    %3725 = vmatprep.subr.bf16.mxu0 0
    %3726 = vmatpush1.bf16.msra.mxu0 %v3713
    %3727 = vmatprep.subr.bf16.mxu0 0
    %3728 = vmatpush1.bf16.msra.mxu0 %v3714
    %3729 = vmatprep.subr.bf16.mxu0 0
    %3730 = vmatpush1.bf16.msra.mxu0 %v3715
    %3731 = vmatprep.subr.bf16.mxu0 0
    %3732 = vmatpush1.bf16.msra.mxu0 %v3716
    %3733 = vmatprep.subr.bf16.mxu0 0
    %3734 = vmatpush1.bf16.msra.mxu0 0
    %3735 = vmatprep.subr.bf16.mxu0 0
    %3736 = vmatpush1.bf16.msra.mxu0 0
    %3737 = vmatprep.subr.bf16.mxu0 0
    %3738 = vmatpush1.bf16.msra.mxu0 0
    %3739 = vmatprep.subr.bf16.mxu0 0
    %3740 = vmatpush1.bf16.msra.mxu0 0
    %3741 = vmatprep.subr.bf16.mxu0 0
    %3742 = vmatpush1.bf16.msra.mxu0 0
    %3743 = vmatprep.subr.bf16.mxu0 0
    %3744 = vmatpush1.bf16.msra.mxu0 0
    %3745 = vmatprep.subr.bf16.mxu0 0
    %3746 = vmatpush1.bf16.msra.mxu0 0
    %3747 = vmatprep.subr.bf16.mxu0 0
    %3748 = vmatpush1.bf16.msra.mxu0 0
    %3749 = vmatprep.mubr.bf16.mxu0 0
    %3750 = vmatmul.mubr.bf16.gmra.mrb[0].mxu0 %v3708
    %v3751 = vpop.f32.mrb[0].mxu0
    %v3752 = vadd.f32 0.0, %v3751
    %v3753 = vpop.f32.mrb[0].mxu0
    %v3754 = vpop.f32.mrb[0].mxu0
    %v3755 = vpop.f32.mrb[0].mxu0
    %3756 = vdwg.mxu0
    %v3757 = vld [vmem:[#allocation17 + $0x3] sm:$0x1]
    %v3758 = vld [vmem:[#allocation17 + $0x4] sm:$0x1]
    %v3759 = vrot.slane %v3752, 4
    %v3760 = vadd.f32 %v3752, %v3759
    %v3761 = vrot.slane %v3760, 2
    %v3762 = vadd.f32 %v3760, %v3761
    %v3763 = vrot.slane %v3762, 1
    %v3764 = vadd.f32 %v3762, %v3763
    %v3765 = vmul.f32 %v3764, %v1426
    %v3766 = vmul.f32 %v3752, %v3752
    %v3767 = vrot.slane %v3766, 4
    %v3768 = vadd.f32 %v3766, %v3767
    %v3769 = vrot.slane %v3768, 2
    %v3770 = vadd.f32 %v3768, %v3769
    %v3771 = vrot.slane %v3770, 1
    %v3772 = vadd.f32 %v3770, %v3771
    %v3773 = vmul.f32 %v3772, %v1426
    %v3774 = vmul.f32 %v3765, %v3765
    %v3775 = vsub.f32 %v3773, %v3774
    %v3776 = vmax.f32 %v3775, 0.0
    %v3777 = vadd.f32 %v3776, 1e-05
    %v3778 = vrsqrt.pop %v3777
    %v3779 = vmul.f32 %v3757, %v3778
    %v3780 = vlaneseq
    %v3781 = vshrl.u32 %v3780, 7
    %v3782 = vsub.s32 0, %v3781
    %v3783 = vrot.slane %v3779, %v3782
    %v3784 = vmul.f32 %v3752, %v3783
    %v3785 = vmul.f32 %v3765, %v3779
    %v3786 = vsub.f32 %v3758, %v3785
    %v3787 = vlaneseq
    %v3788 = vshrl.u32 %v3787, 7
    %v3789 = vsub.s32 0, %v3788
    %v3790 = vrot.slane %v3786, %v3789
    %v3791 = vadd.f32 %v3784, %v3790
    %v3792 = vadd.f32 %v3791, %v3667
    %v3793 = vmax.f32 %v3792, 0.0
    %s3794 = sshll.u32 %s3705, 4
    %3795 = dma.done %s160, %s3794
    %s3796 = sshll.u32 %s3705, 4
    %3797 = dma.done %s172, %s3796
    %v3798 = vpack.c.bf16 %v3793, %v3793
    %v3799 = vld [vmem:[#allocation5] sm:$0xff]
    %v3800 = vld [vmem:[#allocation5 + $0x8] sm:$0xff]
    %v3801 = vld [vmem:[#allocation5 + $0x10] sm:$0xff]
    %v3802 = vld [vmem:[#allocation5 + $0x18] sm:$0xff]
    %v3803 = vld [vmem:[#allocation5 + $0x20] sm:$0xff]
    %v3804 = vld [vmem:[#allocation5 + $0x28] sm:$0xff]
    %v3805 = vld [vmem:[#allocation5 + $0x30] sm:$0xff]
    %v3806 = vld [vmem:[#allocation5 + $0x38] sm:$0xff]
    %3807 = vmatprep.subr.bf16.mxu0 0
    %3808 = vmatpush1.bf16.msra.mxu0 %v3799
    %3809 = vmatprep.subr.bf16.mxu0 0
    %3810 = vmatpush1.bf16.msra.mxu0 %v3800
    %3811 = vmatprep.subr.bf16.mxu0 0
    %3812 = vmatpush1.bf16.msra.mxu0 %v3801
    %3813 = vmatprep.subr.bf16.mxu0 0
    %3814 = vmatpush1.bf16.msra.mxu0 %v3802
    %3815 = vmatprep.subr.bf16.mxu0 0
    %3816 = vmatpush1.bf16.msra.mxu0 %v3803
    %3817 = vmatprep.subr.bf16.mxu0 0
    %3818 = vmatpush1.bf16.msra.mxu0 %v3804
    %3819 = vmatprep.subr.bf16.mxu0 0
    %3820 = vmatpush1.bf16.msra.mxu0 %v3805
    %3821 = vmatprep.subr.bf16.mxu0 0
    %3822 = vmatpush1.bf16.msra.mxu0 %v3806
    %3823 = vmatprep.subr.bf16.mxu0 0
    %3824 = vmatpush1.bf16.msra.mxu0 0
    %3825 = vmatprep.subr.bf16.mxu0 0
    %3826 = vmatpush1.bf16.msra.mxu0 0
    %3827 = vmatprep.subr.bf16.mxu0 0
    %3828 = vmatpush1.bf16.msra.mxu0 0
    %3829 = vmatprep.subr.bf16.mxu0 0
    %3830 = vmatpush1.bf16.msra.mxu0 0
    %3831 = vmatprep.subr.bf16.mxu0 0
    %3832 = vmatpush1.bf16.msra.mxu0 0
    %3833 = vmatprep.subr.bf16.mxu0 0
    %3834 = vmatpush1.bf16.msra.mxu0 0
    %3835 = vmatprep.subr.bf16.mxu0 0
    %3836 = vmatpush1.bf16.msra.mxu0 0
    %3837 = vmatprep.subr.bf16.mxu0 0
    %3838 = vmatpush1.bf16.msra.mxu0 0
    %3839 = vmatprep.mubr.bf16.mxu0 0
    %3840 = vmatmul.mubr.bf16.gmra.mrb[0].mxu0 %v3798
    %v3841 = vpop.f32.mrb[0].mxu0
    %v3842 = vadd.f32 0.0, %v3841
    %v3843 = vpop.f32.mrb[0].mxu0
    %v3844 = vpop.f32.mrb[0].mxu0
    %v3845 = vpop.f32.mrb[0].mxu0
    %3846 = vdwg.mxu0
    %v3847 = vld [vmem:[#allocation17 + $0x5] sm:$0x1]
    %v3848 = vld [vmem:[#allocation17 + $0x6] sm:$0x1]
    %v3849 = vrot.slane %v3842, 4
    %v3850 = vadd.f32 %v3842, %v3849
    %v3851 = vrot.slane %v3850, 2
    %v3852 = vadd.f32 %v3850, %v3851
    %v3853 = vrot.slane %v3852, 1
    %v3854 = vadd.f32 %v3852, %v3853
    %v3855 = vmul.f32 %v3854, %v1426
    %v3856 = vmul.f32 %v3842, %v3842
    %v3857 = vrot.slane %v3856, 4
    %v3858 = vadd.f32 %v3856, %v3857
    %v3859 = vrot.slane %v3858, 2
    %v3860 = vadd.f32 %v3858, %v3859
    %v3861 = vrot.slane %v3860, 1
    %v3862 = vadd.f32 %v3860, %v3861
    %v3863 = vmul.f32 %v3862, %v1426
    %v3864 = vmul.f32 %v3855, %v3855
    %v3865 = vsub.f32 %v3863, %v3864
    %v3866 = vmax.f32 %v3865, 0.0
    %v3867 = vadd.f32 %v3866, 1e-05
    %v3868 = vrsqrt.pop %v3867
    %v3869 = vmul.f32 %v3847, %v3868
    %v3870 = vlaneseq
    %v3871 = vshrl.u32 %v3870, 7
    %v3872 = vsub.s32 0, %v3871
    %v3873 = vrot.slane %v3869, %v3872
    %v3874 = vmul.f32 %v3842, %v3873
    %v3875 = vmul.f32 %v3855, %v3869
    %v3876 = vsub.f32 %v3848, %v3875
    %v3877 = vlaneseq
    %v3878 = vshrl.u32 %v3877, 7
    %v3879 = vsub.s32 0, %v3878
    %v3880 = vrot.slane %v3876, %v3879
    %v3881 = vadd.f32 %v3874, %v3880
    %v3882 = vmax.f32 %v3881, 0.0
    %v3883 = vpack.c.bf16 %v3882, %v3882
    %v3884 = vld [vmem:[#allocation6] sm:$0xff]
    %v3885 = vld [vmem:[#allocation6 + $0x8] sm:$0xff]
    %v3886 = vld [vmem:[#allocation6 + $0x10] sm:$0xff]
    %v3887 = vld [vmem:[#allocation6 + $0x18] sm:$0xff]
    %v3888 = vld [vmem:[#allocation6 + $0x20] sm:$0xff]
    %v3889 = vld [vmem:[#allocation6 + $0x28] sm:$0xff]
    %v3890 = vld [vmem:[#allocation6 + $0x30] sm:$0xff]
    %v3891 = vld [vmem:[#allocation6 + $0x38] sm:$0xff]
    %3892 = vmatprep.subr.bf16.mxu0 0
    %3893 = vmatpush1.bf16.msra.mxu0 %v3884
    %3894 = vmatprep.subr.bf16.mxu0 0
    %3895 = vmatpush1.bf16.msra.mxu0 %v3885
    %3896 = vmatprep.subr.bf16.mxu0 0
    %3897 = vmatpush1.bf16.msra.mxu0 %v3886
    %3898 = vmatprep.subr.bf16.mxu0 0
    %3899 = vmatpush1.bf16.msra.mxu0 %v3887
    %3900 = vmatprep.subr.bf16.mxu0 0
    %3901 = vmatpush1.bf16.msra.mxu0 %v3888
    %3902 = vmatprep.subr.bf16.mxu0 0
    %3903 = vmatpush1.bf16.msra.mxu0 %v3889
    %3904 = vmatprep.subr.bf16.mxu0 0
    %3905 = vmatpush1.bf16.msra.mxu0 %v3890
    %3906 = vmatprep.subr.bf16.mxu0 0
    %3907 = vmatpush1.bf16.msra.mxu0 %v3891
    %3908 = vmatprep.subr.bf16.mxu0 0
    %3909 = vmatpush1.bf16.msra.mxu0 0
    %3910 = vmatprep.subr.bf16.mxu0 0
    %3911 = vmatpush1.bf16.msra.mxu0 0
    %3912 = vmatprep.subr.bf16.mxu0 0
    %3913 = vmatpush1.bf16.msra.mxu0 0
    %3914 = vmatprep.subr.bf16.mxu0 0
    %3915 = vmatpush1.bf16.msra.mxu0 0
    %3916 = vmatprep.subr.bf16.mxu0 0
    %3917 = vmatpush1.bf16.msra.mxu0 0
    %3918 = vmatprep.subr.bf16.mxu0 0
    %3919 = vmatpush1.bf16.msra.mxu0 0
    %3920 = vmatprep.subr.bf16.mxu0 0
    %3921 = vmatpush1.bf16.msra.mxu0 0
    %3922 = vmatprep.subr.bf16.mxu0 0
    %3923 = vmatpush1.bf16.msra.mxu0 0
    %3924 = vmatprep.mubr.bf16.mxu0 0
    %3925 = vmatmul.mubr.bf16.gmra.mrb[0].mxu0 %v3883
    %v3926 = vpop.f32.mrb[0].mxu0
    %v3927 = vadd.f32 0.0, %v3926
    %v3928 = vpop.f32.mrb[0].mxu0
    %v3929 = vpop.f32.mrb[0].mxu0
    %v3930 = vpop.f32.mrb[0].mxu0
    %3931 = vdwg.mxu0
    %v3932 = vld [vmem:[#allocation17 + $0x7] sm:$0x1]
    %v3933 = vld [vmem:[#allocation17 + $0x8] sm:$0x1]
    %v3934 = vrot.slane %v3927, 4
    %v3935 = vadd.f32 %v3927, %v3934
    %v3936 = vrot.slane %v3935, 2
    %v3937 = vadd.f32 %v3935, %v3936
    %v3938 = vrot.slane %v3937, 1
    %v3939 = vadd.f32 %v3937, %v3938
    %v3940 = vmul.f32 %v3939, %v1426
    %v3941 = vmul.f32 %v3927, %v3927
    %v3942 = vrot.slane %v3941, 4
    %v3943 = vadd.f32 %v3941, %v3942
    %v3944 = vrot.slane %v3943, 2
    %v3945 = vadd.f32 %v3943, %v3944
    %v3946 = vrot.slane %v3945, 1
    %v3947 = vadd.f32 %v3945, %v3946
    %v3948 = vmul.f32 %v3947, %v1426
    %v3949 = vmul.f32 %v3940, %v3940
    %v3950 = vsub.f32 %v3948, %v3949
    %v3951 = vmax.f32 %v3950, 0.0
    %v3952 = vadd.f32 %v3951, 1e-05
    %v3953 = vrsqrt.pop %v3952
    %v3954 = vmul.f32 %v3932, %v3953
    %v3955 = vlaneseq
    %v3956 = vshrl.u32 %v3955, 7
    %v3957 = vsub.s32 0, %v3956
    %v3958 = vrot.slane %v3954, %v3957
    %v3959 = vmul.f32 %v3927, %v3958
    %v3960 = vmul.f32 %v3940, %v3954
    %v3961 = vsub.f32 %v3933, %v3960
    %v3962 = vlaneseq
    %v3963 = vshrl.u32 %v3962, 7
    %v3964 = vsub.s32 0, %v3963
    %v3965 = vrot.slane %v3961, %v3964
    %v3966 = vadd.f32 %v3959, %v3965
    %v3967 = vadd.f32 %v3966, %v3793
    %v3968 = vmax.f32 %v3967, 0.0
    %s3969 = sshll.u32 %s3705, 4
    %3970 = dma.done %s184, %s3969
    %s3971 = sshll.u32 %s3705, 4
    %3972 = dma.done %s196, %s3971
    %v3973 = vpack.c.bf16 %v3968, %v3968
    %v3974 = vld [vmem:[#allocation7] sm:$0xff]
    %v3975 = vld [vmem:[#allocation7 + $0x8] sm:$0xff]
    %v3976 = vld [vmem:[#allocation7 + $0x10] sm:$0xff]
    %v3977 = vld [vmem:[#allocation7 + $0x18] sm:$0xff]
    %v3978 = vld [vmem:[#allocation7 + $0x20] sm:$0xff]
    %v3979 = vld [vmem:[#allocation7 + $0x28] sm:$0xff]
    %v3980 = vld [vmem:[#allocation7 + $0x30] sm:$0xff]
    %v3981 = vld [vmem:[#allocation7 + $0x38] sm:$0xff]
    %3982 = vmatprep.subr.bf16.mxu0 0
    %3983 = vmatpush1.bf16.msra.mxu0 %v3974
    %3984 = vmatprep.subr.bf16.mxu0 0
    %3985 = vmatpush1.bf16.msra.mxu0 %v3975
    %3986 = vmatprep.subr.bf16.mxu0 0
    %3987 = vmatpush1.bf16.msra.mxu0 %v3976
    %3988 = vmatprep.subr.bf16.mxu0 0
    %3989 = vmatpush1.bf16.msra.mxu0 %v3977
    %3990 = vmatprep.subr.bf16.mxu0 0
    %3991 = vmatpush1.bf16.msra.mxu0 %v3978
    %3992 = vmatprep.subr.bf16.mxu0 0
    %3993 = vmatpush1.bf16.msra.mxu0 %v3979
    %3994 = vmatprep.subr.bf16.mxu0 0
    %3995 = vmatpush1.bf16.msra.mxu0 %v3980
    %3996 = vmatprep.subr.bf16.mxu0 0
    %3997 = vmatpush1.bf16.msra.mxu0 %v3981
    %3998 = vmatprep.subr.bf16.mxu0 0
    %3999 = vmatpush1.bf16.msra.mxu0 0
    %4000 = vmatprep.subr.bf16.mxu0 0
    %4001 = vmatpush1.bf16.msra.mxu0 0
    %4002 = vmatprep.subr.bf16.mxu0 0
    %4003 = vmatpush1.bf16.msra.mxu0 0
    %4004 = vmatprep.subr.bf16.mxu0 0
    %4005 = vmatpush1.bf16.msra.mxu0 0
    %4006 = vmatprep.subr.bf16.mxu0 0
    %4007 = vmatpush1.bf16.msra.mxu0 0
    %4008 = vmatprep.subr.bf16.mxu0 0
    %4009 = vmatpush1.bf16.msra.mxu0 0
    %4010 = vmatprep.subr.bf16.mxu0 0
    %4011 = vmatpush1.bf16.msra.mxu0 0
    %4012 = vmatprep.subr.bf16.mxu0 0
    %4013 = vmatpush1.bf16.msra.mxu0 0
    %4014 = vmatprep.mubr.bf16.mxu0 0
    %4015 = vmatmul.mubr.bf16.gmra.mrb[0].mxu0 %v3973
    %v4016 = vpop.f32.mrb[0].mxu0
    %v4017 = vadd.f32 0.0, %v4016
    %v4018 = vpop.f32.mrb[0].mxu0
    %v4019 = vpop.f32.mrb[0].mxu0
    %v4020 = vpop.f32.mrb[0].mxu0
    %4021 = vdwg.mxu0
    %v4022 = vld [vmem:[#allocation17 + $0x9] sm:$0x1]
    %v4023 = vld [vmem:[#allocation17 + $0xa] sm:$0x1]
    %v4024 = vrot.slane %v4017, 4
    %v4025 = vadd.f32 %v4017, %v4024
    %v4026 = vrot.slane %v4025, 2
    %v4027 = vadd.f32 %v4025, %v4026
    %v4028 = vrot.slane %v4027, 1
    %v4029 = vadd.f32 %v4027, %v4028
    %v4030 = vmul.f32 %v4029, %v1426
    %v4031 = vmul.f32 %v4017, %v4017
    %v4032 = vrot.slane %v4031, 4
    %v4033 = vadd.f32 %v4031, %v4032
    %v4034 = vrot.slane %v4033, 2
    %v4035 = vadd.f32 %v4033, %v4034
    %v4036 = vrot.slane %v4035, 1
    %v4037 = vadd.f32 %v4035, %v4036
    %v4038 = vmul.f32 %v4037, %v1426
    %v4039 = vmul.f32 %v4030, %v4030
    %v4040 = vsub.f32 %v4038, %v4039
    %v4041 = vmax.f32 %v4040, 0.0
    %v4042 = vadd.f32 %v4041, 1e-05
    %v4043 = vrsqrt.pop %v4042
    %v4044 = vmul.f32 %v4022, %v4043
    %v4045 = vlaneseq
    %v4046 = vshrl.u32 %v4045, 7
    %v4047 = vsub.s32 0, %v4046
    %v4048 = vrot.slane %v4044, %v4047
    %v4049 = vmul.f32 %v4017, %v4048
    %v4050 = vmul.f32 %v4030, %v4044
    %v4051 = vsub.f32 %v4023, %v4050
    %v4052 = vlaneseq
    %v4053 = vshrl.u32 %v4052, 7
    %v4054 = vsub.s32 0, %v4053
    %v4055 = vrot.slane %v4051, %v4054
    %v4056 = vadd.f32 %v4049, %v4055
    %v4057 = vmax.f32 %v4056, 0.0
    %v4058 = vpack.c.bf16 %v4057, %v4057
    %v4059 = vld [vmem:[#allocation8] sm:$0xff]
    %v4060 = vld [vmem:[#allocation8 + $0x8] sm:$0xff]
    %v4061 = vld [vmem:[#allocation8 + $0x10] sm:$0xff]
    %v4062 = vld [vmem:[#allocation8 + $0x18] sm:$0xff]
    %v4063 = vld [vmem:[#allocation8 + $0x20] sm:$0xff]
    %v4064 = vld [vmem:[#allocation8 + $0x28] sm:$0xff]
    %v4065 = vld [vmem:[#allocation8 + $0x30] sm:$0xff]
    %v4066 = vld [vmem:[#allocation8 + $0x38] sm:$0xff]
    %4067 = vmatprep.subr.bf16.mxu0 0
    %4068 = vmatpush1.bf16.msra.mxu0 %v4059
    %4069 = vmatprep.subr.bf16.mxu0 0
    %4070 = vmatpush1.bf16.msra.mxu0 %v4060
    %4071 = vmatprep.subr.bf16.mxu0 0
    %4072 = vmatpush1.bf16.msra.mxu0 %v4061
    %4073 = vmatprep.subr.bf16.mxu0 0
    %4074 = vmatpush1.bf16.msra.mxu0 %v4062
    %4075 = vmatprep.subr.bf16.mxu0 0
    %4076 = vmatpush1.bf16.msra.mxu0 %v4063
    %4077 = vmatprep.subr.bf16.mxu0 0
    %4078 = vmatpush1.bf16.msra.mxu0 %v4064
    %4079 = vmatprep.subr.bf16.mxu0 0
    %4080 = vmatpush1.bf16.msra.mxu0 %v4065
    %4081 = vmatprep.subr.bf16.mxu0 0
    %4082 = vmatpush1.bf16.msra.mxu0 %v4066
    %4083 = vmatprep.subr.bf16.mxu0 0
    %4084 = vmatpush1.bf16.msra.mxu0 0
    %4085 = vmatprep.subr.bf16.mxu0 0
    %4086 = vmatpush1.bf16.msra.mxu0 0
    %4087 = vmatprep.subr.bf16.mxu0 0
    %4088 = vmatpush1.bf16.msra.mxu0 0
    %4089 = vmatprep.subr.bf16.mxu0 0
    %4090 = vmatpush1.bf16.msra.mxu0 0
    %4091 = vmatprep.subr.bf16.mxu0 0
    %4092 = vmatpush1.bf16.msra.mxu0 0
    %4093 = vmatprep.subr.bf16.mxu0 0
    %4094 = vmatpush1.bf16.msra.mxu0 0
    %4095 = vmatprep.subr.bf16.mxu0 0
    %4096 = vmatpush1.bf16.msra.mxu0 0
    %4097 = vmatprep.subr.bf16.mxu0 0
    %4098 = vmatpush1.bf16.msra.mxu0 0
    %4099 = vmatprep.mubr.bf16.mxu0 0
    %4100 = vmatmul.mubr.bf16.gmra.mrb[0].mxu0 %v4058
    %v4101 = vpop.f32.mrb[0].mxu0
    %v4102 = vadd.f32 0.0, %v4101
    %v4103 = vpop.f32.mrb[0].mxu0
    %v4104 = vpop.f32.mrb[0].mxu0
    %v4105 = vpop.f32.mrb[0].mxu0
    %4106 = vdwg.mxu0
    %v4107 = vld [vmem:[#allocation17 + $0xb] sm:$0x1]
    %v4108 = vld [vmem:[#allocation17 + $0xc] sm:$0x1]
    %v4109 = vrot.slane %v4102, 4
    %v4110 = vadd.f32 %v4102, %v4109
    %v4111 = vrot.slane %v4110, 2
    %v4112 = vadd.f32 %v4110, %v4111
    %v4113 = vrot.slane %v4112, 1
    %v4114 = vadd.f32 %v4112, %v4113
    %v4115 = vmul.f32 %v4114, %v1426
    %v4116 = vmul.f32 %v4102, %v4102
    %v4117 = vrot.slane %v4116, 4
    %v4118 = vadd.f32 %v4116, %v4117
    %v4119 = vrot.slane %v4118, 2
    %v4120 = vadd.f32 %v4118, %v4119
    %v4121 = vrot.slane %v4120, 1
    %v4122 = vadd.f32 %v4120, %v4121
    %v4123 = vmul.f32 %v4122, %v1426
    %v4124 = vmul.f32 %v4115, %v4115
    %v4125 = vsub.f32 %v4123, %v4124
    %v4126 = vmax.f32 %v4125, 0.0
    %v4127 = vadd.f32 %v4126, 1e-05
    %v4128 = vrsqrt.pop %v4127
    %v4129 = vmul.f32 %v4107, %v4128
    %v4130 = vlaneseq
    %v4131 = vshrl.u32 %v4130, 7
    %v4132 = vsub.s32 0, %v4131
    %v4133 = vrot.slane %v4129, %v4132
    %v4134 = vmul.f32 %v4102, %v4133
    %v4135 = vmul.f32 %v4115, %v4129
    %v4136 = vsub.f32 %v4108, %v4135
    %v4137 = vlaneseq
    %v4138 = vshrl.u32 %v4137, 7
    %v4139 = vsub.s32 0, %v4138
    %v4140 = vrot.slane %v4136, %v4139
    %v4141 = vadd.f32 %v4134, %v4140
    %v4142 = vadd.f32 %v4141, %v3968
    %v4143 = vmax.f32 %v4142, 0.0
    %s4144 = sshll.u32 %s3705, 4
    %4145 = dma.done %s208, %s4144
    %v4146 = vpack.c.bf16 %v4143, %v4143
    %v4147 = vld [vmem:[#allocation9] sm:$0xff]
    %v4148 = vld [vmem:[#allocation9 + $0x8] sm:$0xff]
    %v4149 = vld [vmem:[#allocation9 + $0x10] sm:$0xff]
    %v4150 = vld [vmem:[#allocation9 + $0x18] sm:$0xff]
    %v4151 = vld [vmem:[#allocation9 + $0x20] sm:$0xff]
    %v4152 = vld [vmem:[#allocation9 + $0x28] sm:$0xff]
    %v4153 = vld [vmem:[#allocation9 + $0x30] sm:$0xff]
    %v4154 = vld [vmem:[#allocation9 + $0x38] sm:$0xff]
    %v4155 = vld [vmem:[#allocation17 + $0xd] sm:$0x1]
    %v4156 = vlaneseq
    %v4157 = vshrl.u32 %v4156, 7
    %v4158 = vsub.s32 0, %v4157
    %v4159 = vrot.slane %v4155, %v4158
    %4160 = vmatprep.subr.bf16.mxu0 0
    %4161 = vmatpush1.bf16.msra.mxu0 %v4147
    %4162 = vmatprep.subr.bf16.mxu0 0
    %4163 = vmatpush1.bf16.msra.mxu0 %v4148
    %4164 = vmatprep.subr.bf16.mxu0 0
    %4165 = vmatpush1.bf16.msra.mxu0 %v4149
    %4166 = vmatprep.subr.bf16.mxu0 0
    %4167 = vmatpush1.bf16.msra.mxu0 %v4150
    %4168 = vmatprep.subr.bf16.mxu0 0
    %4169 = vmatpush1.bf16.msra.mxu0 %v4151
    %4170 = vmatprep.subr.bf16.mxu0 0
    %4171 = vmatpush1.bf16.msra.mxu0 %v4152
    %4172 = vmatprep.subr.bf16.mxu0 0
    %4173 = vmatpush1.bf16.msra.mxu0 %v4153
    %4174 = vmatprep.subr.bf16.mxu0 0
    %4175 = vmatpush1.bf16.msra.mxu0 %v4154
    %4176 = vmatprep.subr.bf16.mxu0 0
    %4177 = vmatpush1.bf16.msra.mxu0 0
    %4178 = vmatprep.subr.bf16.mxu0 0
    %4179 = vmatpush1.bf16.msra.mxu0 0
    %4180 = vmatprep.subr.bf16.mxu0 0
    %4181 = vmatpush1.bf16.msra.mxu0 0
    %4182 = vmatprep.subr.bf16.mxu0 0
    %4183 = vmatpush1.bf16.msra.mxu0 0
    %4184 = vmatprep.subr.bf16.mxu0 0
    %4185 = vmatpush1.bf16.msra.mxu0 0
    %4186 = vmatprep.subr.bf16.mxu0 0
    %4187 = vmatpush1.bf16.msra.mxu0 0
    %4188 = vmatprep.subr.bf16.mxu0 0
    %4189 = vmatpush1.bf16.msra.mxu0 0
    %4190 = vmatprep.subr.bf16.mxu0 0
    %4191 = vmatpush1.bf16.msra.mxu0 0
    %4192 = vmatprep.mubr.bf16.mxu0 0
    %4193 = vmatmul.mubr.bf16.gmra.mrb[0].mxu0 %v4146
    %v4194 = vpop.f32.mrb[0].mxu0
    %v4195 = vadd.f32 %v4159, %v4194
    %v4196 = vpop.f32.mrb[0].mxu0
    %v4197 = vpop.f32.mrb[0].mxu0
    %v4198 = vpop.f32.mrb[0].mxu0
    %4199 = vdwg.mxu0
    %4200 = vst [vmem:[#allocation19] sm:$0xff] %v4195
    // Predicated region
    $region58: #{tpu_custom_call.1} parent=1 // pred_check
      _
    $region59: #{tpu_custom_call.1} parent=1 // pred_check_branch
      %4202 = sbr.rel (0) target = $region61
    $region60: #{tpu_custom_call.1} parent=1 // pred_region
      %s4204 = ssub.s32 128, 128
      %4205 = vsyncadd [#allocation13], %s4204
      %s4207 = sshll.u32 [#allocation19], 4
      %s4208 = int_to_ptr.vmem [resolvable:$true] %s4207
      %4210 = dma.vmem_to_hbm [thread:$0]  %s4208, 128, %s12, [#allocation13]
    $region61: #{tpu_custom_call.1} parent=1 // pred_fallthru
      _
    // Predicated region
    $region62: #{tpu_custom_call.1} parent=1 // pred_check
      _
    $region63: #{tpu_custom_call.1} parent=1 // pred_check_branch
      %4212 = sbr.rel (0) target = $region65
    $region64: #{tpu_custom_call.1} parent=1 // pred_region
      %4213 = dma.done [#allocation13], 128
    $region65: #{tpu_custom_call.1} parent=1 // pred_fallthru
      _
    %4214 = vsyncpa [#allocation12], 1
    %4215 = vsyncpa [#allocation15], 1
    %4216 = vsyncpa [#allocation18], 1
    %4217 = vsyncpa [#allocation13], 1
  %4218 = vsyncmov [#allocation10]
  %s4219 = vpop.sfrf %4218
  %p4220 = scmp.eq.s32.totalorder %s4219, 0
  %p4221 = pneg %p4220
  %4223 = shalt.err (%p4221)
  %s4224 = scalar_lea.sflag [#allocation10], 1
  %4225 = vsyncmov %s4224
  %s4226 = vpop.sfrf %4225
  %p4227 = scmp.eq.s32.totalorder %s4226, 0
  %p4228 = pneg %p4227
  %4230 = shalt.err (%p4228)
  %s4231 = scalar_lea.sflag [#allocation10], 2
  %4232 = vsyncmov %s4231
  %s4233 = vpop.sfrf %4232
  %p4234 = scmp.eq.s32.totalorder %s4233, 0
  %p4235 = pneg %p4234
  %4237 = shalt.err (%p4235)
  %s4238 = scalar_lea.sflag [#allocation10], 3
  %4239 = vsyncmov %s4238
  %s4240 = vpop.sfrf %4239
  %p4241 = scmp.eq.s32.totalorder %s4240, 0
  %p4242 = pneg %p4241
  %4244 = shalt.err (%p4242)
  %s4245 = scalar_lea.sflag [#allocation10], 4
  %4246 = vsyncmov %s4245
  %s4247 = vpop.sfrf %4246
  %p4248 = scmp.eq.s32.totalorder %s4247, 0
  %p4249 = pneg %p4248
  %4251 = shalt.err (%p4249)
  %s4252 = scalar_lea.sflag [#allocation10], 5
  %4253 = vsyncmov %s4252
  %s4254 = vpop.sfrf %4253
  %p4255 = scmp.eq.s32.totalorder %s4254, 0
  %p4256 = pneg %p4255
  %4258 = shalt.err (%p4256)
  %s4259 = scalar_lea.sflag [#allocation10], 6
  %4260 = vsyncmov %s4259
  %s4261 = vpop.sfrf %4260
  %p4262 = scmp.eq.s32.totalorder %s4261, 0
  %p4263 = pneg %p4262
  %4265 = shalt.err (%p4263)
  %s4266 = scalar_lea.sflag [#allocation10], 7
  %4267 = vsyncmov %s4266
  %s4268 = vpop.sfrf %4267
  %p4269 = scmp.eq.s32.totalorder %s4268, 0
  %p4270 = pneg %p4269
  %4272 = shalt.err (%p4270)

</llo_original>
